<compile_context>
chip_gen: v7x
topology: tpu7x:2x2x1
jax: 0.10.0
libtpu: 0.0.40
codegen_flags: <defaults>
</compile_context>

<pallas_src>
import math

import numpy as np

import jax
import jax.numpy as jnp
from jax.experimental import pallas as pl


# ----------------------------- model config (small) -----------------------------
VOCAB_SIZE = 50
EMBED_DIM = 32          # d_model
NUM_HEADS = 4
NUM_LAYERS = 2
NUM_CLASSES = 2
MAX_LEN = 16
FFN_DIM = 64            # dim_feedforward (PyTorch default 2048, scaled down)
SEQ_LEN = 8
BATCH = 2
LN_EPS = 1e-5
LANE = 128              # TPU lane width
SUBL = 8                # TPU sublane count

BS = BATCH * SEQ_LEN                   # 16  : batch folded into sublanes
HBS = NUM_HEADS * BS                   # 64  : heads AND batch folded into sublanes
HEAD_DIM = EMBED_DIM // NUM_HEADS      # 8
VOCAB_PAD = ((VOCAB_SIZE + 7) // 8) * 8


# ----------------------------- packed-slab row layouts (all 8-row aligned, lane offset 0) ---
# statics slab: (S_ROWS, 128) f32
S_POS = 0                       # (BS, D)       positional encodings, flattened over (B,S)
S_EMB = S_POS + BS              # (VOCAB_PAD,D) embedding table
S_REP = S_EMB + VOCAB_PAD       # (HBS, BS)     head replication matrix * 1/sqrt(dh)
S_FOLD = S_REP + HBS            # (BS, HBS)     fold head groups back (sum over heads)
S_HMASK = S_FOLD + BS           # (HBS, D)      per-head lane mask (0/1)
S_AMASK = S_HMASK + HBS         # (HBS, BS)     same-sequence additive mask (0 / -1e30)
S_POOL = S_AMASK + HBS          # (8, BS)       mean-pool matrix (rows >= B are zero)
S_FCW = S_POOL + SUBL           # (D, 128)      classifier weight, lane-padded
S_FCB = S_FCW + EMBED_DIM       # (1, 128)      classifier bias, lane-padded (8 rows reserved)
S_ROWS = S_FCB + SUBL

# per-layer weight-matrix slab: (L, W_ROWS, 128) f32
W_Q = 0                         # (D, D)
W_K = W_Q + EMBED_DIM           # (D, D)
W_V = W_K + EMBED_DIM           # (D, D)
W_O = W_V + EMBED_DIM           # (D, D)
W_1 = W_O + EMBED_DIM           # (D, F)
W_2 = W_1 + EMBED_DIM           # (F, D)
W_ROWS = W_2 + FFN_DIM

# per-layer bias / LayerNorm vector slab: (L, V_ROWS, 128) f32, one vector per 8-row block
V_BQ, V_BK, V_BV, V_BO = 0, 8, 16, 24
V_B1, V_B2 = 32, 40
V_L1G, V_L1B, V_L2G, V_L2B = 48, 56, 64, 72
V_ROWS = 80


# ----------------------------- helpers -----------------------------
def _layer_norm(x, gamma, beta, eps=LN_EPS):
    # x: (..., D); gamma/beta: (1, D). Biased variance, matching nn.LayerNorm.
    mean = jnp.mean(x, axis=-1, keepdims=True)
    var = jnp.mean((x - mean) ** 2, axis=-1, keepdims=True)
    return (x - mean) * jax.lax.rsqrt(var + eps) * gamma + beta


def _full_spec(arr):
    zeros = (0,) * arr.ndim
    return pl.BlockSpec(arr.shape, lambda z=zeros: z)


# ----------------------------- fused forward kernel -----------------------------
def fused_gpt_kernel(ids_ref, st_ref, wm_ref, lv_ref, out_ref):
    D, F = EMBED_DIM, FFN_DIM

    # ---- packed constants (static, sublane-aligned, lane offset 0 => cheap views) ----
    pos = st_ref[S_POS:S_POS + BS, :D]
    emb = st_ref[S_EMB:S_EMB + VOCAB_PAD, :D]
    rep = st_ref[S_REP:S_REP + HBS, :BS]        # 1/sqrt(dh) folded in
    fold = st_ref[S_FOLD:S_FOLD + BS, :HBS]
    hmask = st_ref[S_HMASK:S_HMASK + HBS, :D]
    amask = st_ref[S_AMASK:S_AMASK + HBS, :BS]

    # ---- embedding gather as a one-hot matmul (MXU, no dynamic gather) + pos enc ----
    ids = ids_ref[...]                                           # (BS, 1) int32
    iota = jax.lax.broadcasted_iota(jnp.int32, (BS, VOCAB_PAD), 1)
    onehot = (iota == ids).astype(jnp.float32)                   # (BS, VOCAB_PAD)
    x = jnp.dot(onehot, emb, preferred_element_type=jnp.float32) + pos   # (BS, D)

    for li in range(NUM_LAYERS):                                 # static unroll
        wq = wm_ref[li, W_Q:W_Q + D, :D]
        wk = wm_ref[li, W_K:W_K + D, :D]
        wv = wm_ref[li, W_V:W_V + D, :D]
        wo = wm_ref[li, W_O:W_O + D, :D]
        w1 = wm_ref[li, W_1:W_1 + D, :F]
        w2 = wm_ref[li, W_2:W_2 + F, :D]
        bq = lv_ref[li, V_BQ:V_BQ + 1, :D]
        bk = lv_ref[li, V_BK:V_BK + 1, :D]
        bv = lv_ref[li, V_BV:V_BV + 1, :D]
        bo = lv_ref[li, V_BO:V_BO + 1, :D]
        b1 = lv_ref[li, V_B1:V_B1 + 1, :F]
        b2 = lv_ref[li, V_B2:V_B2 + 1, :D]
        ln1g = lv_ref[li, V_L1G:V_L1G + 1, :D]
        ln1b = lv_ref[li, V_L1B:V_L1B + 1, :D]
        ln2g = lv_ref[li, V_L2G:V_L2G + 1, :D]
        ln2b = lv_ref[li, V_L2B:V_L2B + 1, :D]

        # ---- multi-head self-attention with heads folded into the sublane axis ----
        q = jnp.dot(x, wq, preferred_element_type=jnp.float32) + bq       # (BS, D)
        k = jnp.dot(x, wk, preferred_element_type=jnp.float32) + bk       # (BS, D)
        v = jnp.dot(x, wv, preferred_element_type=jnp.float32) + bv       # (BS, D)

        # Replicate q once per head group; keep only that head's lanes (scale pre-folded).
        q_rep = jnp.dot(rep, q, preferred_element_type=jnp.float32) * hmask   # (HBS, D)
        # One score matmul for ALL heads: for a row in group h, the lane contraction
        # picks out head h's slice of k.  amask kills cross-sequence terms.
        s = jax.lax.dot_general(q_rep, k, (((1,), (1,)), ((), ())),
                                preferred_element_type=jnp.float32) + amask    # (HBS, BS)
        s = s - jnp.max(s, axis=-1, keepdims=True)
        p = jnp.exp(s)
        p = p / jnp.sum(p, axis=-1, keepdims=True)               # exact softmax (1 chain/layer)
        # Context for all heads; zero out other heads' lanes, then fold groups back so the
        # per-head contexts land concatenated in standard lane order.
        ctx = jnp.dot(p, v, preferred_element_type=jnp.float32) * hmask        # (HBS, D)
        ctx_cat = jnp.dot(fold, ctx, preferred_element_type=jnp.float32)       # (BS, D)
        attn = jnp.dot(ctx_cat, wo, preferred_element_type=jnp.float32) + bo   # (BS, D)

        # ---- residual + LayerNorm 1 (post-norm) ----
        x = _layer_norm(x + attn, ln1g, ln1b)

        # ---- feed-forward (ReLU) ----
        h1 = jnp.dot(x, w1, preferred_element_type=jnp.float32) + b1
        h1 = jnp.maximum(h1, 0.0)
        ff = jnp.dot(h1, w2, preferred_element_type=jnp.float32) + b2

        # ---- residual + LayerNorm 2 ----
        x = _layer_norm(x + ff, ln2g, ln2b)

    # ---- mean-pool over sequence (matmul) + classifier head, full (8,128) vreg store ----
    pool = st_ref[S_POOL:S_POOL + SUBL, :BS]
    fcw = st_ref[S_FCW:S_FCW + D, :]
    fcb = st_ref[S_FCB:S_FCB + 1, :]
    pooled = jnp.dot(pool, x, preferred_element_type=jnp.float32)              # (8, D)
    out_ref[...] = jnp.dot(pooled, fcw, preferred_element_type=jnp.float32) + fcb


# ----------------------------- parameter init (PyTorch-like layout) -----------------------------
def init_params(key):
    keys = jax.random.split(key, 4 + NUM_LAYERS)
    params = {
        "embedding": 0.02 * jax.random.normal(keys[0], (VOCAB_SIZE, EMBED_DIM), jnp.float32),
        # nn.Parameter(torch.zeros(1, max_len, embed_dim))
        "pos_enc": jnp.zeros((1, MAX_LEN, EMBED_DIM), jnp.float32),
        "fc_w": 0.02 * jax.random.normal(keys[1], (EMBED_DIM, NUM_CLASSES), jnp.float32),
        "fc_b": jnp.zeros((1, NUM_CLASSES), jnp.float32),
        "layers": [],
    }
    for li in range(NUM_LAYERS):
        lk = jax.random.split(keys[4 + li], 6)
        params["layers"].append({
            # stored (D, 3D), i.e. transposed vs PyTorch in_proj_weight (3D, D).
            "wqkv": 0.02 * jax.random.normal(lk[0], (EMBED_DIM, 3 * EMBED_DIM), jnp.float32),
            "bqkv": jnp.zeros((1, 3 * EMBED_DIM), jnp.float32),
            "wo": 0.02 * jax.random.normal(lk[1], (EMBED_DIM, EMBED_DIM), jnp.float32),
            "bo": jnp.zeros((1, EMBED_DIM), jnp.float32),
            "ln1_g": jnp.ones((1, EMBED_DIM), jnp.float32),
            "ln1_b": jnp.zeros((1, EMBED_DIM), jnp.float32),
            "w1": 0.02 * jax.random.normal(lk[2], (EMBED_DIM, FFN_DIM), jnp.float32),
            "b1": jnp.zeros((1, FFN_DIM), jnp.float32),
            "w2": 0.02 * jax.random.normal(lk[3], (FFN_DIM, EMBED_DIM), jnp.float32),
            "b2": jnp.zeros((1, EMBED_DIM), jnp.float32),
            "ln2_g": jnp.ones((1, EMBED_DIM), jnp.float32),
            "ln2_b": jnp.zeros((1, EMBED_DIM), jnp.float32),
        })
    return params


# ----------------------------- one-time operand packing (hoisted out of per-call path) ----------
def pack_params(params):
    """Pack all weights + kernel constants into 3 slabs. Run ONCE per parameter set."""
    D, F, C = EMBED_DIM, FFN_DIM, NUM_CLASSES
    B, S = BATCH, SEQ_LEN
    dh = HEAD_DIM
    scale = 1.0 / math.sqrt(dh)

    statics = np.zeros((S_ROWS, LANE), np.float32)
    pos = np.asarray(params["pos_enc"])[0, :S, :]                          # (S, D)
    statics[S_POS:S_POS + BS, :D] = np.broadcast_to(pos[None], (B, S, D)).reshape(BS, D)
    emb = np.asarray(params["embedding"])
    statics[S_EMB:S_EMB + emb.shape[0], :D] = emb

    row = np.arange(HBS)
    tok = row % BS                       # flattened (batch, seq) token index
    head = row // BS                     # head-group index
    statics[S_REP:S_REP + HBS, :BS] = scale * (tok[:, None] == np.arange(BS)[None, :])
    statics[S_FOLD:S_FOLD + BS, :HBS] = (np.arange(BS)[:, None] == tok[None, :])
    statics[S_HMASK:S_HMASK + HBS, :D] = (np.arange(D)[None, :] // dh == head[:, None])
    same_seq = (tok[:, None] // S) == (np.arange(BS)[None, :] // S)
    statics[S_AMASK:S_AMASK + HBS, :BS] = np.where(same_seq, 0.0, -1e30)
    statics[S_POOL:S_POOL + B, :BS] = \
        (np.arange(B)[:, None] == (np.arange(BS)[None, :] // S)) / float(S)
    statics[S_FCW:S_FCW + D, :C] = np.asarray(params["fc_w"])
    statics[S_FCB, :C] = np.asarray(params["fc_b"])[0]

    wmats = np.zeros((NUM_LAYERS, W_ROWS, LANE), np.float32)
    lvecs = np.zeros((NUM_LAYERS, V_ROWS, LANE), np.float32)
    for li, lp in enumerate(params["layers"]):
        wqkv = np.asarray(lp["wqkv"])
        bqkv = np.asarray(lp["bqkv"])[0]
        wmats[li, W_Q:W_Q + D, :D] = wqkv[:, :D]
        wmats[li, W_K:W_K + D, :D] = wqkv[:, D:2 * D]
        wmats[li, W_V:W_V + D, :D] = wqkv[:, 2 * D:]
        wmats[li, W_O:W_O + D, :D] = np.asarray(lp["wo"])
        wmats[li, W_1:W_1 + D, :F] = np.asarray(lp["w1"])
        wmats[li, W_2:W_2 + F, :D] = np.asarray(lp["w2"])
        lvecs[li, V_BQ, :D] = bqkv[:D]
        lvecs[li, V_BK, :D] = bqkv[D:2 * D]
        lvecs[li, V_BV, :D] = bqkv[2 * D:]
        lvecs[li, V_BO, :D] = np.asarray(lp["bo"])[0]
        lvecs[li, V_B1, :F] = np.asarray(lp["b1"])[0]
        lvecs[li, V_B2, :D] = np.asarray(lp["b2"])[0]
        lvecs[li, V_L1G, :D] = np.asarray(lp["ln1_g"])[0]
        lvecs[li, V_L1B, :D] = np.asarray(lp["ln1_b"])[0]
        lvecs[li, V_L2G, :D] = np.asarray(lp["ln2_g"])[0]
        lvecs[li, V_L2B, :D] = np.asarray(lp["ln2_b"])[0]

    return jnp.asarray(statics), jnp.asarray(wmats), jnp.asarray(lvecs)


# ----------------------------- forward: one pallas_call, no per-call weight prep ----------------
@jax.jit
def gpt_classifier_forward(token_ids, statics, wmats, lvecs):
    ids2d = token_ids.reshape(BS, 1).astype(jnp.int32)
    operands = (ids2d, statics, wmats, lvecs)
    logits_pad = pl.pallas_call(
        fused_gpt_kernel,
        out_shape=jax.ShapeDtypeStruct((SUBL, LANE), jnp.float32),
        in_specs=[_full_spec(a) for a in operands],
        out_specs=pl.BlockSpec((SUBL, LANE), lambda: (0, 0)),
    )(*operands)
    return logits_pad[:BATCH, :NUM_CLASSES]


# ----------------------------- pure-JAX reference (for correctness check) -----------------------
def gpt_classifier_reference(token_ids, params):
    B, S = token_ids.shape
    D, H = EMBED_DIM, NUM_HEADS
    dh = D // H
    x = jnp.take(params["embedding"], token_ids, axis=0) + params["pos_enc"][:, :S, :]
    for lp in params["layers"]:
        qkv = x @ lp["wqkv"] + lp["bqkv"]
        q, k, v = qkv[..., :D], qkv[..., D:2 * D], qkv[..., 2 * D:]
        q = q.reshape(B, S, H, dh).transpose(0, 2, 1, 3)
        k = k.reshape(B, S, H, dh).transpose(0, 2, 1, 3)
        v = v.reshape(B, S, H, dh).transpose(0, 2, 1, 3)
        s = jnp.einsum("bhsd,bhtd->bhst", q, k) / math.sqrt(dh)
        p = jax.nn.softmax(s, axis=-1)
        ctx = jnp.einsum("bhst,bhtd->bhsd", p, v).transpose(0, 2, 1, 3).reshape(B, S, D)
        attn = ctx @ lp["wo"] + lp["bo"]
        x = _layer_norm(x + attn, lp["ln1_g"], lp["ln1_b"])
        h1 = jax.nn.relu(x @ lp["w1"] + lp["b1"])
        ff = h1 @ lp["w2"] + lp["b2"]
        x = _layer_norm(x + ff, lp["ln2_g"], lp["ln2_b"])
    pooled = x.mean(axis=1)
    return pooled @ params["fc_w"] + params["fc_b"]


if __name__ == "__main__":
    key = jax.random.PRNGKey(0)
    pkey, dkey = jax.random.split(key)
    params = init_params(pkey)
    # One-time packing of weights/constants (hoisted out of the steady-state forward path).
    statics, wmats, lvecs = pack_params(params)

    token_ids = jax.random.randint(dkey, (BATCH, SEQ_LEN), 0, VOCAB_SIZE, dtype=jnp.int32)

    logits = gpt_classifier_forward(token_ids, statics, wmats, lvecs)
    jax.block_until_ready(logits)
    assert logits.shape == (BATCH, NUM_CLASSES), logits.shape
    assert bool(jnp.all(jnp.isfinite(logits)))

    ref = gpt_classifier_reference(token_ids, params)
    assert bool(jnp.allclose(logits, ref, atol=1e-3, rtol=1e-2)), (logits, ref)
    print("KERNEL_OK")
</pallas_src>

<mosaic_0001>
module attributes {stable_mosaic.version = 11 : i64} {
  func.func @fused_gpt_kernel(%arg0: memref<16x1xi32, #tpu.memory_space<vmem>>, %arg1: memref<328x128xf32, #tpu.memory_space<vmem>>, %arg2: memref<2x224x128xf32, #tpu.memory_space<vmem>>, %arg3: memref<2x80x128xf32, #tpu.memory_space<vmem>>, %arg4: memref<8x128xf32, #tpu.memory_space<vmem>>) attributes {dimension_semantics = [], scalar_prefetch = 0 : i64, scratch_operands = 0 : i64, tpu.core_type = #tpu.core_type<tc>} {
    %c0 = arith.constant 0 : index
    %c0_0 = arith.constant 0 : index
    %0 = vector.load %arg1[%c0, %c0_0] : memref<328x128xf32, #tpu.memory_space<vmem>>, vector<16x32xf32>
    %c16 = arith.constant 16 : index
    %c0_1 = arith.constant 0 : index
    %1 = vector.load %arg1[%c16, %c0_1] : memref<328x128xf32, #tpu.memory_space<vmem>>, vector<56x32xf32>
    %c72 = arith.constant 72 : index
    %c0_2 = arith.constant 0 : index
    %2 = vector.load %arg1[%c72, %c0_2] : memref<328x128xf32, #tpu.memory_space<vmem>>, vector<64x16xf32>
    %c136 = arith.constant 136 : index
    %c0_3 = arith.constant 0 : index
    %3 = vector.load %arg1[%c136, %c0_3] : memref<328x128xf32, #tpu.memory_space<vmem>>, vector<16x64xf32>
    %c152 = arith.constant 152 : index
    %c0_4 = arith.constant 0 : index
    %4 = vector.load %arg1[%c152, %c0_4] : memref<328x128xf32, #tpu.memory_space<vmem>>, vector<64x32xf32>
    %c216 = arith.constant 216 : index
    %c0_5 = arith.constant 0 : index
    %5 = vector.load %arg1[%c216, %c0_5] : memref<328x128xf32, #tpu.memory_space<vmem>>, vector<64x16xf32>
    %c0_6 = arith.constant 0 : index
    %c0_7 = arith.constant 0 : index
    %6 = vector.load %arg0[%c0_6, %c0_7] : memref<16x1xi32, #tpu.memory_space<vmem>>, vector<16x1xi32>
    %7 = tpu.iota {dimensions = array<i32: 1>} : vector<16x56xi32>
    %8 = vector.broadcast %6 : vector<16x1xi32> to vector<16x56xi32>
    %9 = arith.cmpi eq, %7, %8 : vector<16x56xi32>
    %10 = arith.extui %9 : vector<16x56xi1> to vector<16x56xi32>
    %11 = arith.sitofp %10 : vector<16x56xi32> to vector<16x56xf32>
    %cst = arith.constant dense<0.000000e+00> : vector<16x32xf32>
    %12 = tpu.matmul %11, %1, %cst {dimension_numbers = #tpu.dot_dimension_numbers<[1], [0], [0], [1], [0, 0, 1, 1], [], []>} : vector<16x56xf32>, vector<56x32xf32>, vector<16x32xf32> -> vector<16x32xf32>
    %13 = arith.addf %12, %0 : vector<16x32xf32>
    %c0_8 = arith.constant 0 : index
    %c0_9 = arith.constant 0 : index
    %c0_10 = arith.constant 0 : index
    %14 = vector.load %arg2[%c0_8, %c0_9, %c0_10] : memref<2x224x128xf32, #tpu.memory_space<vmem>>, vector<1x32x32xf32>
    %15 = vector.shape_cast %14 : vector<1x32x32xf32> to vector<32x32xf32>
    %c0_11 = arith.constant 0 : index
    %c32 = arith.constant 32 : index
    %c0_12 = arith.constant 0 : index
    %16 = vector.load %arg2[%c0_11, %c32, %c0_12] : memref<2x224x128xf32, #tpu.memory_space<vmem>>, vector<1x32x32xf32>
    %17 = vector.shape_cast %16 : vector<1x32x32xf32> to vector<32x32xf32>
    %c0_13 = arith.constant 0 : index
    %c64 = arith.constant 64 : index
    %c0_14 = arith.constant 0 : index
    %18 = vector.load %arg2[%c0_13, %c64, %c0_14] : memref<2x224x128xf32, #tpu.memory_space<vmem>>, vector<1x32x32xf32>
    %19 = vector.shape_cast %18 : vector<1x32x32xf32> to vector<32x32xf32>
    %c0_15 = arith.constant 0 : index
    %c96 = arith.constant 96 : index
    %c0_16 = arith.constant 0 : index
    %20 = vector.load %arg2[%c0_15, %c96, %c0_16] : memref<2x224x128xf32, #tpu.memory_space<vmem>>, vector<1x32x32xf32>
    %21 = vector.shape_cast %20 : vector<1x32x32xf32> to vector<32x32xf32>
    %c0_17 = arith.constant 0 : index
    %c128 = arith.constant 128 : index
    %c0_18 = arith.constant 0 : index
    %22 = vector.load %arg2[%c0_17, %c128, %c0_18] : memref<2x224x128xf32, #tpu.memory_space<vmem>>, vector<1x32x64xf32>
    %23 = vector.shape_cast %22 : vector<1x32x64xf32> to vector<32x64xf32>
    %c0_19 = arith.constant 0 : index
    %c160 = arith.constant 160 : index
    %c0_20 = arith.constant 0 : index
    %24 = vector.load %arg2[%c0_19, %c160, %c0_20] : memref<2x224x128xf32, #tpu.memory_space<vmem>>, vector<1x64x32xf32>
    %25 = vector.shape_cast %24 : vector<1x64x32xf32> to vector<64x32xf32>
    %c0_21 = arith.constant 0 : index
    %c0_22 = arith.constant 0 : index
    %c0_23 = arith.constant 0 : index
    %26 = vector.load %arg3[%c0_21, %c0_22, %c0_23] : memref<2x80x128xf32, #tpu.memory_space<vmem>>, vector<1x1x32xf32>
    %27 = vector.shape_cast %26 : vector<1x1x32xf32> to vector<1x32xf32>
    %c0_24 = arith.constant 0 : index
    %c8 = arith.constant 8 : index
    %c0_25 = arith.constant 0 : index
    %28 = vector.load %arg3[%c0_24, %c8, %c0_25] : memref<2x80x128xf32, #tpu.memory_space<vmem>>, vector<1x1x32xf32>
    %29 = vector.shape_cast %28 : vector<1x1x32xf32> to vector<1x32xf32>
    %c0_26 = arith.constant 0 : index
    %c16_27 = arith.constant 16 : index
    %c0_28 = arith.constant 0 : index
    %30 = vector.load %arg3[%c0_26, %c16_27, %c0_28] : memref<2x80x128xf32, #tpu.memory_space<vmem>>, vector<1x1x32xf32>
    %31 = vector.shape_cast %30 : vector<1x1x32xf32> to vector<1x32xf32>
    %c0_29 = arith.constant 0 : index
    %c24 = arith.constant 24 : index
    %c0_30 = arith.constant 0 : index
    %32 = vector.load %arg3[%c0_29, %c24, %c0_30] : memref<2x80x128xf32, #tpu.memory_space<vmem>>, vector<1x1x32xf32>
    %33 = vector.shape_cast %32 : vector<1x1x32xf32> to vector<1x32xf32>
    %c0_31 = arith.constant 0 : index
    %c32_32 = arith.constant 32 : index
    %c0_33 = arith.constant 0 : index
    %34 = vector.load %arg3[%c0_31, %c32_32, %c0_33] : memref<2x80x128xf32, #tpu.memory_space<vmem>>, vector<1x1x64xf32>
    %35 = vector.shape_cast %34 : vector<1x1x64xf32> to vector<1x64xf32>
    %c0_34 = arith.constant 0 : index
    %c40 = arith.constant 40 : index
    %c0_35 = arith.constant 0 : index
    %36 = vector.load %arg3[%c0_34, %c40, %c0_35] : memref<2x80x128xf32, #tpu.memory_space<vmem>>, vector<1x1x32xf32>
    %37 = vector.shape_cast %36 : vector<1x1x32xf32> to vector<1x32xf32>
    %c0_36 = arith.constant 0 : index
    %c48 = arith.constant 48 : index
    %c0_37 = arith.constant 0 : index
    %38 = vector.load %arg3[%c0_36, %c48, %c0_37] : memref<2x80x128xf32, #tpu.memory_space<vmem>>, vector<1x1x32xf32>
    %39 = vector.shape_cast %38 : vector<1x1x32xf32> to vector<1x32xf32>
    %c0_38 = arith.constant 0 : index
    %c56 = arith.constant 56 : index
    %c0_39 = arith.constant 0 : index
    %40 = vector.load %arg3[%c0_38, %c56, %c0_39] : memref<2x80x128xf32, #tpu.memory_space<vmem>>, vector<1x1x32xf32>
    %41 = vector.shape_cast %40 : vector<1x1x32xf32> to vector<1x32xf32>
    %c0_40 = arith.constant 0 : index
    %c64_41 = arith.constant 64 : index
    %c0_42 = arith.constant 0 : index
    %42 = vector.load %arg3[%c0_40, %c64_41, %c0_42] : memref<2x80x128xf32, #tpu.memory_space<vmem>>, vector<1x1x32xf32>
    %43 = vector.shape_cast %42 : vector<1x1x32xf32> to vector<1x32xf32>
    %c0_43 = arith.constant 0 : index
    %c72_44 = arith.constant 72 : index
    %c0_45 = arith.constant 0 : index
    %44 = vector.load %arg3[%c0_43, %c72_44, %c0_45] : memref<2x80x128xf32, #tpu.memory_space<vmem>>, vector<1x1x32xf32>
    %45 = vector.shape_cast %44 : vector<1x1x32xf32> to vector<1x32xf32>
    %cst_46 = arith.constant dense<0.000000e+00> : vector<16x32xf32>
    %46 = tpu.matmul %13, %15, %cst_46 {dimension_numbers = #tpu.dot_dimension_numbers<[1], [0], [0], [1], [0, 0, 1, 1], [], []>} : vector<16x32xf32>, vector<32x32xf32>, vector<16x32xf32> -> vector<16x32xf32>
    %47 = vector.broadcast %27 : vector<1x32xf32> to vector<16x32xf32>
    %48 = arith.addf %46, %47 : vector<16x32xf32>
    %cst_47 = arith.constant dense<0.000000e+00> : vector<16x32xf32>
    %49 = tpu.matmul %13, %17, %cst_47 {dimension_numbers = #tpu.dot_dimension_numbers<[1], [0], [0], [1], [0, 0, 1, 1], [], []>} : vector<16x32xf32>, vector<32x32xf32>, vector<16x32xf32> -> vector<16x32xf32>
    %50 = vector.broadcast %29 : vector<1x32xf32> to vector<16x32xf32>
    %51 = arith.addf %49, %50 : vector<16x32xf32>
    %cst_48 = arith.constant dense<0.000000e+00> : vector<16x32xf32>
    %52 = tpu.matmul %13, %19, %cst_48 {dimension_numbers = #tpu.dot_dimension_numbers<[1], [0], [0], [1], [0, 0, 1, 1], [], []>} : vector<16x32xf32>, vector<32x32xf32>, vector<16x32xf32> -> vector<16x32xf32>
    %53 = vector.broadcast %31 : vector<1x32xf32> to vector<16x32xf32>
    %54 = arith.addf %52, %53 : vector<16x32xf32>
    %cst_49 = arith.constant dense<0.000000e+00> : vector<64x32xf32>
    %55 = tpu.matmul %2, %48, %cst_49 {dimension_numbers = #tpu.dot_dimension_numbers<[1], [0], [0], [1], [0, 0, 1, 1], [], []>} : vector<64x16xf32>, vector<16x32xf32>, vector<64x32xf32> -> vector<64x32xf32>
    %56 = arith.mulf %55, %4 : vector<64x32xf32>
    %cst_50 = arith.constant dense<0.000000e+00> : vector<64x16xf32>
    %57 = tpu.matmul %56, %51, %cst_50 {dimension_numbers = #tpu.dot_dimension_numbers<[1], [1], [0], [0], [0, 0, 1, 0], [], []>} : vector<64x32xf32>, vector<16x32xf32>, vector<64x16xf32> -> vector<64x16xf32>
    %58 = arith.addf %57, %5 : vector<64x16xf32>
    %cst_51 = arith.constant dense<0xFF800000> : vector<64xf32>
    %59 = vector.multi_reduction <maximumf>, %58, %cst_51 [1] : vector<64x16xf32> to vector<64xf32>
    %60 = vector.shape_cast %59 : vector<64xf32> to vector<64x1xf32>
    %61 = vector.broadcast %60 : vector<64x1xf32> to vector<64x16xf32>
    %62 = arith.subf %58, %61 : vector<64x16xf32>
    %63 = math.exp %62 : vector<64x16xf32>
    %cst_52 = arith.constant dense<0.000000e+00> : vector<64xf32>
    %64 = vector.multi_reduction <add>, %63, %cst_52 [1] : vector<64x16xf32> to vector<64xf32>
    %65 = vector.shape_cast %64 : vector<64xf32> to vector<64x1xf32>
    %66 = vector.broadcast %65 : vector<64x1xf32> to vector<64x16xf32>
    %67 = arith.divf %63, %66 : vector<64x16xf32>
    %cst_53 = arith.constant dense<0.000000e+00> : vector<64x32xf32>
    %68 = tpu.matmul %67, %54, %cst_53 {dimension_numbers = #tpu.dot_dimension_numbers<[1], [0], [0], [1], [0, 0, 1, 1], [], []>} : vector<64x16xf32>, vector<16x32xf32>, vector<64x32xf32> -> vector<64x32xf32>
    %69 = arith.mulf %68, %4 : vector<64x32xf32>
    %cst_54 = arith.constant dense<0.000000e+00> : vector<16x32xf32>
    %70 = tpu.matmul %3, %69, %cst_54 {dimension_numbers = #tpu.dot_dimension_numbers<[1], [0], [0], [1], [0, 0, 1, 1], [], []>} : vector<16x64xf32>, vector<64x32xf32>, vector<16x32xf32> -> vector<16x32xf32>
    %cst_55 = arith.constant dense<0.000000e+00> : vector<16x32xf32>
    %71 = tpu.matmul %70, %21, %cst_55 {dimension_numbers = #tpu.dot_dimension_numbers<[1], [0], [0], [1], [0, 0, 1, 1], [], []>} : vector<16x32xf32>, vector<32x32xf32>, vector<16x32xf32> -> vector<16x32xf32>
    %72 = vector.broadcast %33 : vector<1x32xf32> to vector<16x32xf32>
    %73 = arith.addf %71, %72 : vector<16x32xf32>
    %74 = arith.addf %13, %73 : vector<16x32xf32>
    %cst_56 = arith.constant dense<0.000000e+00> : vector<16xf32>
    %75 = vector.multi_reduction <add>, %74, %cst_56 [1] : vector<16x32xf32> to vector<16xf32>
    %76 = vector.shape_cast %75 : vector<16xf32> to vector<16x1xf32>
    %cst_57 = arith.constant 3.200000e+01 : f32
    %77 = vector.broadcast %cst_57 : f32 to vector<16x1xf32>
    %78 = arith.divf %76, %77 : vector<16x1xf32>
    %79 = vector.broadcast %78 : vector<16x1xf32> to vector<16x32xf32>
    %80 = arith.subf %74, %79 : vector<16x32xf32>
    %81 = arith.mulf %80, %80 : vector<16x32xf32>
    %cst_58 = arith.constant dense<0.000000e+00> : vector<16xf32>
    %82 = vector.multi_reduction <add>, %81, %cst_58 [1] : vector<16x32xf32> to vector<16xf32>
    %83 = vector.shape_cast %82 : vector<16xf32> to vector<16x1xf32>
    %cst_59 = arith.constant 3.200000e+01 : f32
    %84 = vector.broadcast %cst_59 : f32 to vector<16x1xf32>
    %85 = arith.divf %83, %84 : vector<16x1xf32>
    %86 = vector.broadcast %78 : vector<16x1xf32> to vector<16x32xf32>
    %87 = arith.subf %74, %86 : vector<16x32xf32>
    %cst_60 = arith.constant 9.99999974E-6 : f32
    %88 = vector.broadcast %cst_60 : f32 to vector<16x1xf32>
    %89 = arith.addf %85, %88 : vector<16x1xf32>
    %90 = math.rsqrt %89 : vector<16x1xf32>
    %91 = vector.broadcast %90 : vector<16x1xf32> to vector<16x32xf32>
    %92 = arith.mulf %87, %91 : vector<16x32xf32>
    %93 = vector.broadcast %39 : vector<1x32xf32> to vector<16x32xf32>
    %94 = arith.mulf %92, %93 : vector<16x32xf32>
    %95 = vector.broadcast %41 : vector<1x32xf32> to vector<16x32xf32>
    %96 = arith.addf %94, %95 : vector<16x32xf32>
    %cst_61 = arith.constant dense<0.000000e+00> : vector<16x64xf32>
    %97 = tpu.matmul %96, %23, %cst_61 {dimension_numbers = #tpu.dot_dimension_numbers<[1], [0], [0], [1], [0, 0, 1, 1], [], []>} : vector<16x32xf32>, vector<32x64xf32>, vector<16x64xf32> -> vector<16x64xf32>
    %98 = vector.broadcast %35 : vector<1x64xf32> to vector<16x64xf32>
    %99 = arith.addf %97, %98 : vector<16x64xf32>
    %cst_62 = arith.constant 0.000000e+00 : f32
    %100 = vector.broadcast %cst_62 : f32 to vector<16x64xf32>
    %101 = arith.maximumf %99, %100 : vector<16x64xf32>
    %cst_63 = arith.constant dense<0.000000e+00> : vector<16x32xf32>
    %102 = tpu.matmul %101, %25, %cst_63 {dimension_numbers = #tpu.dot_dimension_numbers<[1], [0], [0], [1], [0, 0, 1, 1], [], []>} : vector<16x64xf32>, vector<64x32xf32>, vector<16x32xf32> -> vector<16x32xf32>
    %103 = vector.broadcast %37 : vector<1x32xf32> to vector<16x32xf32>
    %104 = arith.addf %102, %103 : vector<16x32xf32>
    %105 = arith.addf %96, %104 : vector<16x32xf32>
    %cst_64 = arith.constant dense<0.000000e+00> : vector<16xf32>
    %106 = vector.multi_reduction <add>, %105, %cst_64 [1] : vector<16x32xf32> to vector<16xf32>
    %107 = vector.shape_cast %106 : vector<16xf32> to vector<16x1xf32>
    %cst_65 = arith.constant 3.200000e+01 : f32
    %108 = vector.broadcast %cst_65 : f32 to vector<16x1xf32>
    %109 = arith.divf %107, %108 : vector<16x1xf32>
    %110 = vector.broadcast %109 : vector<16x1xf32> to vector<16x32xf32>
    %111 = arith.subf %105, %110 : vector<16x32xf32>
    %112 = arith.mulf %111, %111 : vector<16x32xf32>
    %cst_66 = arith.constant dense<0.000000e+00> : vector<16xf32>
    %113 = vector.multi_reduction <add>, %112, %cst_66 [1] : vector<16x32xf32> to vector<16xf32>
    %114 = vector.shape_cast %113 : vector<16xf32> to vector<16x1xf32>
    %cst_67 = arith.constant 3.200000e+01 : f32
    %115 = vector.broadcast %cst_67 : f32 to vector<16x1xf32>
    %116 = arith.divf %114, %115 : vector<16x1xf32>
    %117 = vector.broadcast %109 : vector<16x1xf32> to vector<16x32xf32>
    %118 = arith.subf %105, %117 : vector<16x32xf32>
    %cst_68 = arith.constant 9.99999974E-6 : f32
    %119 = vector.broadcast %cst_68 : f32 to vector<16x1xf32>
    %120 = arith.addf %116, %119 : vector<16x1xf32>
    %121 = math.rsqrt %120 : vector<16x1xf32>
    %122 = vector.broadcast %121 : vector<16x1xf32> to vector<16x32xf32>
    %123 = arith.mulf %118, %122 : vector<16x32xf32>
    %124 = vector.broadcast %43 : vector<1x32xf32> to vector<16x32xf32>
    %125 = arith.mulf %123, %124 : vector<16x32xf32>
    %126 = vector.broadcast %45 : vector<1x32xf32> to vector<16x32xf32>
    %127 = arith.addf %125, %126 : vector<16x32xf32>
    %c1 = arith.constant 1 : index
    %c0_69 = arith.constant 0 : index
    %c0_70 = arith.constant 0 : index
    %128 = vector.load %arg2[%c1, %c0_69, %c0_70] : memref<2x224x128xf32, #tpu.memory_space<vmem>>, vector<1x32x32xf32>
    %129 = vector.shape_cast %128 : vector<1x32x32xf32> to vector<32x32xf32>
    %c1_71 = arith.constant 1 : index
    %c32_72 = arith.constant 32 : index
    %c0_73 = arith.constant 0 : index
    %130 = vector.load %arg2[%c1_71, %c32_72, %c0_73] : memref<2x224x128xf32, #tpu.memory_space<vmem>>, vector<1x32x32xf32>
    %131 = vector.shape_cast %130 : vector<1x32x32xf32> to vector<32x32xf32>
    %c1_74 = arith.constant 1 : index
    %c64_75 = arith.constant 64 : index
    %c0_76 = arith.constant 0 : index
    %132 = vector.load %arg2[%c1_74, %c64_75, %c0_76] : memref<2x224x128xf32, #tpu.memory_space<vmem>>, vector<1x32x32xf32>
    %133 = vector.shape_cast %132 : vector<1x32x32xf32> to vector<32x32xf32>
    %c1_77 = arith.constant 1 : index
    %c96_78 = arith.constant 96 : index
    %c0_79 = arith.constant 0 : index
    %134 = vector.load %arg2[%c1_77, %c96_78, %c0_79] : memref<2x224x128xf32, #tpu.memory_space<vmem>>, vector<1x32x32xf32>
    %135 = vector.shape_cast %134 : vector<1x32x32xf32> to vector<32x32xf32>
    %c1_80 = arith.constant 1 : index
    %c128_81 = arith.constant 128 : index
    %c0_82 = arith.constant 0 : index
    %136 = vector.load %arg2[%c1_80, %c128_81, %c0_82] : memref<2x224x128xf32, #tpu.memory_space<vmem>>, vector<1x32x64xf32>
    %137 = vector.shape_cast %136 : vector<1x32x64xf32> to vector<32x64xf32>
    %c1_83 = arith.constant 1 : index
    %c160_84 = arith.constant 160 : index
    %c0_85 = arith.constant 0 : index
    %138 = vector.load %arg2[%c1_83, %c160_84, %c0_85] : memref<2x224x128xf32, #tpu.memory_space<vmem>>, vector<1x64x32xf32>
    %139 = vector.shape_cast %138 : vector<1x64x32xf32> to vector<64x32xf32>
    %c1_86 = arith.constant 1 : index
    %c0_87 = arith.constant 0 : index
    %c0_88 = arith.constant 0 : index
    %140 = vector.load %arg3[%c1_86, %c0_87, %c0_88] : memref<2x80x128xf32, #tpu.memory_space<vmem>>, vector<1x1x32xf32>
    %141 = vector.shape_cast %140 : vector<1x1x32xf32> to vector<1x32xf32>
    %c1_89 = arith.constant 1 : index
    %c8_90 = arith.constant 8 : index
    %c0_91 = arith.constant 0 : index
    %142 = vector.load %arg3[%c1_89, %c8_90, %c0_91] : memref<2x80x128xf32, #tpu.memory_space<vmem>>, vector<1x1x32xf32>
    %143 = vector.shape_cast %142 : vector<1x1x32xf32> to vector<1x32xf32>
    %c1_92 = arith.constant 1 : index
    %c16_93 = arith.constant 16 : index
    %c0_94 = arith.constant 0 : index
    %144 = vector.load %arg3[%c1_92, %c16_93, %c0_94] : memref<2x80x128xf32, #tpu.memory_space<vmem>>, vector<1x1x32xf32>
    %145 = vector.shape_cast %144 : vector<1x1x32xf32> to vector<1x32xf32>
    %c1_95 = arith.constant 1 : index
    %c24_96 = arith.constant 24 : index
    %c0_97 = arith.constant 0 : index
    %146 = vector.load %arg3[%c1_95, %c24_96, %c0_97] : memref<2x80x128xf32, #tpu.memory_space<vmem>>, vector<1x1x32xf32>
    %147 = vector.shape_cast %146 : vector<1x1x32xf32> to vector<1x32xf32>
    %c1_98 = arith.constant 1 : index
    %c32_99 = arith.constant 32 : index
    %c0_100 = arith.constant 0 : index
    %148 = vector.load %arg3[%c1_98, %c32_99, %c0_100] : memref<2x80x128xf32, #tpu.memory_space<vmem>>, vector<1x1x64xf32>
    %149 = vector.shape_cast %148 : vector<1x1x64xf32> to vector<1x64xf32>
    %c1_101 = arith.constant 1 : index
    %c40_102 = arith.constant 40 : index
    %c0_103 = arith.constant 0 : index
    %150 = vector.load %arg3[%c1_101, %c40_102, %c0_103] : memref<2x80x128xf32, #tpu.memory_space<vmem>>, vector<1x1x32xf32>
    %151 = vector.shape_cast %150 : vector<1x1x32xf32> to vector<1x32xf32>
    %c1_104 = arith.constant 1 : index
    %c48_105 = arith.constant 48 : index
    %c0_106 = arith.constant 0 : index
    %152 = vector.load %arg3[%c1_104, %c48_105, %c0_106] : memref<2x80x128xf32, #tpu.memory_space<vmem>>, vector<1x1x32xf32>
    %153 = vector.shape_cast %152 : vector<1x1x32xf32> to vector<1x32xf32>
    %c1_107 = arith.constant 1 : index
    %c56_108 = arith.constant 56 : index
    %c0_109 = arith.constant 0 : index
    %154 = vector.load %arg3[%c1_107, %c56_108, %c0_109] : memref<2x80x128xf32, #tpu.memory_space<vmem>>, vector<1x1x32xf32>
    %155 = vector.shape_cast %154 : vector<1x1x32xf32> to vector<1x32xf32>
    %c1_110 = arith.constant 1 : index
    %c64_111 = arith.constant 64 : index
    %c0_112 = arith.constant 0 : index
    %156 = vector.load %arg3[%c1_110, %c64_111, %c0_112] : memref<2x80x128xf32, #tpu.memory_space<vmem>>, vector<1x1x32xf32>
    %157 = vector.shape_cast %156 : vector<1x1x32xf32> to vector<1x32xf32>
    %c1_113 = arith.constant 1 : index
    %c72_114 = arith.constant 72 : index
    %c0_115 = arith.constant 0 : index
    %158 = vector.load %arg3[%c1_113, %c72_114, %c0_115] : memref<2x80x128xf32, #tpu.memory_space<vmem>>, vector<1x1x32xf32>
    %159 = vector.shape_cast %158 : vector<1x1x32xf32> to vector<1x32xf32>
    %cst_116 = arith.constant dense<0.000000e+00> : vector<16x32xf32>
    %160 = tpu.matmul %127, %129, %cst_116 {dimension_numbers = #tpu.dot_dimension_numbers<[1], [0], [0], [1], [0, 0, 1, 1], [], []>} : vector<16x32xf32>, vector<32x32xf32>, vector<16x32xf32> -> vector<16x32xf32>
    %161 = vector.broadcast %141 : vector<1x32xf32> to vector<16x32xf32>
    %162 = arith.addf %160, %161 : vector<16x32xf32>
    %cst_117 = arith.constant dense<0.000000e+00> : vector<16x32xf32>
    %163 = tpu.matmul %127, %131, %cst_117 {dimension_numbers = #tpu.dot_dimension_numbers<[1], [0], [0], [1], [0, 0, 1, 1], [], []>} : vector<16x32xf32>, vector<32x32xf32>, vector<16x32xf32> -> vector<16x32xf32>
    %164 = vector.broadcast %143 : vector<1x32xf32> to vector<16x32xf32>
    %165 = arith.addf %163, %164 : vector<16x32xf32>
    %cst_118 = arith.constant dense<0.000000e+00> : vector<16x32xf32>
    %166 = tpu.matmul %127, %133, %cst_118 {dimension_numbers = #tpu.dot_dimension_numbers<[1], [0], [0], [1], [0, 0, 1, 1], [], []>} : vector<16x32xf32>, vector<32x32xf32>, vector<16x32xf32> -> vector<16x32xf32>
    %167 = vector.broadcast %145 : vector<1x32xf32> to vector<16x32xf32>
    %168 = arith.addf %166, %167 : vector<16x32xf32>
    %cst_119 = arith.constant dense<0.000000e+00> : vector<64x32xf32>
    %169 = tpu.matmul %2, %162, %cst_119 {dimension_numbers = #tpu.dot_dimension_numbers<[1], [0], [0], [1], [0, 0, 1, 1], [], []>} : vector<64x16xf32>, vector<16x32xf32>, vector<64x32xf32> -> vector<64x32xf32>
    %170 = arith.mulf %169, %4 : vector<64x32xf32>
    %cst_120 = arith.constant dense<0.000000e+00> : vector<64x16xf32>
    %171 = tpu.matmul %170, %165, %cst_120 {dimension_numbers = #tpu.dot_dimension_numbers<[1], [1], [0], [0], [0, 0, 1, 0], [], []>} : vector<64x32xf32>, vector<16x32xf32>, vector<64x16xf32> -> vector<64x16xf32>
    %172 = arith.addf %171, %5 : vector<64x16xf32>
    %cst_121 = arith.constant dense<0xFF800000> : vector<64xf32>
    %173 = vector.multi_reduction <maximumf>, %172, %cst_121 [1] : vector<64x16xf32> to vector<64xf32>
    %174 = vector.shape_cast %173 : vector<64xf32> to vector<64x1xf32>
    %175 = vector.broadcast %174 : vector<64x1xf32> to vector<64x16xf32>
    %176 = arith.subf %172, %175 : vector<64x16xf32>
    %177 = math.exp %176 : vector<64x16xf32>
    %cst_122 = arith.constant dense<0.000000e+00> : vector<64xf32>
    %178 = vector.multi_reduction <add>, %177, %cst_122 [1] : vector<64x16xf32> to vector<64xf32>
    %179 = vector.shape_cast %178 : vector<64xf32> to vector<64x1xf32>
    %180 = vector.broadcast %179 : vector<64x1xf32> to vector<64x16xf32>
    %181 = arith.divf %177, %180 : vector<64x16xf32>
    %cst_123 = arith.constant dense<0.000000e+00> : vector<64x32xf32>
    %182 = tpu.matmul %181, %168, %cst_123 {dimension_numbers = #tpu.dot_dimension_numbers<[1], [0], [0], [1], [0, 0, 1, 1], [], []>} : vector<64x16xf32>, vector<16x32xf32>, vector<64x32xf32> -> vector<64x32xf32>
    %183 = arith.mulf %182, %4 : vector<64x32xf32>
    %cst_124 = arith.constant dense<0.000000e+00> : vector<16x32xf32>
    %184 = tpu.matmul %3, %183, %cst_124 {dimension_numbers = #tpu.dot_dimension_numbers<[1], [0], [0], [1], [0, 0, 1, 1], [], []>} : vector<16x64xf32>, vector<64x32xf32>, vector<16x32xf32> -> vector<16x32xf32>
    %cst_125 = arith.constant dense<0.000000e+00> : vector<16x32xf32>
    %185 = tpu.matmul %184, %135, %cst_125 {dimension_numbers = #tpu.dot_dimension_numbers<[1], [0], [0], [1], [0, 0, 1, 1], [], []>} : vector<16x32xf32>, vector<32x32xf32>, vector<16x32xf32> -> vector<16x32xf32>
    %186 = vector.broadcast %147 : vector<1x32xf32> to vector<16x32xf32>
    %187 = arith.addf %185, %186 : vector<16x32xf32>
    %188 = arith.addf %127, %187 : vector<16x32xf32>
    %cst_126 = arith.constant dense<0.000000e+00> : vector<16xf32>
    %189 = vector.multi_reduction <add>, %188, %cst_126 [1] : vector<16x32xf32> to vector<16xf32>
    %190 = vector.shape_cast %189 : vector<16xf32> to vector<16x1xf32>
    %cst_127 = arith.constant 3.200000e+01 : f32
    %191 = vector.broadcast %cst_127 : f32 to vector<16x1xf32>
    %192 = arith.divf %190, %191 : vector<16x1xf32>
    %193 = vector.broadcast %192 : vector<16x1xf32> to vector<16x32xf32>
    %194 = arith.subf %188, %193 : vector<16x32xf32>
    %195 = arith.mulf %194, %194 : vector<16x32xf32>
    %cst_128 = arith.constant dense<0.000000e+00> : vector<16xf32>
    %196 = vector.multi_reduction <add>, %195, %cst_128 [1] : vector<16x32xf32> to vector<16xf32>
    %197 = vector.shape_cast %196 : vector<16xf32> to vector<16x1xf32>
    %cst_129 = arith.constant 3.200000e+01 : f32
    %198 = vector.broadcast %cst_129 : f32 to vector<16x1xf32>
    %199 = arith.divf %197, %198 : vector<16x1xf32>
    %200 = vector.broadcast %192 : vector<16x1xf32> to vector<16x32xf32>
    %201 = arith.subf %188, %200 : vector<16x32xf32>
    %cst_130 = arith.constant 9.99999974E-6 : f32
    %202 = vector.broadcast %cst_130 : f32 to vector<16x1xf32>
    %203 = arith.addf %199, %202 : vector<16x1xf32>
    %204 = math.rsqrt %203 : vector<16x1xf32>
    %205 = vector.broadcast %204 : vector<16x1xf32> to vector<16x32xf32>
    %206 = arith.mulf %201, %205 : vector<16x32xf32>
    %207 = vector.broadcast %153 : vector<1x32xf32> to vector<16x32xf32>
    %208 = arith.mulf %206, %207 : vector<16x32xf32>
    %209 = vector.broadcast %155 : vector<1x32xf32> to vector<16x32xf32>
    %210 = arith.addf %208, %209 : vector<16x32xf32>
    %cst_131 = arith.constant dense<0.000000e+00> : vector<16x64xf32>
    %211 = tpu.matmul %210, %137, %cst_131 {dimension_numbers = #tpu.dot_dimension_numbers<[1], [0], [0], [1], [0, 0, 1, 1], [], []>} : vector<16x32xf32>, vector<32x64xf32>, vector<16x64xf32> -> vector<16x64xf32>
    %212 = vector.broadcast %149 : vector<1x64xf32> to vector<16x64xf32>
    %213 = arith.addf %211, %212 : vector<16x64xf32>
    %cst_132 = arith.constant 0.000000e+00 : f32
    %214 = vector.broadcast %cst_132 : f32 to vector<16x64xf32>
    %215 = arith.maximumf %213, %214 : vector<16x64xf32>
    %cst_133 = arith.constant dense<0.000000e+00> : vector<16x32xf32>
    %216 = tpu.matmul %215, %139, %cst_133 {dimension_numbers = #tpu.dot_dimension_numbers<[1], [0], [0], [1], [0, 0, 1, 1], [], []>} : vector<16x64xf32>, vector<64x32xf32>, vector<16x32xf32> -> vector<16x32xf32>
    %217 = vector.broadcast %151 : vector<1x32xf32> to vector<16x32xf32>
    %218 = arith.addf %216, %217 : vector<16x32xf32>
    %219 = arith.addf %210, %218 : vector<16x32xf32>
    %cst_134 = arith.constant dense<0.000000e+00> : vector<16xf32>
    %220 = vector.multi_reduction <add>, %219, %cst_134 [1] : vector<16x32xf32> to vector<16xf32>
    %221 = vector.shape_cast %220 : vector<16xf32> to vector<16x1xf32>
    %cst_135 = arith.constant 3.200000e+01 : f32
    %222 = vector.broadcast %cst_135 : f32 to vector<16x1xf32>
    %223 = arith.divf %221, %222 : vector<16x1xf32>
    %224 = vector.broadcast %223 : vector<16x1xf32> to vector<16x32xf32>
    %225 = arith.subf %219, %224 : vector<16x32xf32>
    %226 = arith.mulf %225, %225 : vector<16x32xf32>
    %cst_136 = arith.constant dense<0.000000e+00> : vector<16xf32>
    %227 = vector.multi_reduction <add>, %226, %cst_136 [1] : vector<16x32xf32> to vector<16xf32>
    %228 = vector.shape_cast %227 : vector<16xf32> to vector<16x1xf32>
    %cst_137 = arith.constant 3.200000e+01 : f32
    %229 = vector.broadcast %cst_137 : f32 to vector<16x1xf32>
    %230 = arith.divf %228, %229 : vector<16x1xf32>
    %231 = vector.broadcast %223 : vector<16x1xf32> to vector<16x32xf32>
    %232 = arith.subf %219, %231 : vector<16x32xf32>
    %cst_138 = arith.constant 9.99999974E-6 : f32
    %233 = vector.broadcast %cst_138 : f32 to vector<16x1xf32>
    %234 = arith.addf %230, %233 : vector<16x1xf32>
    %235 = math.rsqrt %234 : vector<16x1xf32>
    %236 = vector.broadcast %235 : vector<16x1xf32> to vector<16x32xf32>
    %237 = arith.mulf %232, %236 : vector<16x32xf32>
    %238 = vector.broadcast %157 : vector<1x32xf32> to vector<16x32xf32>
    %239 = arith.mulf %237, %238 : vector<16x32xf32>
    %240 = vector.broadcast %159 : vector<1x32xf32> to vector<16x32xf32>
    %241 = arith.addf %239, %240 : vector<16x32xf32>
    %c280 = arith.constant 280 : index
    %c0_139 = arith.constant 0 : index
    %242 = vector.load %arg1[%c280, %c0_139] : memref<328x128xf32, #tpu.memory_space<vmem>>, vector<8x16xf32>
    %c288 = arith.constant 288 : index
    %c0_140 = arith.constant 0 : index
    %243 = vector.load %arg1[%c288, %c0_140] : memref<328x128xf32, #tpu.memory_space<vmem>>, vector<32x128xf32>
    %c320 = arith.constant 320 : index
    %c0_141 = arith.constant 0 : index
    %244 = vector.load %arg1[%c320, %c0_141] : memref<328x128xf32, #tpu.memory_space<vmem>>, vector<1x128xf32>
    %cst_142 = arith.constant dense<0.000000e+00> : vector<8x32xf32>
    %245 = tpu.matmul %242, %241, %cst_142 {dimension_numbers = #tpu.dot_dimension_numbers<[1], [0], [0], [1], [0, 0, 1, 1], [], []>} : vector<8x16xf32>, vector<16x32xf32>, vector<8x32xf32> -> vector<8x32xf32>
    %cst_143 = arith.constant dense<0.000000e+00> : vector<8x128xf32>
    %246 = tpu.matmul %245, %243, %cst_143 {dimension_numbers = #tpu.dot_dimension_numbers<[1], [0], [0], [1], [0, 0, 1, 1], [], []>} : vector<8x32xf32>, vector<32x128xf32>, vector<8x128xf32> -> vector<8x128xf32>
    %247 = vector.broadcast %244 : vector<1x128xf32> to vector<8x128xf32>
    %248 = arith.addf %246, %247 : vector<8x128xf32>
    %c0_144 = arith.constant 0 : index
    %c0_145 = arith.constant 0 : index
    %249 = vector.load %arg4[%c0_144, %c0_145] : memref<8x128xf32, #tpu.memory_space<vmem>>, vector<8x128xf32>
    tpu.vector_store %arg4[%c0_144, %c0_145], %248 {strides = array<i32>} : memref<8x128xf32, #tpu.memory_space<vmem>>, vector<8x128xf32>,
    return
  }
}

</mosaic_0001>

<llo_original>
// kernel: gpt_classifier_forward.1
$region0: #{gpt_classifier_forward.1}
  #allocation0 [shape = 'u32[]', space=smem, size = 0x4, offset = 0x4, fixed_abs, tag = 'smem constant byte address 0x4 - core index']
  #allocation1 [shape = 'u32[144,128]{1,0:T(1,128)}', space=vmem, size = 0x12000, scoped, tag = 'internal scratch']
  %s0 = inlined_call_operand.vmem [shape: s32[16,1], index: 0, kind: input, shape index: {}]
  %s1 = inlined_call_operand.hbm [shape: f32[328,128], index: 1, kind: input, shape index: {}]
  %s2 = inlined_call_operand.hbm [shape: f32[2,224,128], index: 2, kind: input, shape index: {}]
  %s3 = inlined_call_operand.hbm [shape: f32[2,80,128], index: 3, kind: input, shape index: {}]
  %s4 = inlined_call_operand.vmem [shape: f32[8,128], index: 4, kind: output, shape index: {}]
  %s5 = sld [smem:[#allocation0]]
  $region38: #{gpt_classifier_forward.1} parent=0
    _
  %s7 = ssub.s32 1, %s5
  %s8 = scalar_select 0, %s7, %s5
  $region1: #{gpt_classifier_forward.1} parent=0
    #allocation2 [shape = 'u8[167936]{0}', space=vmem, size = 0x29000, scoped, tag = 'input window, operand 1, single buffered']
    #allocation3 [shape = 's32[1]{0}', space=sflag, size = 0x4, scoped, tag = 'scoped memory for gpt_classifier_forward.1']
    #allocation4 [shape = 'u8[229376]{0}', space=vmem, size = 0x38000, scoped, tag = 'input window, operand 2, single buffered']
    #allocation5 [shape = 's32[1]{0}', space=sflag, size = 0x4, scoped, tag = 'scoped memory for gpt_classifier_forward.1']
    #allocation6 [shape = 'u8[81920]{0}', space=vmem, size = 0x14000, scoped, tag = 'input window, operand 3, single buffered']
    %9 = vsyncpa [#allocation3], 0
    %10 = vsyncpa [#allocation5], 0
    // Predicated region
    $region2: #{gpt_classifier_forward.1} parent=1 // pred_check
      _
    $region3: #{gpt_classifier_forward.1} parent=1 // pred_check_branch
      %12 = sbr.rel (0) target = $region5
    $region4: #{gpt_classifier_forward.1} parent=1 // pred_region
      _
    $region5: #{gpt_classifier_forward.1} parent=1 // pred_fallthru
      _
    // Predicated region
    $region6: #{gpt_classifier_forward.1} parent=1 // pred_check
      _
    $region7: #{gpt_classifier_forward.1} parent=1 // pred_check_branch
      %14 = sbr.rel (0) target = $region9
    $region8: #{gpt_classifier_forward.1} parent=1 // pred_region
      %s16 = ssub.s32 5248, 5248
      %17 = vsyncadd [#allocation3], %s16
      %s18 = sshll.u32 [#allocation2], 4
      %s19 = int_to_ptr.vmem [resolvable:$true] %s18
      %24 = dma.hbm_to_vmem [thread:$0]  %s1, 5248, %s19, [#allocation3], 128, 128, 8
    $region9: #{gpt_classifier_forward.1} parent=1 // pred_fallthru
      _
    // Predicated region
    $region10: #{gpt_classifier_forward.1} parent=1 // pred_check
      _
    $region11: #{gpt_classifier_forward.1} parent=1 // pred_check_branch
      %26 = sbr.rel (0) target = $region13
    $region12: #{gpt_classifier_forward.1} parent=1 // pred_region
      %s28 = ssub.s32 7168, 7168
      %29 = vsyncadd [#allocation5], %s28
      %s30 = sshll.u32 [#allocation4], 4
      %s31 = int_to_ptr.vmem [resolvable:$true] %s30
      %36 = dma.hbm_to_vmem [thread:$0]  %s2, 7168, %s31, [#allocation5], 128, 128, 8
    $region13: #{gpt_classifier_forward.1} parent=1 // pred_fallthru
      _
    // Predicated region
    $region14: #{gpt_classifier_forward.1} parent=1 // pred_check
      _
    $region15: #{gpt_classifier_forward.1} parent=1 // pred_check_branch
      %38 = sbr.rel (0) target = $region17
    $region16: #{gpt_classifier_forward.1} parent=1 // pred_region
      %s40 = ssub.s32 2560, 2560
      %41 = vsyncadd [#allocation5], %s40
      %s42 = sshll.u32 [#allocation6], 4
      %s43 = int_to_ptr.vmem [resolvable:$true] %s42
      %48 = dma.hbm_to_vmem [thread:$0]  %s3, 2560, %s43, [#allocation5], 128, 128, 8
    $region17: #{gpt_classifier_forward.1} parent=1 // pred_fallthru
      _
    // Predicated region
    $region18: #{gpt_classifier_forward.1} parent=1 // pred_check
      _
    $region19: #{gpt_classifier_forward.1} parent=1 // pred_check_branch
      %50 = sbr.rel (0) target = $region21
    $region20: #{gpt_classifier_forward.1} parent=1 // pred_region
      %51 = dma.done [#allocation3], 5248
    $region21: #{gpt_classifier_forward.1} parent=1 // pred_fallthru
      _
    // Predicated region
    $region22: #{gpt_classifier_forward.1} parent=1 // pred_check
      _
    $region23: #{gpt_classifier_forward.1} parent=1 // pred_check_branch
      %53 = sbr.rel (0) target = $region25
    $region24: #{gpt_classifier_forward.1} parent=1 // pred_region
      %54 = dma.done [#allocation5], 7168
    $region25: #{gpt_classifier_forward.1} parent=1 // pred_fallthru
      _
    // Predicated region
    $region26: #{gpt_classifier_forward.1} parent=1 // pred_check
      _
    $region27: #{gpt_classifier_forward.1} parent=1 // pred_check_branch
      %56 = sbr.rel (0) target = $region29
    $region28: #{gpt_classifier_forward.1} parent=1 // pred_region
      %57 = dma.done [#allocation5], 2560
    $region29: #{gpt_classifier_forward.1} parent=1 // pred_fallthru
      _
    %v58 = vld [vmem:[#allocation2] sm:$0xff]
    %v59 = vld [vmem:[#allocation2 + $0x8] sm:$0xff]
    %v60 = vld [vmem:[#allocation2 + $0x10] sm:$0xff]
    %v61 = vld [vmem:[#allocation2 + $0x18] sm:$0xff]
    %v62 = vld [vmem:[#allocation2 + $0x20] sm:$0xff]
    %v63 = vld [vmem:[#allocation2 + $0x28] sm:$0xff]
    %v64 = vld [vmem:[#allocation2 + $0x30] sm:$0xff]
    %v65 = vld [vmem:[#allocation2 + $0x38] sm:$0xff]
    %v66 = vld [vmem:[#allocation2 + $0x40] sm:$0xff]
    %v67 = vld [vmem:[#allocation2 + $0x48] sm:$0xff]
    %v68 = vld [vmem:[#allocation2 + $0x50] sm:$0xff]
    %v69 = vld [vmem:[#allocation2 + $0x58] sm:$0xff]
    %v70 = vld [vmem:[#allocation2 + $0x60] sm:$0xff]
    %v71 = vld [vmem:[#allocation2 + $0x68] sm:$0xff]
    %v72 = vld [vmem:[#allocation2 + $0x70] sm:$0xff]
    %v73 = vld [vmem:[#allocation2 + $0x78] sm:$0xff]
    %v74 = vld [vmem:[#allocation2 + $0x80] sm:$0xff]
    %v75 = vld [vmem:[#allocation2 + $0x88] sm:$0xff]
    %v76 = vld [vmem:[#allocation2 + $0x90] sm:$0xff]
    %v77 = vld [vmem:[#allocation2 + $0x98] sm:$0xff]
    %v78 = vld [vmem:[#allocation2 + $0xa0] sm:$0xff]
    %v79 = vld [vmem:[#allocation2 + $0xa8] sm:$0xff]
    %v80 = vld [vmem:[#allocation2 + $0xb0] sm:$0xff]
    %v81 = vld [vmem:[#allocation2 + $0xb8] sm:$0xff]
    %v82 = vld [vmem:[#allocation2 + $0xc0] sm:$0xff]
    %v83 = vld [vmem:[#allocation2 + $0xc8] sm:$0xff]
    %v84 = vld [vmem:[#allocation2 + $0xd0] sm:$0xff]
    %v85 = vld [vmem:[#allocation2 + $0xd8] sm:$0xff]
    %v86 = vld [vmem:[#allocation2 + $0xe0] sm:$0xff]
    %v87 = vld [vmem:[#allocation2 + $0xe8] sm:$0xff]
    %v88 = vld [vmem:[#allocation2 + $0xf0] sm:$0xff]
    %v89 = vld [vmem:[#allocation2 + $0xf8] sm:$0xff]
    %v90 = vld [vmem:[#allocation2 + $0x100] sm:$0xff]
    %v91 = vld [vmem:[#allocation2 + $0x108] sm:$0xff]
    %v92 = vld [vmem:[#allocation2 + $0x110] sm:$0xff]
    %v93 = vld [vmem:[%s0] sm:$0xff]
    %v94 = vld [vmem:[%s0 + $0x8] sm:$0xff]
    %v95 = vlaneseq
    %v96 = vand.u32 %v95, 127
    %97 = vset.pattern.permute.xlu0 0
    %98 = vperm.xlu0 %97, %v93
    %v99 = vpop.permute.xlu0 %98
    %100 = vset.pattern.permute.xlu0 0
    %101 = vperm.xlu0 %100, %v94
    %v102 = vpop.permute.xlu0 %101
    %vm103 = vcmp.eq.s32.totalorder %v96, %v99
    %vm104 = vcmp.eq.s32.totalorder %v96, %v102
    %v105 = vsel %vm103, 1, 0
    %v106 = vsel %vm104, 1, 0
    %v107 = vcvt.s32.f32 %v105
    %v108 = vcvt.s32.f32 %v106
    %vm109 = vcmask 457728
    %v111 = vsel %vm109, %v107, 0
    %v114 = vsel %vm109, %v108, 0
    %116 = vmatprep.subr.mxu0 0.0
    %117 = vmatpush1.msra.mxu0 %v60
    %118 = vmatprep.subr.mxu0 0.0
    %119 = vmatpush1.msra.mxu0 %v61
    %120 = vmatprep.subr.mxu0 0.0
    %121 = vmatpush1.msra.mxu0 %v62
    %122 = vmatprep.subr.mxu0 0.0
    %123 = vmatpush1.msra.mxu0 %v63
    %124 = vmatprep.subr.mxu0 0.0
    %125 = vmatpush1.msra.mxu0 %v64
    %126 = vmatprep.subr.mxu0 0.0
    %127 = vmatpush1.msra.mxu0 %v65
    %128 = vmatprep.subr.mxu0 0.0
    %129 = vmatpush1.msra.mxu0 %v66
    %130 = vmatprep.subr.mxu0 0.0
    %131 = vmatpush1.msra.mxu0 0.0
    %132 = vmatprep.subr.mxu0 0.0
    %133 = vmatpush1.msra.mxu0 0.0
    %134 = vmatprep.subr.mxu0 0.0
    %135 = vmatpush1.msra.mxu0 0.0
    %136 = vmatprep.subr.mxu0 0.0
    %137 = vmatpush1.msra.mxu0 0.0
    %138 = vmatprep.subr.mxu0 0.0
    %139 = vmatpush1.msra.mxu0 0.0
    %140 = vmatprep.subr.mxu0 0.0
    %141 = vmatpush1.msra.mxu0 0.0
    %142 = vmatprep.subr.mxu0 0.0
    %143 = vmatpush1.msra.mxu0 0.0
    %144 = vmatprep.subr.mxu0 0.0
    %145 = vmatpush1.msra.mxu0 0.0
    %146 = vmatprep.subr.mxu0 0.0
    %147 = vmatpush1.msra.mxu0 0.0
    %148 = vmatprep.subr.mxu0 0.0
    %149 = vmatpush1.msra.mxu0 0.0
    %150 = vmatprep.subr.mxu0 0.0
    %151 = vmatpush1.msra.mxu0 0.0
    %152 = vmatprep.subr.mxu0 0.0
    %153 = vmatpush1.msra.mxu0 0.0
    %154 = vmatprep.subr.mxu0 0.0
    %155 = vmatpush1.msra.mxu0 0.0
    %156 = vmatprep.subr.mxu0 0.0
    %157 = vmatpush1.msra.mxu0 0.0
    %158 = vmatprep.subr.mxu0 0.0
    %159 = vmatpush1.msra.mxu0 0.0
    %160 = vmatprep.subr.mxu0 0.0
    %161 = vmatpush1.msra.mxu0 0.0
    %162 = vmatprep.subr.mxu0 0.0
    %163 = vmatpush1.msra.mxu0 0.0
    %164 = vmatprep.subr.mxu0 0.0
    %165 = vmatpush1.msra.mxu0 0.0
    %166 = vmatprep.subr.mxu0 0.0
    %167 = vmatpush1.msra.mxu0 0.0
    %168 = vmatprep.subr.mxu0 0.0
    %169 = vmatpush1.msra.mxu0 0.0
    %170 = vmatprep.subr.mxu0 0.0
    %171 = vmatpush1.msra.mxu0 0.0
    %172 = vmatprep.subr.mxu0 0.0
    %173 = vmatpush1.msra.mxu0 0.0
    %174 = vmatprep.subr.mxu0 0.0
    %175 = vmatpush1.msra.mxu0 0.0
    %176 = vmatprep.subr.mxu0 0.0
    %177 = vmatpush1.msra.mxu0 0.0
    %178 = vmatprep.subr.mxu0 0.0
    %179 = vmatpush1.msra.mxu0 0.0
    %180 = vmatprep.mubr.f32.mxu0 0.0
    %181 = vmatmul.mubr.f32.gmra.mrb[0].mxu0 %v111
    %v182 = vpop.f32.mrb[0].mxu0
    %v183 = vadd.f32 %v58, %v182
    %v184 = vpop.f32.mrb[0].mxu0
    %185 = vmatprep.mubr.f32.mxu0 0.0
    %186 = vmatmul.mubr.f32.gmra.mrb[0].mxu0 %v114
    %v187 = vpop.f32.mrb[0].mxu0
    %v188 = vadd.f32 %v59, %v187
    %v189 = vpop.f32.mrb[0].mxu0
    %190 = vdwg.mxu0
    %v191 = vld [vmem:[#allocation4] sm:$0xff]
    %v192 = vld [vmem:[#allocation4 + $0x8] sm:$0xff]
    %v193 = vld [vmem:[#allocation4 + $0x10] sm:$0xff]
    %v194 = vld [vmem:[#allocation4 + $0x18] sm:$0xff]
    %v195 = vld [vmem:[#allocation4 + $0x20] sm:$0xff]
    %v196 = vld [vmem:[#allocation4 + $0x28] sm:$0xff]
    %v197 = vld [vmem:[#allocation4 + $0x30] sm:$0xff]
    %v198 = vld [vmem:[#allocation4 + $0x38] sm:$0xff]
    %v199 = vld [vmem:[#allocation4 + $0x40] sm:$0xff]
    %v200 = vld [vmem:[#allocation4 + $0x48] sm:$0xff]
    %v201 = vld [vmem:[#allocation4 + $0x50] sm:$0xff]
    %v202 = vld [vmem:[#allocation4 + $0x58] sm:$0xff]
    %v203 = vld [vmem:[#allocation4 + $0x60] sm:$0xff]
    %v204 = vld [vmem:[#allocation4 + $0x68] sm:$0xff]
    %v205 = vld [vmem:[#allocation4 + $0x70] sm:$0xff]
    %v206 = vld [vmem:[#allocation4 + $0x78] sm:$0xff]
    %v207 = vld [vmem:[#allocation4 + $0x80] sm:$0xff]
    %v208 = vld [vmem:[#allocation4 + $0x88] sm:$0xff]
    %v209 = vld [vmem:[#allocation4 + $0x90] sm:$0xff]
    %v210 = vld [vmem:[#allocation4 + $0x98] sm:$0xff]
    %v211 = vld [vmem:[#allocation4 + $0xa0] sm:$0xff]
    %v212 = vld [vmem:[#allocation4 + $0xa8] sm:$0xff]
    %v213 = vld [vmem:[#allocation4 + $0xb0] sm:$0xff]
    %v214 = vld [vmem:[#allocation4 + $0xb8] sm:$0xff]
    %v215 = vld [vmem:[#allocation4 + $0xc0] sm:$0xff]
    %v216 = vld [vmem:[#allocation4 + $0xc8] sm:$0xff]
    %v217 = vld [vmem:[#allocation4 + $0xd0] sm:$0xff]
    %v218 = vld [vmem:[#allocation4 + $0xd8] sm:$0xff]
    %v219 = vld [vmem:[#allocation6] sm:$0x1]
    %v220 = vld [vmem:[#allocation6 + $0x8] sm:$0x1]
    %v221 = vld [vmem:[#allocation6 + $0x10] sm:$0x1]
    %v222 = vld [vmem:[#allocation6 + $0x18] sm:$0x1]
    %v223 = vld [vmem:[#allocation6 + $0x20] sm:$0x1]
    %v224 = vld [vmem:[#allocation6 + $0x28] sm:$0x1]
    %v225 = vld [vmem:[#allocation6 + $0x30] sm:$0x1]
    %v226 = vld [vmem:[#allocation6 + $0x38] sm:$0x1]
    %v227 = vld [vmem:[#allocation6 + $0x40] sm:$0x1]
    %v228 = vld [vmem:[#allocation6 + $0x48] sm:$0x1]
    %v229 = vlaneseq
    %v230 = vshrl.u32 %v229, 7
    %v231 = vsub.s32 0, %v230
    %v232 = vrot.slane %v219, %v231
    %vm233 = vcmask 261120
    %v235 = vsel %vm233, %v183, 0
    %v238 = vsel %vm233, %v188, 0
    %240 = vmatprep.subr.mxu0 0.0
    %241 = vmatpush1.msra.mxu0 %v191
    %242 = vmatprep.subr.mxu0 0.0
    %243 = vmatpush1.msra.mxu0 %v192
    %244 = vmatprep.subr.mxu0 0.0
    %245 = vmatpush1.msra.mxu0 %v193
    %246 = vmatprep.subr.mxu0 0.0
    %247 = vmatpush1.msra.mxu0 %v194
    %248 = vmatprep.subr.mxu0 0.0
    %249 = vmatpush1.msra.mxu0 0.0
    %250 = vmatprep.subr.mxu0 0.0
    %251 = vmatpush1.msra.mxu0 0.0
    %252 = vmatprep.subr.mxu0 0.0
    %253 = vmatpush1.msra.mxu0 0.0
    %254 = vmatprep.subr.mxu0 0.0
    %255 = vmatpush1.msra.mxu0 0.0
    %256 = vmatprep.subr.mxu0 0.0
    %257 = vmatpush1.msra.mxu0 0.0
    %258 = vmatprep.subr.mxu0 0.0
    %259 = vmatpush1.msra.mxu0 0.0
    %260 = vmatprep.subr.mxu0 0.0
    %261 = vmatpush1.msra.mxu0 0.0
    %262 = vmatprep.subr.mxu0 0.0
    %263 = vmatpush1.msra.mxu0 0.0
    %264 = vmatprep.subr.mxu0 0.0
    %265 = vmatpush1.msra.mxu0 0.0
    %266 = vmatprep.subr.mxu0 0.0
    %267 = vmatpush1.msra.mxu0 0.0
    %268 = vmatprep.subr.mxu0 0.0
    %269 = vmatpush1.msra.mxu0 0.0
    %270 = vmatprep.subr.mxu0 0.0
    %271 = vmatpush1.msra.mxu0 0.0
    %272 = vmatprep.subr.mxu0 0.0
    %273 = vmatpush1.msra.mxu0 0.0
    %274 = vmatprep.subr.mxu0 0.0
    %275 = vmatpush1.msra.mxu0 0.0
    %276 = vmatprep.subr.mxu0 0.0
    %277 = vmatpush1.msra.mxu0 0.0
    %278 = vmatprep.subr.mxu0 0.0
    %279 = vmatpush1.msra.mxu0 0.0
    %280 = vmatprep.subr.mxu0 0.0
    %281 = vmatpush1.msra.mxu0 0.0
    %282 = vmatprep.subr.mxu0 0.0
    %283 = vmatpush1.msra.mxu0 0.0
    %284 = vmatprep.subr.mxu0 0.0
    %285 = vmatpush1.msra.mxu0 0.0
    %286 = vmatprep.subr.mxu0 0.0
    %287 = vmatpush1.msra.mxu0 0.0
    %288 = vmatprep.subr.mxu0 0.0
    %289 = vmatpush1.msra.mxu0 0.0
    %290 = vmatprep.subr.mxu0 0.0
    %291 = vmatpush1.msra.mxu0 0.0
    %292 = vmatprep.subr.mxu0 0.0
    %293 = vmatpush1.msra.mxu0 0.0
    %294 = vmatprep.subr.mxu0 0.0
    %295 = vmatpush1.msra.mxu0 0.0
    %296 = vmatprep.subr.mxu0 0.0
    %297 = vmatpush1.msra.mxu0 0.0
    %298 = vmatprep.subr.mxu0 0.0
    %299 = vmatpush1.msra.mxu0 0.0
    %300 = vmatprep.subr.mxu0 0.0
    %301 = vmatpush1.msra.mxu0 0.0
    %302 = vmatprep.subr.mxu0 0.0
    %303 = vmatpush1.msra.mxu0 0.0
    %304 = vmatprep.mubr.f32.mxu0 0.0
    %305 = vmatmul.mubr.f32.gmra.mrb[0].mxu0 %v235
    %v306 = vpop.f32.mrb[0].mxu0
    %v307 = vadd.f32 %v232, %v306
    %v308 = vpop.f32.mrb[0].mxu0
    %309 = vmatprep.mubr.f32.mxu0 0.0
    %310 = vmatmul.mubr.f32.gmra.mrb[0].mxu0 %v238
    %v311 = vpop.f32.mrb[0].mxu0
    %v312 = vadd.f32 %v232, %v311
    %v313 = vpop.f32.mrb[0].mxu0
    %314 = vdwg.mxu0
    %v315 = vlaneseq
    %v316 = vshrl.u32 %v315, 7
    %v317 = vsub.s32 0, %v316
    %v318 = vrot.slane %v220, %v317
    %319 = vmatprep.subr.mxu0 0.0
    %320 = vmatpush1.msra.mxu0 %v195
    %321 = vmatprep.subr.mxu0 0.0
    %322 = vmatpush1.msra.mxu0 %v196
    %323 = vmatprep.subr.mxu0 0.0
    %324 = vmatpush1.msra.mxu0 %v197
    %325 = vmatprep.subr.mxu0 0.0
    %326 = vmatpush1.msra.mxu0 %v198
    %327 = vmatprep.subr.mxu0 0.0
    %328 = vmatpush1.msra.mxu0 0.0
    %329 = vmatprep.subr.mxu0 0.0
    %330 = vmatpush1.msra.mxu0 0.0
    %331 = vmatprep.subr.mxu0 0.0
    %332 = vmatpush1.msra.mxu0 0.0
    %333 = vmatprep.subr.mxu0 0.0
    %334 = vmatpush1.msra.mxu0 0.0
    %335 = vmatprep.subr.mxu0 0.0
    %336 = vmatpush1.msra.mxu0 0.0
    %337 = vmatprep.subr.mxu0 0.0
    %338 = vmatpush1.msra.mxu0 0.0
    %339 = vmatprep.subr.mxu0 0.0
    %340 = vmatpush1.msra.mxu0 0.0
    %341 = vmatprep.subr.mxu0 0.0
    %342 = vmatpush1.msra.mxu0 0.0
    %343 = vmatprep.subr.mxu0 0.0
    %344 = vmatpush1.msra.mxu0 0.0
    %345 = vmatprep.subr.mxu0 0.0
    %346 = vmatpush1.msra.mxu0 0.0
    %347 = vmatprep.subr.mxu0 0.0
    %348 = vmatpush1.msra.mxu0 0.0
    %349 = vmatprep.subr.mxu0 0.0
    %350 = vmatpush1.msra.mxu0 0.0
    %351 = vmatprep.subr.mxu0 0.0
    %352 = vmatpush1.msra.mxu0 0.0
    %353 = vmatprep.subr.mxu0 0.0
    %354 = vmatpush1.msra.mxu0 0.0
    %355 = vmatprep.subr.mxu0 0.0
    %356 = vmatpush1.msra.mxu0 0.0
    %357 = vmatprep.subr.mxu0 0.0
    %358 = vmatpush1.msra.mxu0 0.0
    %359 = vmatprep.subr.mxu0 0.0
    %360 = vmatpush1.msra.mxu0 0.0
    %361 = vmatprep.subr.mxu0 0.0
    %362 = vmatpush1.msra.mxu0 0.0
    %363 = vmatprep.subr.mxu0 0.0
    %364 = vmatpush1.msra.mxu0 0.0
    %365 = vmatprep.subr.mxu0 0.0
    %366 = vmatpush1.msra.mxu0 0.0
    %367 = vmatprep.subr.mxu0 0.0
    %368 = vmatpush1.msra.mxu0 0.0
    %369 = vmatprep.subr.mxu0 0.0
    %370 = vmatpush1.msra.mxu0 0.0
    %371 = vmatprep.subr.mxu0 0.0
    %372 = vmatpush1.msra.mxu0 0.0
    %373 = vmatprep.subr.mxu0 0.0
    %374 = vmatpush1.msra.mxu0 0.0
    %375 = vmatprep.subr.mxu0 0.0
    %376 = vmatpush1.msra.mxu0 0.0
    %377 = vmatprep.subr.mxu0 0.0
    %378 = vmatpush1.msra.mxu0 0.0
    %379 = vmatprep.subr.mxu0 0.0
    %380 = vmatpush1.msra.mxu0 0.0
    %381 = vmatprep.subr.mxu0 0.0
    %382 = vmatpush1.msra.mxu0 0.0
    %383 = vmatprep.mubr.f32.mxu0 0.0
    %384 = vmatmul.mubr.f32.gmra.mrb[0].mxu0 %v235
    %v385 = vpop.f32.mrb[0].mxu0
    %v386 = vadd.f32 %v318, %v385
    %v387 = vpop.f32.mrb[0].mxu0
    %388 = vmatprep.mubr.f32.mxu0 0.0
    %389 = vmatmul.mubr.f32.gmra.mrb[0].mxu0 %v238
    %v390 = vpop.f32.mrb[0].mxu0
    %v391 = vadd.f32 %v318, %v390
    %v392 = vpop.f32.mrb[0].mxu0
    %393 = vdwg.mxu0
    %v394 = vlaneseq
    %v395 = vshrl.u32 %v394, 7
    %v396 = vsub.s32 0, %v395
    %v397 = vrot.slane %v221, %v396
    %398 = vmatprep.subr.mxu0 0.0
    %399 = vmatpush1.msra.mxu0 %v199
    %400 = vmatprep.subr.mxu0 0.0
    %401 = vmatpush1.msra.mxu0 %v200
    %402 = vmatprep.subr.mxu0 0.0
    %403 = vmatpush1.msra.mxu0 %v201
    %404 = vmatprep.subr.mxu0 0.0
    %405 = vmatpush1.msra.mxu0 %v202
    %406 = vmatprep.subr.mxu0 0.0
    %407 = vmatpush1.msra.mxu0 0.0
    %408 = vmatprep.subr.mxu0 0.0
    %409 = vmatpush1.msra.mxu0 0.0
    %410 = vmatprep.subr.mxu0 0.0
    %411 = vmatpush1.msra.mxu0 0.0
    %412 = vmatprep.subr.mxu0 0.0
    %413 = vmatpush1.msra.mxu0 0.0
    %414 = vmatprep.subr.mxu0 0.0
    %415 = vmatpush1.msra.mxu0 0.0
    %416 = vmatprep.subr.mxu0 0.0
    %417 = vmatpush1.msra.mxu0 0.0
    %418 = vmatprep.subr.mxu0 0.0
    %419 = vmatpush1.msra.mxu0 0.0
    %420 = vmatprep.subr.mxu0 0.0
    %421 = vmatpush1.msra.mxu0 0.0
    %422 = vmatprep.subr.mxu0 0.0
    %423 = vmatpush1.msra.mxu0 0.0
    %424 = vmatprep.subr.mxu0 0.0
    %425 = vmatpush1.msra.mxu0 0.0
    %426 = vmatprep.subr.mxu0 0.0
    %427 = vmatpush1.msra.mxu0 0.0
    %428 = vmatprep.subr.mxu0 0.0
    %429 = vmatpush1.msra.mxu0 0.0
    %430 = vmatprep.subr.mxu0 0.0
    %431 = vmatpush1.msra.mxu0 0.0
    %432 = vmatprep.subr.mxu0 0.0
    %433 = vmatpush1.msra.mxu0 0.0
    %434 = vmatprep.subr.mxu0 0.0
    %435 = vmatpush1.msra.mxu0 0.0
    %436 = vmatprep.subr.mxu0 0.0
    %437 = vmatpush1.msra.mxu0 0.0
    %438 = vmatprep.subr.mxu0 0.0
    %439 = vmatpush1.msra.mxu0 0.0
    %440 = vmatprep.subr.mxu0 0.0
    %441 = vmatpush1.msra.mxu0 0.0
    %442 = vmatprep.subr.mxu0 0.0
    %443 = vmatpush1.msra.mxu0 0.0
    %444 = vmatprep.subr.mxu0 0.0
    %445 = vmatpush1.msra.mxu0 0.0
    %446 = vmatprep.subr.mxu0 0.0
    %447 = vmatpush1.msra.mxu0 0.0
    %448 = vmatprep.subr.mxu0 0.0
    %449 = vmatpush1.msra.mxu0 0.0
    %450 = vmatprep.subr.mxu0 0.0
    %451 = vmatpush1.msra.mxu0 0.0
    %452 = vmatprep.subr.mxu0 0.0
    %453 = vmatpush1.msra.mxu0 0.0
    %454 = vmatprep.subr.mxu0 0.0
    %455 = vmatpush1.msra.mxu0 0.0
    %456 = vmatprep.subr.mxu0 0.0
    %457 = vmatpush1.msra.mxu0 0.0
    %458 = vmatprep.subr.mxu0 0.0
    %459 = vmatpush1.msra.mxu0 0.0
    %460 = vmatprep.subr.mxu0 0.0
    %461 = vmatpush1.msra.mxu0 0.0
    %462 = vmatprep.mubr.f32.mxu0 0.0
    %463 = vmatmul.mubr.f32.gmra.mrb[0].mxu0 %v235
    %v464 = vpop.f32.mrb[0].mxu0
    %v465 = vadd.f32 %v397, %v464
    %v466 = vpop.f32.mrb[0].mxu0
    %467 = vmatprep.mubr.f32.mxu0 0.0
    %468 = vmatmul.mubr.f32.gmra.mrb[0].mxu0 %v238
    %v469 = vpop.f32.mrb[0].mxu0
    %v470 = vadd.f32 %v397, %v469
    %v471 = vpop.f32.mrb[0].mxu0
    %472 = vdwg.mxu0
    %vm473 = vcmask 130048
    %v475 = vsel %vm473, %v67, 0
    %v478 = vsel %vm473, %v68, 0
    %v481 = vsel %vm473, %v69, 0
    %v484 = vsel %vm473, %v70, 0
    %v487 = vsel %vm473, %v71, 0
    %v490 = vsel %vm473, %v72, 0
    %v493 = vsel %vm473, %v73, 0
    %v496 = vsel %vm473, %v74, 0
    %498 = vmatprep.subr.mxu0 0.0
    %499 = vmatpush1.msra.mxu0 %v307
    %500 = vmatprep.subr.mxu0 0.0
    %501 = vmatpush1.msra.mxu0 %v312
    %502 = vmatprep.subr.mxu0 0.0
    %503 = vmatpush1.msra.mxu0 0.0
    %504 = vmatprep.subr.mxu0 0.0
    %505 = vmatpush1.msra.mxu0 0.0
    %506 = vmatprep.subr.mxu0 0.0
    %507 = vmatpush1.msra.mxu0 0.0
    %508 = vmatprep.subr.mxu0 0.0
    %509 = vmatpush1.msra.mxu0 0.0
    %510 = vmatprep.subr.mxu0 0.0
    %511 = vmatpush1.msra.mxu0 0.0
    %512 = vmatprep.subr.mxu0 0.0
    %513 = vmatpush1.msra.mxu0 0.0
    %514 = vmatprep.subr.mxu0 0.0
    %515 = vmatpush1.msra.mxu0 0.0
    %516 = vmatprep.subr.mxu0 0.0
    %517 = vmatpush1.msra.mxu0 0.0
    %518 = vmatprep.subr.mxu0 0.0
    %519 = vmatpush1.msra.mxu0 0.0
    %520 = vmatprep.subr.mxu0 0.0
    %521 = vmatpush1.msra.mxu0 0.0
    %522 = vmatprep.subr.mxu0 0.0
    %523 = vmatpush1.msra.mxu0 0.0
    %524 = vmatprep.subr.mxu0 0.0
    %525 = vmatpush1.msra.mxu0 0.0
    %526 = vmatprep.subr.mxu0 0.0
    %527 = vmatpush1.msra.mxu0 0.0
    %528 = vmatprep.subr.mxu0 0.0
    %529 = vmatpush1.msra.mxu0 0.0
    %530 = vmatprep.subr.mxu0 0.0
    %531 = vmatpush1.msra.mxu0 0.0
    %532 = vmatprep.subr.mxu0 0.0
    %533 = vmatpush1.msra.mxu0 0.0
    %534 = vmatprep.subr.mxu0 0.0
    %535 = vmatpush1.msra.mxu0 0.0
    %536 = vmatprep.subr.mxu0 0.0
    %537 = vmatpush1.msra.mxu0 0.0
    %538 = vmatprep.subr.mxu0 0.0
    %539 = vmatpush1.msra.mxu0 0.0
    %540 = vmatprep.subr.mxu0 0.0
    %541 = vmatpush1.msra.mxu0 0.0
    %542 = vmatprep.subr.mxu0 0.0
    %543 = vmatpush1.msra.mxu0 0.0
    %544 = vmatprep.subr.mxu0 0.0
    %545 = vmatpush1.msra.mxu0 0.0
    %546 = vmatprep.subr.mxu0 0.0
    %547 = vmatpush1.msra.mxu0 0.0
    %548 = vmatprep.subr.mxu0 0.0
    %549 = vmatpush1.msra.mxu0 0.0
    %550 = vmatprep.subr.mxu0 0.0
    %551 = vmatpush1.msra.mxu0 0.0
    %552 = vmatprep.subr.mxu0 0.0
    %553 = vmatpush1.msra.mxu0 0.0
    %554 = vmatprep.subr.mxu0 0.0
    %555 = vmatpush1.msra.mxu0 0.0
    %556 = vmatprep.subr.mxu0 0.0
    %557 = vmatpush1.msra.mxu0 0.0
    %558 = vmatprep.subr.mxu0 0.0
    %559 = vmatpush1.msra.mxu0 0.0
    %560 = vmatprep.subr.mxu0 0.0
    %561 = vmatpush1.msra.mxu0 0.0
    %562 = vmatprep.mubr.f32.mxu0 0.0
    %563 = vmatmul.mubr.f32.gmra.mrb[0].mxu0 %v475
    %v564 = vpop.f32.mrb[0].mxu0
    %v565 = vadd.f32 0.0, %v564
    %v566 = vpop.f32.mrb[0].mxu0
    %567 = vmatprep.mubr.f32.mxu0 0.0
    %568 = vmatmul.mubr.f32.gmra.mrb[0].mxu0 %v478
    %v569 = vpop.f32.mrb[0].mxu0
    %v570 = vadd.f32 0.0, %v569
    %v571 = vpop.f32.mrb[0].mxu0
    %572 = vmatprep.mubr.f32.mxu0 0.0
    %573 = vmatmul.mubr.f32.gmra.mrb[0].mxu0 %v481
    %v574 = vpop.f32.mrb[0].mxu0
    %v575 = vadd.f32 0.0, %v574
    %v576 = vpop.f32.mrb[0].mxu0
    %577 = vmatprep.mubr.f32.mxu0 0.0
    %578 = vmatmul.mubr.f32.gmra.mrb[0].mxu0 %v484
    %v579 = vpop.f32.mrb[0].mxu0
    %v580 = vadd.f32 0.0, %v579
    %v581 = vpop.f32.mrb[0].mxu0
    %582 = vmatprep.mubr.f32.mxu0 0.0
    %583 = vmatmul.mubr.f32.gmra.mrb[0].mxu0 %v487
    %v584 = vpop.f32.mrb[0].mxu0
    %v585 = vadd.f32 0.0, %v584
    %v586 = vpop.f32.mrb[0].mxu0
    %587 = vmatprep.mubr.f32.mxu0 0.0
    %588 = vmatmul.mubr.f32.gmra.mrb[0].mxu0 %v490
    %v589 = vpop.f32.mrb[0].mxu0
    %v590 = vadd.f32 0.0, %v589
    %v591 = vpop.f32.mrb[0].mxu0
    %592 = vmatprep.mubr.f32.mxu0 0.0
    %593 = vmatmul.mubr.f32.gmra.mrb[0].mxu0 %v493
    %v594 = vpop.f32.mrb[0].mxu0
    %v595 = vadd.f32 0.0, %v594
    %v596 = vpop.f32.mrb[0].mxu0
    %597 = vmatprep.mubr.f32.mxu0 0.0
    %598 = vmatmul.mubr.f32.gmra.mrb[0].mxu0 %v496
    %v599 = vpop.f32.mrb[0].mxu0
    %v600 = vadd.f32 0.0, %v599
    %v601 = vpop.f32.mrb[0].mxu0
    %602 = vdwg.mxu0
    %v603 = vmul.f32 %v565, %v77
    %v604 = vmul.f32 %v570, %v78
    %v605 = vmul.f32 %v575, %v79
    %v606 = vmul.f32 %v580, %v80
    %v607 = vmul.f32 %v585, %v81
    %v608 = vmul.f32 %v590, %v82
    %v609 = vmul.f32 %v595, %v83
    %v610 = vmul.f32 %v600, %v84
    %v612 = vsel %vm233, %v603, 0
    %v615 = vsel %vm233, %v604, 0
    %v618 = vsel %vm233, %v605, 0
    %v621 = vsel %vm233, %v606, 0
    %v624 = vsel %vm233, %v607, 0
    %v627 = vsel %vm233, %v608, 0
    %v630 = vsel %vm233, %v609, 0
    %v633 = vsel %vm233, %v610, 0
    %v636 = vsel %vm233, %v386, 0
    %v639 = vsel %vm233, %v391, 0
    %641 = vmatprep.subr.mxu0 0.0
    %642 = vmatpush1.xpose.msra.mxu0 %v636
    %643 = vmatprep.subr.mxu0 0.0
    %644 = vmatpush1.xpose.msra.mxu0 %v639
    %645 = vmatprep.subr.mxu0 0.0
    %646 = vmatpush1.xpose.msra.mxu0 0.0
    %647 = vmatprep.subr.mxu0 0.0
    %648 = vmatpush1.xpose.msra.mxu0 0.0
    %649 = vmatprep.subr.mxu0 0.0
    %650 = vmatpush1.xpose.msra.mxu0 0.0
    %651 = vmatprep.subr.mxu0 0.0
    %652 = vmatpush1.xpose.msra.mxu0 0.0
    %653 = vmatprep.subr.mxu0 0.0
    %654 = vmatpush1.xpose.msra.mxu0 0.0
    %655 = vmatprep.subr.mxu0 0.0
    %656 = vmatpush1.xpose.msra.mxu0 0.0
    %657 = vmatprep.subr.mxu0 0.0
    %658 = vmatpush1.xpose.msra.mxu0 0.0
    %659 = vmatprep.subr.mxu0 0.0
    %660 = vmatpush1.xpose.msra.mxu0 0.0
    %661 = vmatprep.subr.mxu0 0.0
    %662 = vmatpush1.xpose.msra.mxu0 0.0
    %663 = vmatprep.subr.mxu0 0.0
    %664 = vmatpush1.xpose.msra.mxu0 0.0
    %665 = vmatprep.subr.mxu0 0.0
    %666 = vmatpush1.xpose.msra.mxu0 0.0
    %667 = vmatprep.subr.mxu0 0.0
    %668 = vmatpush1.xpose.msra.mxu0 0.0
    %669 = vmatprep.subr.mxu0 0.0
    %670 = vmatpush1.xpose.msra.mxu0 0.0
    %671 = vmatprep.subr.mxu0 0.0
    %672 = vmatpush1.xpose.msra.mxu0 0.0
    %673 = vmatprep.subr.mxu0 0.0
    %674 = vmatpush1.xpose.msra.mxu0 0.0
    %675 = vmatprep.subr.mxu0 0.0
    %676 = vmatpush1.xpose.msra.mxu0 0.0
    %677 = vmatprep.subr.mxu0 0.0
    %678 = vmatpush1.xpose.msra.mxu0 0.0
    %679 = vmatprep.subr.mxu0 0.0
    %680 = vmatpush1.xpose.msra.mxu0 0.0
    %681 = vmatprep.subr.mxu0 0.0
    %682 = vmatpush1.xpose.msra.mxu0 0.0
    %683 = vmatprep.subr.mxu0 0.0
    %684 = vmatpush1.xpose.msra.mxu0 0.0
    %685 = vmatprep.subr.mxu0 0.0
    %686 = vmatpush1.xpose.msra.mxu0 0.0
    %687 = vmatprep.subr.mxu0 0.0
    %688 = vmatpush1.xpose.msra.mxu0 0.0
    %689 = vmatprep.subr.mxu0 0.0
    %690 = vmatpush1.xpose.msra.mxu0 0.0
    %691 = vmatprep.subr.mxu0 0.0
    %692 = vmatpush1.xpose.msra.mxu0 0.0
    %693 = vmatprep.subr.mxu0 0.0
    %694 = vmatpush1.xpose.msra.mxu0 0.0
    %695 = vmatprep.subr.mxu0 0.0
    %696 = vmatpush1.xpose.msra.mxu0 0.0
    %697 = vmatprep.subr.mxu0 0.0
    %698 = vmatpush1.xpose.msra.mxu0 0.0
    %699 = vmatprep.subr.mxu0 0.0
    %700 = vmatpush1.xpose.msra.mxu0 0.0
    %701 = vmatprep.subr.mxu0 0.0
    %702 = vmatpush1.xpose.msra.mxu0 0.0
    %703 = vmatprep.subr.mxu0 0.0
    %704 = vmatpush1.xpose.msra.mxu0 0.0
    %705 = vmatprep.mubr.f32.mxu0 0.0
    %706 = vmatmul.mubr.f32.gmra.mrb[0].mxu0 %v612
    %v707 = vpop.f32.mrb[0].mxu0
    %v708 = vadd.f32 %v85, %v707
    %v709 = vpop.f32.mrb[0].mxu0
    %710 = vmatprep.mubr.f32.mxu0 0.0
    %711 = vmatmul.mubr.f32.gmra.mrb[0].mxu0 %v615
    %v712 = vpop.f32.mrb[0].mxu0
    %v713 = vadd.f32 %v86, %v712
    %v714 = vpop.f32.mrb[0].mxu0
    %715 = vmatprep.mubr.f32.mxu0 0.0
    %716 = vmatmul.mubr.f32.gmra.mrb[0].mxu0 %v618
    %v717 = vpop.f32.mrb[0].mxu0
    %v718 = vadd.f32 %v87, %v717
    %v719 = vpop.f32.mrb[0].mxu0
    %720 = vmatprep.mubr.f32.mxu0 0.0
    %721 = vmatmul.mubr.f32.gmra.mrb[0].mxu0 %v621
    %v722 = vpop.f32.mrb[0].mxu0
    %v723 = vadd.f32 %v88, %v722
    %v724 = vpop.f32.mrb[0].mxu0
    %725 = vmatprep.mubr.f32.mxu0 0.0
    %726 = vmatmul.mubr.f32.gmra.mrb[0].mxu0 %v624
    %v727 = vpop.f32.mrb[0].mxu0
    %v728 = vadd.f32 %v89, %v727
    %v729 = vpop.f32.mrb[0].mxu0
    %730 = vmatprep.mubr.f32.mxu0 0.0
    %731 = vmatmul.mubr.f32.gmra.mrb[0].mxu0 %v627
    %v732 = vpop.f32.mrb[0].mxu0
    %v733 = vadd.f32 %v90, %v732
    %v734 = vpop.f32.mrb[0].mxu0
    %735 = vmatprep.mubr.f32.mxu0 0.0
    %736 = vmatmul.mubr.f32.gmra.mrb[0].mxu0 %v630
    %v737 = vpop.f32.mrb[0].mxu0
    %v738 = vadd.f32 %v91, %v737
    %v739 = vpop.f32.mrb[0].mxu0
    %740 = vmatprep.mubr.f32.mxu0 0.0
    %741 = vmatmul.mubr.f32.gmra.mrb[0].mxu0 %v633
    %v742 = vpop.f32.mrb[0].mxu0
    %v743 = vadd.f32 %v92, %v742
    %v744 = vpop.f32.mrb[0].mxu0
    %745 = vdwg.mxu0
    %v746 = vsel %vm473, %v708, -inf
    %747 = vmax.xlane.f32.xlu0 %v746
    %v748 = vpop.xlane.xlu0 %747
    %v749 = vsel %vm473, %v713, -inf
    %750 = vmax.xlane.f32.xlu0 %v749
    %v751 = vpop.xlane.xlu0 %750
    %v752 = vsel %vm473, %v718, -inf
    %753 = vmax.xlane.f32.xlu0 %v752
    %v754 = vpop.xlane.xlu0 %753
    %v755 = vsel %vm473, %v723, -inf
    %756 = vmax.xlane.f32.xlu0 %v755
    %v757 = vpop.xlane.xlu0 %756
    %v758 = vsel %vm473, %v728, -inf
    %759 = vmax.xlane.f32.xlu0 %v758
    %v760 = vpop.xlane.xlu0 %759
    %v761 = vsel %vm473, %v733, -inf
    %762 = vmax.xlane.f32.xlu0 %v761
    %v763 = vpop.xlane.xlu0 %762
    %v764 = vsel %vm473, %v738, -inf
    %765 = vmax.xlane.f32.xlu0 %v764
    %v766 = vpop.xlane.xlu0 %765
    %v767 = vsel %vm473, %v743, -inf
    %768 = vmax.xlane.f32.xlu0 %v767
    %v769 = vpop.xlane.xlu0 %768
    %v770 = vsub.f32 %v708, %v748
    %v771 = vsub.f32 %v713, %v751
    %v772 = vsub.f32 %v718, %v754
    %v773 = vsub.f32 %v723, %v757
    %v774 = vsub.f32 %v728, %v760
    %v775 = vsub.f32 %v733, %v763
    %v776 = vsub.f32 %v738, %v766
    %v777 = vsub.f32 %v743, %v769
    %v778 = vmul.f32 %v770, 1.442695
    %v779 = vpow.pop %v778
    %v780 = vmul.f32 %v771, 1.442695
    %v781 = vpow.pop %v780
    %v782 = vmul.f32 %v772, 1.442695
    %v783 = vpow.pop %v782
    %v784 = vmul.f32 %v773, 1.442695
    %v785 = vpow.pop %v784
    %v786 = vmul.f32 %v774, 1.442695
    %v787 = vpow.pop %v786
    %v788 = vmul.f32 %v775, 1.442695
    %v789 = vpow.pop %v788
    %v790 = vmul.f32 %v776, 1.442695
    %v791 = vpow.pop %v790
    %v792 = vmul.f32 %v777, 1.442695
    %v793 = vpow.pop %v792
    %v794 = vsel %vm473, %v779, 0.0
    %795 = vadd.xlane.f32.xlu0 %v794
    %v796 = vpop.xlane.xlu0 %795
    %v797 = vsel %vm473, %v781, 0.0
    %798 = vadd.xlane.f32.xlu0 %v797
    %v799 = vpop.xlane.xlu0 %798
    %v800 = vsel %vm473, %v783, 0.0
    %801 = vadd.xlane.f32.xlu0 %v800
    %v802 = vpop.xlane.xlu0 %801
    %v803 = vsel %vm473, %v785, 0.0
    %804 = vadd.xlane.f32.xlu0 %v803
    %v805 = vpop.xlane.xlu0 %804
    %v806 = vsel %vm473, %v787, 0.0
    %807 = vadd.xlane.f32.xlu0 %v806
    %v808 = vpop.xlane.xlu0 %807
    %v809 = vsel %vm473, %v789, 0.0
    %810 = vadd.xlane.f32.xlu0 %v809
    %v811 = vpop.xlane.xlu0 %810
    %v812 = vsel %vm473, %v791, 0.0
    %813 = vadd.xlane.f32.xlu0 %v812
    %v814 = vpop.xlane.xlu0 %813
    %v815 = vsel %vm473, %v793, 0.0
    %816 = vadd.xlane.f32.xlu0 %v815
    %v817 = vpop.xlane.xlu0 %816
    %v818 = vrcp.pop %v796
    %v819 = vmul.f32 %v779, %v818
    %v820 = vrcp.pop %v799
    %v821 = vmul.f32 %v781, %v820
    %v822 = vrcp.pop %v802
    %v823 = vmul.f32 %v783, %v822
    %v824 = vrcp.pop %v805
    %v825 = vmul.f32 %v785, %v824
    %v826 = vrcp.pop %v808
    %v827 = vmul.f32 %v787, %v826
    %v828 = vrcp.pop %v811
    %v829 = vmul.f32 %v789, %v828
    %v830 = vrcp.pop %v814
    %v831 = vmul.f32 %v791, %v830
    %v832 = vrcp.pop %v817
    %v833 = vmul.f32 %v793, %v832
    %v835 = vsel %vm473, %v819, 0
    %v838 = vsel %vm473, %v821, 0
    %v841 = vsel %vm473, %v823, 0
    %v844 = vsel %vm473, %v825, 0
    %v847 = vsel %vm473, %v827, 0
    %v850 = vsel %vm473, %v829, 0
    %v853 = vsel %vm473, %v831, 0
    %v856 = vsel %vm473, %v833, 0
    %858 = vmatprep.subr.mxu0 0.0
    %859 = vmatpush1.msra.mxu0 %v465
    %860 = vmatprep.subr.mxu0 0.0
    %861 = vmatpush1.msra.mxu0 %v470
    %862 = vmatprep.subr.mxu0 0.0
    %863 = vmatpush1.msra.mxu0 0.0
    %864 = vmatprep.subr.mxu0 0.0
    %865 = vmatpush1.msra.mxu0 0.0
    %866 = vmatprep.subr.mxu0 0.0
    %867 = vmatpush1.msra.mxu0 0.0
    %868 = vmatprep.subr.mxu0 0.0
    %869 = vmatpush1.msra.mxu0 0.0
    %870 = vmatprep.subr.mxu0 0.0
    %871 = vmatpush1.msra.mxu0 0.0
    %872 = vmatprep.subr.mxu0 0.0
    %873 = vmatpush1.msra.mxu0 0.0
    %874 = vmatprep.subr.mxu0 0.0
    %875 = vmatpush1.msra.mxu0 0.0
    %876 = vmatprep.subr.mxu0 0.0
    %877 = vmatpush1.msra.mxu0 0.0
    %878 = vmatprep.subr.mxu0 0.0
    %879 = vmatpush1.msra.mxu0 0.0
    %880 = vmatprep.subr.mxu0 0.0
    %881 = vmatpush1.msra.mxu0 0.0
    %882 = vmatprep.subr.mxu0 0.0
    %883 = vmatpush1.msra.mxu0 0.0
    %884 = vmatprep.subr.mxu0 0.0
    %885 = vmatpush1.msra.mxu0 0.0
    %886 = vmatprep.subr.mxu0 0.0
    %887 = vmatpush1.msra.mxu0 0.0
    %888 = vmatprep.subr.mxu0 0.0
    %889 = vmatpush1.msra.mxu0 0.0
    %890 = vmatprep.subr.mxu0 0.0
    %891 = vmatpush1.msra.mxu0 0.0
    %892 = vmatprep.subr.mxu0 0.0
    %893 = vmatpush1.msra.mxu0 0.0
    %894 = vmatprep.subr.mxu0 0.0
    %895 = vmatpush1.msra.mxu0 0.0
    %896 = vmatprep.subr.mxu0 0.0
    %897 = vmatpush1.msra.mxu0 0.0
    %898 = vmatprep.subr.mxu0 0.0
    %899 = vmatpush1.msra.mxu0 0.0
    %900 = vmatprep.subr.mxu0 0.0
    %901 = vmatpush1.msra.mxu0 0.0
    %902 = vmatprep.subr.mxu0 0.0
    %903 = vmatpush1.msra.mxu0 0.0
    %904 = vmatprep.subr.mxu0 0.0
    %905 = vmatpush1.msra.mxu0 0.0
    %906 = vmatprep.subr.mxu0 0.0
    %907 = vmatpush1.msra.mxu0 0.0
    %908 = vmatprep.subr.mxu0 0.0
    %909 = vmatpush1.msra.mxu0 0.0
    %910 = vmatprep.subr.mxu0 0.0
    %911 = vmatpush1.msra.mxu0 0.0
    %912 = vmatprep.subr.mxu0 0.0
    %913 = vmatpush1.msra.mxu0 0.0
    %914 = vmatprep.subr.mxu0 0.0
    %915 = vmatpush1.msra.mxu0 0.0
    %916 = vmatprep.subr.mxu0 0.0
    %917 = vmatpush1.msra.mxu0 0.0
    %918 = vmatprep.subr.mxu0 0.0
    %919 = vmatpush1.msra.mxu0 0.0
    %920 = vmatprep.subr.mxu0 0.0
    %921 = vmatpush1.msra.mxu0 0.0
    %922 = vmatprep.mubr.f32.mxu0 0.0
    %923 = vmatmul.mubr.f32.gmra.mrb[0].mxu0 %v835
    %v924 = vpop.f32.mrb[0].mxu0
    %v925 = vadd.f32 0.0, %v924
    %v926 = vpop.f32.mrb[0].mxu0
    %927 = vmatprep.mubr.f32.mxu0 0.0
    %928 = vmatmul.mubr.f32.gmra.mrb[0].mxu0 %v838
    %v929 = vpop.f32.mrb[0].mxu0
    %v930 = vadd.f32 0.0, %v929
    %v931 = vpop.f32.mrb[0].mxu0
    %932 = vmatprep.mubr.f32.mxu0 0.0
    %933 = vmatmul.mubr.f32.gmra.mrb[0].mxu0 %v841
    %v934 = vpop.f32.mrb[0].mxu0
    %v935 = vadd.f32 0.0, %v934
    %v936 = vpop.f32.mrb[0].mxu0
    %937 = vmatprep.mubr.f32.mxu0 0.0
    %938 = vmatmul.mubr.f32.gmra.mrb[0].mxu0 %v844
    %v939 = vpop.f32.mrb[0].mxu0
    %v940 = vadd.f32 0.0, %v939
    %v941 = vpop.f32.mrb[0].mxu0
    %942 = vmatprep.mubr.f32.mxu0 0.0
    %943 = vmatmul.mubr.f32.gmra.mrb[0].mxu0 %v847
    %v944 = vpop.f32.mrb[0].mxu0
    %v945 = vadd.f32 0.0, %v944
    %v946 = vpop.f32.mrb[0].mxu0
    %947 = vmatprep.mubr.f32.mxu0 0.0
    %948 = vmatmul.mubr.f32.gmra.mrb[0].mxu0 %v850
    %v949 = vpop.f32.mrb[0].mxu0
    %v950 = vadd.f32 0.0, %v949
    %v951 = vpop.f32.mrb[0].mxu0
    %952 = vmatprep.mubr.f32.mxu0 0.0
    %953 = vmatmul.mubr.f32.gmra.mrb[0].mxu0 %v853
    %v954 = vpop.f32.mrb[0].mxu0
    %v955 = vadd.f32 0.0, %v954
    %v956 = vpop.f32.mrb[0].mxu0
    %957 = vmatprep.mubr.f32.mxu0 0.0
    %958 = vmatmul.mubr.f32.gmra.mrb[0].mxu0 %v856
    %v959 = vpop.f32.mrb[0].mxu0
    %v960 = vadd.f32 0.0, %v959
    %v961 = vpop.f32.mrb[0].mxu0
    %962 = vdwg.mxu0
    %v963 = vmul.f32 %v925, %v77
    %v964 = vmul.f32 %v930, %v78
    %v965 = vmul.f32 %v935, %v79
    %v966 = vmul.f32 %v940, %v80
    %v967 = vmul.f32 %v945, %v81
    %v968 = vmul.f32 %v950, %v82
    %v969 = vmul.f32 %v955, %v83
    %v970 = vmul.f32 %v960, %v84
    %vm971 = vcmask 523264
    %v973 = vsel %vm971, %v75, 0
    %v976 = vsel %vm971, %v76, 0
    %978 = vmatprep.subr.mxu0 0.0
    %979 = vmatpush1.msra.mxu0 %v963
    %980 = vmatprep.subr.mxu0 0.0
    %981 = vmatpush1.msra.mxu0 %v964
    %982 = vmatprep.subr.mxu0 0.0
    %983 = vmatpush1.msra.mxu0 %v965
    %984 = vmatprep.subr.mxu0 0.0
    %985 = vmatpush1.msra.mxu0 %v966
    %986 = vmatprep.subr.mxu0 0.0
    %987 = vmatpush1.msra.mxu0 %v967
    %988 = vmatprep.subr.mxu0 0.0
    %989 = vmatpush1.msra.mxu0 %v968
    %990 = vmatprep.subr.mxu0 0.0
    %991 = vmatpush1.msra.mxu0 %v969
    %992 = vmatprep.subr.mxu0 0.0
    %993 = vmatpush1.msra.mxu0 %v970
    %994 = vmatprep.subr.mxu0 0.0
    %995 = vmatpush1.msra.mxu0 0.0
    %996 = vmatprep.subr.mxu0 0.0
    %997 = vmatpush1.msra.mxu0 0.0
    %998 = vmatprep.subr.mxu0 0.0
    %999 = vmatpush1.msra.mxu0 0.0
    %1000 = vmatprep.subr.mxu0 0.0
    %1001 = vmatpush1.msra.mxu0 0.0
    %1002 = vmatprep.subr.mxu0 0.0
    %1003 = vmatpush1.msra.mxu0 0.0
    %1004 = vmatprep.subr.mxu0 0.0
    %1005 = vmatpush1.msra.mxu0 0.0
    %1006 = vmatprep.subr.mxu0 0.0
    %1007 = vmatpush1.msra.mxu0 0.0
    %1008 = vmatprep.subr.mxu0 0.0
    %1009 = vmatpush1.msra.mxu0 0.0
    %1010 = vmatprep.subr.mxu0 0.0
    %1011 = vmatpush1.msra.mxu0 0.0
    %1012 = vmatprep.subr.mxu0 0.0
    %1013 = vmatpush1.msra.mxu0 0.0
    %1014 = vmatprep.subr.mxu0 0.0
    %1015 = vmatpush1.msra.mxu0 0.0
    %1016 = vmatprep.subr.mxu0 0.0
    %1017 = vmatpush1.msra.mxu0 0.0
    %1018 = vmatprep.subr.mxu0 0.0
    %1019 = vmatpush1.msra.mxu0 0.0
    %1020 = vmatprep.subr.mxu0 0.0
    %1021 = vmatpush1.msra.mxu0 0.0
    %1022 = vmatprep.subr.mxu0 0.0
    %1023 = vmatpush1.msra.mxu0 0.0
    %1024 = vmatprep.subr.mxu0 0.0
    %1025 = vmatpush1.msra.mxu0 0.0
    %1026 = vmatprep.subr.mxu0 0.0
    %1027 = vmatpush1.msra.mxu0 0.0
    %1028 = vmatprep.subr.mxu0 0.0
    %1029 = vmatpush1.msra.mxu0 0.0
    %1030 = vmatprep.subr.mxu0 0.0
    %1031 = vmatpush1.msra.mxu0 0.0
    %1032 = vmatprep.subr.mxu0 0.0
    %1033 = vmatpush1.msra.mxu0 0.0
    %1034 = vmatprep.subr.mxu0 0.0
    %1035 = vmatpush1.msra.mxu0 0.0
    %1036 = vmatprep.subr.mxu0 0.0
    %1037 = vmatpush1.msra.mxu0 0.0
    %1038 = vmatprep.subr.mxu0 0.0
    %1039 = vmatpush1.msra.mxu0 0.0
    %1040 = vmatprep.subr.mxu0 0.0
    %1041 = vmatpush1.msra.mxu0 0.0
    %1042 = vmatprep.mubr.f32.mxu0 0.0
    %1043 = vmatmul.mubr.f32.gmra.mrb[0].mxu0 %v973
    %v1044 = vpop.f32.mrb[0].mxu0
    %v1045 = vadd.f32 0.0, %v1044
    %v1046 = vpop.f32.mrb[0].mxu0
    %1047 = vmatprep.mubr.f32.mxu0 0.0
    %1048 = vmatmul.mubr.f32.gmra.mrb[0].mxu0 %v976
    %v1049 = vpop.f32.mrb[0].mxu0
    %v1050 = vadd.f32 0.0, %v1049
    %v1051 = vpop.f32.mrb[0].mxu0
    %1052 = vdwg.mxu0
    %v1053 = vlaneseq
    %v1054 = vshrl.u32 %v1053, 7
    %v1055 = vsub.s32 0, %v1054
    %v1056 = vrot.slane %v222, %v1055
    %v1058 = vsel %vm233, %v1045, 0
    %v1061 = vsel %vm233, %v1050, 0
    %1063 = vmatprep.subr.mxu0 0.0
    %1064 = vmatpush1.msra.mxu0 %v203
    %1065 = vmatprep.subr.mxu0 0.0
    %1066 = vmatpush1.msra.mxu0 %v204
    %1067 = vmatprep.subr.mxu0 0.0
    %1068 = vmatpush1.msra.mxu0 %v205
    %1069 = vmatprep.subr.mxu0 0.0
    %1070 = vmatpush1.msra.mxu0 %v206
    %1071 = vmatprep.subr.mxu0 0.0
    %1072 = vmatpush1.msra.mxu0 0.0
    %1073 = vmatprep.subr.mxu0 0.0
    %1074 = vmatpush1.msra.mxu0 0.0
    %1075 = vmatprep.subr.mxu0 0.0
    %1076 = vmatpush1.msra.mxu0 0.0
    %1077 = vmatprep.subr.mxu0 0.0
    %1078 = vmatpush1.msra.mxu0 0.0
    %1079 = vmatprep.subr.mxu0 0.0
    %1080 = vmatpush1.msra.mxu0 0.0
    %1081 = vmatprep.subr.mxu0 0.0
    %1082 = vmatpush1.msra.mxu0 0.0
    %1083 = vmatprep.subr.mxu0 0.0
    %1084 = vmatpush1.msra.mxu0 0.0
    %1085 = vmatprep.subr.mxu0 0.0
    %1086 = vmatpush1.msra.mxu0 0.0
    %1087 = vmatprep.subr.mxu0 0.0
    %1088 = vmatpush1.msra.mxu0 0.0
    %1089 = vmatprep.subr.mxu0 0.0
    %1090 = vmatpush1.msra.mxu0 0.0
    %1091 = vmatprep.subr.mxu0 0.0
    %1092 = vmatpush1.msra.mxu0 0.0
    %1093 = vmatprep.subr.mxu0 0.0
    %1094 = vmatpush1.msra.mxu0 0.0
    %1095 = vmatprep.subr.mxu0 0.0
    %1096 = vmatpush1.msra.mxu0 0.0
    %1097 = vmatprep.subr.mxu0 0.0
    %1098 = vmatpush1.msra.mxu0 0.0
    %1099 = vmatprep.subr.mxu0 0.0
    %1100 = vmatpush1.msra.mxu0 0.0
    %1101 = vmatprep.subr.mxu0 0.0
    %1102 = vmatpush1.msra.mxu0 0.0
    %1103 = vmatprep.subr.mxu0 0.0
    %1104 = vmatpush1.msra.mxu0 0.0
    %1105 = vmatprep.subr.mxu0 0.0
    %1106 = vmatpush1.msra.mxu0 0.0
    %1107 = vmatprep.subr.mxu0 0.0
    %1108 = vmatpush1.msra.mxu0 0.0
    %1109 = vmatprep.subr.mxu0 0.0
    %1110 = vmatpush1.msra.mxu0 0.0
    %1111 = vmatprep.subr.mxu0 0.0
    %1112 = vmatpush1.msra.mxu0 0.0
    %1113 = vmatprep.subr.mxu0 0.0
    %1114 = vmatpush1.msra.mxu0 0.0
    %1115 = vmatprep.subr.mxu0 0.0
    %1116 = vmatpush1.msra.mxu0 0.0
    %1117 = vmatprep.subr.mxu0 0.0
    %1118 = vmatpush1.msra.mxu0 0.0
    %1119 = vmatprep.subr.mxu0 0.0
    %1120 = vmatpush1.msra.mxu0 0.0
    %1121 = vmatprep.subr.mxu0 0.0
    %1122 = vmatpush1.msra.mxu0 0.0
    %1123 = vmatprep.subr.mxu0 0.0
    %1124 = vmatpush1.msra.mxu0 0.0
    %1125 = vmatprep.subr.mxu0 0.0
    %1126 = vmatpush1.msra.mxu0 0.0
    %1127 = vmatprep.mubr.f32.mxu0 0.0
    %1128 = vmatmul.mubr.f32.gmra.mrb[0].mxu0 %v1058
    %v1129 = vpop.f32.mrb[0].mxu0
    %v1130 = vadd.f32 %v1056, %v1129
    %v1131 = vpop.f32.mrb[0].mxu0
    %1132 = vmatprep.mubr.f32.mxu0 0.0
    %1133 = vmatmul.mubr.f32.gmra.mrb[0].mxu0 %v1061
    %v1134 = vpop.f32.mrb[0].mxu0
    %v1135 = vadd.f32 %v1056, %v1134
    %v1136 = vpop.f32.mrb[0].mxu0
    %1137 = vdwg.mxu0
    %v1138 = vadd.f32 %v183, %v1130
    %v1139 = vadd.f32 %v188, %v1135
    %v1140 = vsel %vm233, %v1138, 0.0
    %1141 = vadd.xlane.f32.xlu0 %v1140
    %v1142 = vpop.xlane.xlu0 %1141
    %v1143 = vsel %vm233, %v1139, 0.0
    %1144 = vadd.xlane.f32.xlu0 %v1143
    %v1145 = vpop.xlane.xlu0 %1144
    %v1146 = vrcp.pop 32.0
    %v1147 = vmul.f32 %v1142, %v1146
    %v1148 = vmul.f32 %v1145, %v1146
    %v1149 = vsub.f32 %v1138, %v1147
    %v1150 = vsub.f32 %v1139, %v1148
    %v1151 = vmul.f32 %v1149, %v1149
    %v1152 = vmul.f32 %v1150, %v1150
    %v1153 = vsel %vm233, %v1151, 0.0
    %1154 = vadd.xlane.f32.xlu0 %v1153
    %v1155 = vpop.xlane.xlu0 %1154
    %v1156 = vsel %vm233, %v1152, 0.0
    %1157 = vadd.xlane.f32.xlu0 %v1156
    %v1158 = vpop.xlane.xlu0 %1157
    %v1159 = vmul.f32 %v1155, %v1146
    %v1160 = vmul.f32 %v1158, %v1146
    %v1161 = vadd.f32 %v1159, 1e-05
    %v1162 = vadd.f32 %v1160, 1e-05
    %v1163 = vrsqrt.pop %v1161
    %v1164 = vrsqrt.pop %v1162
    %v1165 = vmul.f32 %v1149, %v1163
    %v1166 = vmul.f32 %v1150, %v1164
    %v1167 = vlaneseq
    %v1168 = vshrl.u32 %v1167, 7
    %v1169 = vsub.s32 0, %v1168
    %v1170 = vrot.slane %v225, %v1169
    %v1171 = vmul.f32 %v1165, %v1170
    %v1172 = vmul.f32 %v1166, %v1170
    %v1173 = vlaneseq
    %v1174 = vshrl.u32 %v1173, 7
    %v1175 = vsub.s32 0, %v1174
    %v1176 = vrot.slane %v226, %v1175
    %v1177 = vadd.f32 %v1171, %v1176
    %v1178 = vadd.f32 %v1172, %v1176
    %v1179 = vlaneseq
    %v1180 = vshrl.u32 %v1179, 7
    %v1181 = vsub.s32 0, %v1180
    %v1182 = vrot.slane %v223, %v1181
    %v1184 = vsel %vm233, %v1177, 0
    %v1187 = vsel %vm233, %v1178, 0
    %1189 = vmatprep.subr.mxu0 0.0
    %1190 = vmatpush1.msra.mxu0 %v207
    %1191 = vmatprep.subr.mxu0 0.0
    %1192 = vmatpush1.msra.mxu0 %v208
    %1193 = vmatprep.subr.mxu0 0.0
    %1194 = vmatpush1.msra.mxu0 %v209
    %1195 = vmatprep.subr.mxu0 0.0
    %1196 = vmatpush1.msra.mxu0 %v210
    %1197 = vmatprep.subr.mxu0 0.0
    %1198 = vmatpush1.msra.mxu0 0.0
    %1199 = vmatprep.subr.mxu0 0.0
    %1200 = vmatpush1.msra.mxu0 0.0
    %1201 = vmatprep.subr.mxu0 0.0
    %1202 = vmatpush1.msra.mxu0 0.0
    %1203 = vmatprep.subr.mxu0 0.0
    %1204 = vmatpush1.msra.mxu0 0.0
    %1205 = vmatprep.subr.mxu0 0.0
    %1206 = vmatpush1.msra.mxu0 0.0
    %1207 = vmatprep.subr.mxu0 0.0
    %1208 = vmatpush1.msra.mxu0 0.0
    %1209 = vmatprep.subr.mxu0 0.0
    %1210 = vmatpush1.msra.mxu0 0.0
    %1211 = vmatprep.subr.mxu0 0.0
    %1212 = vmatpush1.msra.mxu0 0.0
    %1213 = vmatprep.subr.mxu0 0.0
    %1214 = vmatpush1.msra.mxu0 0.0
    %1215 = vmatprep.subr.mxu0 0.0
    %1216 = vmatpush1.msra.mxu0 0.0
    %1217 = vmatprep.subr.mxu0 0.0
    %1218 = vmatpush1.msra.mxu0 0.0
    %1219 = vmatprep.subr.mxu0 0.0
    %1220 = vmatpush1.msra.mxu0 0.0
    %1221 = vmatprep.subr.mxu0 0.0
    %1222 = vmatpush1.msra.mxu0 0.0
    %1223 = vmatprep.subr.mxu0 0.0
    %1224 = vmatpush1.msra.mxu0 0.0
    %1225 = vmatprep.subr.mxu0 0.0
    %1226 = vmatpush1.msra.mxu0 0.0
    %1227 = vmatprep.subr.mxu0 0.0
    %1228 = vmatpush1.msra.mxu0 0.0
    %1229 = vmatprep.subr.mxu0 0.0
    %1230 = vmatpush1.msra.mxu0 0.0
    %1231 = vmatprep.subr.mxu0 0.0
    %1232 = vmatpush1.msra.mxu0 0.0
    %1233 = vmatprep.subr.mxu0 0.0
    %1234 = vmatpush1.msra.mxu0 0.0
    %1235 = vmatprep.subr.mxu0 0.0
    %1236 = vmatpush1.msra.mxu0 0.0
    %1237 = vmatprep.subr.mxu0 0.0
    %1238 = vmatpush1.msra.mxu0 0.0
    %1239 = vmatprep.subr.mxu0 0.0
    %1240 = vmatpush1.msra.mxu0 0.0
    %1241 = vmatprep.subr.mxu0 0.0
    %1242 = vmatpush1.msra.mxu0 0.0
    %1243 = vmatprep.subr.mxu0 0.0
    %1244 = vmatpush1.msra.mxu0 0.0
    %1245 = vmatprep.subr.mxu0 0.0
    %1246 = vmatpush1.msra.mxu0 0.0
    %1247 = vmatprep.subr.mxu0 0.0
    %1248 = vmatpush1.msra.mxu0 0.0
    %1249 = vmatprep.subr.mxu0 0.0
    %1250 = vmatpush1.msra.mxu0 0.0
    %1251 = vmatprep.subr.mxu0 0.0
    %1252 = vmatpush1.msra.mxu0 0.0
    %1253 = vmatprep.mubr.f32.mxu0 0.0
    %1254 = vmatmul.mubr.f32.gmra.mrb[0].mxu0 %v1184
    %v1255 = vpop.f32.mrb[0].mxu0
    %v1256 = vadd.f32 %v1182, %v1255
    %v1257 = vpop.f32.mrb[0].mxu0
    %1258 = vmatprep.mubr.f32.mxu0 0.0
    %1259 = vmatmul.mubr.f32.gmra.mrb[0].mxu0 %v1187
    %v1260 = vpop.f32.mrb[0].mxu0
    %v1261 = vadd.f32 %v1182, %v1260
    %v1262 = vpop.f32.mrb[0].mxu0
    %1263 = vdwg.mxu0
    %v1264 = vmax.f32 %v1256, 0.0
    %v1265 = vmax.f32 %v1261, 0.0
    %v1266 = vlaneseq
    %v1267 = vshrl.u32 %v1266, 7
    %v1268 = vsub.s32 0, %v1267
    %v1269 = vrot.slane %v224, %v1268
    %v1271 = vsel %vm971, %v1264, 0
    %v1274 = vsel %vm971, %v1265, 0
    %1276 = vmatprep.subr.mxu0 0.0
    %1277 = vmatpush1.msra.mxu0 %v211
    %1278 = vmatprep.subr.mxu0 0.0
    %1279 = vmatpush1.msra.mxu0 %v212
    %1280 = vmatprep.subr.mxu0 0.0
    %1281 = vmatpush1.msra.mxu0 %v213
    %1282 = vmatprep.subr.mxu0 0.0
    %1283 = vmatpush1.msra.mxu0 %v214
    %1284 = vmatprep.subr.mxu0 0.0
    %1285 = vmatpush1.msra.mxu0 %v215
    %1286 = vmatprep.subr.mxu0 0.0
    %1287 = vmatpush1.msra.mxu0 %v216
    %1288 = vmatprep.subr.mxu0 0.0
    %1289 = vmatpush1.msra.mxu0 %v217
    %1290 = vmatprep.subr.mxu0 0.0
    %1291 = vmatpush1.msra.mxu0 %v218
    %1292 = vmatprep.subr.mxu0 0.0
    %1293 = vmatpush1.msra.mxu0 0.0
    %1294 = vmatprep.subr.mxu0 0.0
    %1295 = vmatpush1.msra.mxu0 0.0
    %1296 = vmatprep.subr.mxu0 0.0
    %1297 = vmatpush1.msra.mxu0 0.0
    %1298 = vmatprep.subr.mxu0 0.0
    %1299 = vmatpush1.msra.mxu0 0.0
    %1300 = vmatprep.subr.mxu0 0.0
    %1301 = vmatpush1.msra.mxu0 0.0
    %1302 = vmatprep.subr.mxu0 0.0
    %1303 = vmatpush1.msra.mxu0 0.0
    %1304 = vmatprep.subr.mxu0 0.0
    %1305 = vmatpush1.msra.mxu0 0.0
    %1306 = vmatprep.subr.mxu0 0.0
    %1307 = vmatpush1.msra.mxu0 0.0
    %1308 = vmatprep.subr.mxu0 0.0
    %1309 = vmatpush1.msra.mxu0 0.0
    %1310 = vmatprep.subr.mxu0 0.0
    %1311 = vmatpush1.msra.mxu0 0.0
    %1312 = vmatprep.subr.mxu0 0.0
    %1313 = vmatpush1.msra.mxu0 0.0
    %1314 = vmatprep.subr.mxu0 0.0
    %1315 = vmatpush1.msra.mxu0 0.0
    %1316 = vmatprep.subr.mxu0 0.0
    %1317 = vmatpush1.msra.mxu0 0.0
    %1318 = vmatprep.subr.mxu0 0.0
    %1319 = vmatpush1.msra.mxu0 0.0
    %1320 = vmatprep.subr.mxu0 0.0
    %1321 = vmatpush1.msra.mxu0 0.0
    %1322 = vmatprep.subr.mxu0 0.0
    %1323 = vmatpush1.msra.mxu0 0.0
    %1324 = vmatprep.subr.mxu0 0.0
    %1325 = vmatpush1.msra.mxu0 0.0
    %1326 = vmatprep.subr.mxu0 0.0
    %1327 = vmatpush1.msra.mxu0 0.0
    %1328 = vmatprep.subr.mxu0 0.0
    %1329 = vmatpush1.msra.mxu0 0.0
    %1330 = vmatprep.subr.mxu0 0.0
    %1331 = vmatpush1.msra.mxu0 0.0
    %1332 = vmatprep.subr.mxu0 0.0
    %1333 = vmatpush1.msra.mxu0 0.0
    %1334 = vmatprep.subr.mxu0 0.0
    %1335 = vmatpush1.msra.mxu0 0.0
    %1336 = vmatprep.subr.mxu0 0.0
    %1337 = vmatpush1.msra.mxu0 0.0
    %1338 = vmatprep.subr.mxu0 0.0
    %1339 = vmatpush1.msra.mxu0 0.0
    %1340 = vmatprep.mubr.f32.mxu0 0.0
    %1341 = vmatmul.mubr.f32.gmra.mrb[0].mxu0 %v1271
    %v1342 = vpop.f32.mrb[0].mxu0
    %v1343 = vadd.f32 %v1269, %v1342
    %v1344 = vpop.f32.mrb[0].mxu0
    %1345 = vmatprep.mubr.f32.mxu0 0.0
    %1346 = vmatmul.mubr.f32.gmra.mrb[0].mxu0 %v1274
    %v1347 = vpop.f32.mrb[0].mxu0
    %v1348 = vadd.f32 %v1269, %v1347
    %v1349 = vpop.f32.mrb[0].mxu0
    %1350 = vdwg.mxu0
    %v1351 = vadd.f32 %v1177, %v1343
    %v1352 = vadd.f32 %v1178, %v1348
    %v1353 = vsel %vm233, %v1351, 0.0
    %1354 = vadd.xlane.f32.xlu0 %v1353
    %v1355 = vpop.xlane.xlu0 %1354
    %v1356 = vsel %vm233, %v1352, 0.0
    %1357 = vadd.xlane.f32.xlu0 %v1356
    %v1358 = vpop.xlane.xlu0 %1357
    %v1359 = vmul.f32 %v1355, %v1146
    %v1360 = vmul.f32 %v1358, %v1146
    %v1361 = vsub.f32 %v1351, %v1359
    %v1362 = vsub.f32 %v1352, %v1360
    %v1363 = vmul.f32 %v1361, %v1361
    %v1364 = vmul.f32 %v1362, %v1362
    %v1365 = vsel %vm233, %v1363, 0.0
    %1366 = vadd.xlane.f32.xlu0 %v1365
    %v1367 = vpop.xlane.xlu0 %1366
    %v1368 = vsel %vm233, %v1364, 0.0
    %1369 = vadd.xlane.f32.xlu0 %v1368
    %v1370 = vpop.xlane.xlu0 %1369
    %v1371 = vmul.f32 %v1367, %v1146
    %v1372 = vmul.f32 %v1370, %v1146
    %v1373 = vadd.f32 %v1371, 1e-05
    %v1374 = vadd.f32 %v1372, 1e-05
    %v1375 = vrsqrt.pop %v1373
    %v1376 = vrsqrt.pop %v1374
    %v1377 = vmul.f32 %v1361, %v1375
    %v1378 = vmul.f32 %v1362, %v1376
    %v1379 = vlaneseq
    %v1380 = vshrl.u32 %v1379, 7
    %v1381 = vsub.s32 0, %v1380
    %v1382 = vrot.slane %v227, %v1381
    %v1383 = vmul.f32 %v1377, %v1382
    %v1384 = vmul.f32 %v1378, %v1382
    %v1385 = vlaneseq
    %v1386 = vshrl.u32 %v1385, 7
    %v1387 = vsub.s32 0, %v1386
    %v1388 = vrot.slane %v228, %v1387
    %v1389 = vadd.f32 %v1383, %v1388
    %v1390 = vadd.f32 %v1384, %v1388
    %s1391 = scalar_lea.vmem [#allocation4], 224
    %v1392 = vld [vmem:[%s1391] sm:$0xff]
    %v1393 = vld [vmem:[%s1391 + $0x8] sm:$0xff]
    %v1394 = vld [vmem:[%s1391 + $0x10] sm:$0xff]
    %v1395 = vld [vmem:[%s1391 + $0x18] sm:$0xff]
    %v1396 = vld [vmem:[%s1391 + $0x20] sm:$0xff]
    %v1397 = vld [vmem:[%s1391 + $0x28] sm:$0xff]
    %v1398 = vld [vmem:[%s1391 + $0x30] sm:$0xff]
    %v1399 = vld [vmem:[%s1391 + $0x38] sm:$0xff]
    %v1400 = vld [vmem:[%s1391 + $0x40] sm:$0xff]
    %v1401 = vld [vmem:[%s1391 + $0x48] sm:$0xff]
    %v1402 = vld [vmem:[%s1391 + $0x50] sm:$0xff]
    %v1403 = vld [vmem:[%s1391 + $0x58] sm:$0xff]
    %v1404 = vld [vmem:[%s1391 + $0x60] sm:$0xff]
    %v1405 = vld [vmem:[%s1391 + $0x68] sm:$0xff]
    %v1406 = vld [vmem:[%s1391 + $0x70] sm:$0xff]
    %v1407 = vld [vmem:[%s1391 + $0x78] sm:$0xff]
    %v1408 = vld [vmem:[%s1391 + $0x80] sm:$0xff]
    %v1409 = vld [vmem:[%s1391 + $0x88] sm:$0xff]
    %v1410 = vld [vmem:[%s1391 + $0x90] sm:$0xff]
    %v1411 = vld [vmem:[%s1391 + $0x98] sm:$0xff]
    %v1412 = vld [vmem:[%s1391 + $0xa0] sm:$0xff]
    %v1413 = vld [vmem:[%s1391 + $0xa8] sm:$0xff]
    %v1414 = vld [vmem:[%s1391 + $0xb0] sm:$0xff]
    %v1415 = vld [vmem:[%s1391 + $0xb8] sm:$0xff]
    %v1416 = vld [vmem:[%s1391 + $0xc0] sm:$0xff]
    %v1417 = vld [vmem:[%s1391 + $0xc8] sm:$0xff]
    %v1418 = vld [vmem:[%s1391 + $0xd0] sm:$0xff]
    %v1419 = vld [vmem:[%s1391 + $0xd8] sm:$0xff]
    %s1420 = scalar_lea.vmem [#allocation6], 80
    %v1421 = vld [vmem:[%s1420] sm:$0x1]
    %v1422 = vld [vmem:[%s1420 + $0x8] sm:$0x1]
    %v1423 = vld [vmem:[%s1420 + $0x10] sm:$0x1]
    %v1424 = vld [vmem:[%s1420 + $0x18] sm:$0x1]
    %v1425 = vld [vmem:[%s1420 + $0x20] sm:$0x1]
    %v1426 = vld [vmem:[%s1420 + $0x28] sm:$0x1]
    %v1427 = vld [vmem:[%s1420 + $0x30] sm:$0x1]
    %v1428 = vld [vmem:[%s1420 + $0x38] sm:$0x1]
    %v1429 = vld [vmem:[%s1420 + $0x40] sm:$0x1]
    %v1430 = vld [vmem:[%s1420 + $0x48] sm:$0x1]
    %v1431 = vlaneseq
    %v1432 = vshrl.u32 %v1431, 7
    %v1433 = vsub.s32 0, %v1432
    %v1434 = vrot.slane %v1421, %v1433
    %v1436 = vsel %vm233, %v1389, 0
    %v1439 = vsel %vm233, %v1390, 0
    %1441 = vmatprep.subr.mxu0 0.0
    %1442 = vmatpush1.msra.mxu0 %v1392
    %1443 = vmatprep.subr.mxu0 0.0
    %1444 = vmatpush1.msra.mxu0 %v1393
    %1445 = vmatprep.subr.mxu0 0.0
    %1446 = vmatpush1.msra.mxu0 %v1394
    %1447 = vmatprep.subr.mxu0 0.0
    %1448 = vmatpush1.msra.mxu0 %v1395
    %1449 = vmatprep.subr.mxu0 0.0
    %1450 = vmatpush1.msra.mxu0 0.0
    %1451 = vmatprep.subr.mxu0 0.0
    %1452 = vmatpush1.msra.mxu0 0.0
    %1453 = vmatprep.subr.mxu0 0.0
    %1454 = vmatpush1.msra.mxu0 0.0
    %1455 = vmatprep.subr.mxu0 0.0
    %1456 = vmatpush1.msra.mxu0 0.0
    %1457 = vmatprep.subr.mxu0 0.0
    %1458 = vmatpush1.msra.mxu0 0.0
    %1459 = vmatprep.subr.mxu0 0.0
    %1460 = vmatpush1.msra.mxu0 0.0
    %1461 = vmatprep.subr.mxu0 0.0
    %1462 = vmatpush1.msra.mxu0 0.0
    %1463 = vmatprep.subr.mxu0 0.0
    %1464 = vmatpush1.msra.mxu0 0.0
    %1465 = vmatprep.subr.mxu0 0.0
    %1466 = vmatpush1.msra.mxu0 0.0
    %1467 = vmatprep.subr.mxu0 0.0
    %1468 = vmatpush1.msra.mxu0 0.0
    %1469 = vmatprep.subr.mxu0 0.0
    %1470 = vmatpush1.msra.mxu0 0.0
    %1471 = vmatprep.subr.mxu0 0.0
    %1472 = vmatpush1.msra.mxu0 0.0
    %1473 = vmatprep.subr.mxu0 0.0
    %1474 = vmatpush1.msra.mxu0 0.0
    %1475 = vmatprep.subr.mxu0 0.0
    %1476 = vmatpush1.msra.mxu0 0.0
    %1477 = vmatprep.subr.mxu0 0.0
    %1478 = vmatpush1.msra.mxu0 0.0
    %1479 = vmatprep.subr.mxu0 0.0
    %1480 = vmatpush1.msra.mxu0 0.0
    %1481 = vmatprep.subr.mxu0 0.0
    %1482 = vmatpush1.msra.mxu0 0.0
    %1483 = vmatprep.subr.mxu0 0.0
    %1484 = vmatpush1.msra.mxu0 0.0
    %1485 = vmatprep.subr.mxu0 0.0
    %1486 = vmatpush1.msra.mxu0 0.0
    %1487 = vmatprep.subr.mxu0 0.0
    %1488 = vmatpush1.msra.mxu0 0.0
    %1489 = vmatprep.subr.mxu0 0.0
    %1490 = vmatpush1.msra.mxu0 0.0
    %1491 = vmatprep.subr.mxu0 0.0
    %1492 = vmatpush1.msra.mxu0 0.0
    %1493 = vmatprep.subr.mxu0 0.0
    %1494 = vmatpush1.msra.mxu0 0.0
    %1495 = vmatprep.subr.mxu0 0.0
    %1496 = vmatpush1.msra.mxu0 0.0
    %1497 = vmatprep.subr.mxu0 0.0
    %1498 = vmatpush1.msra.mxu0 0.0
    %1499 = vmatprep.subr.mxu0 0.0
    %1500 = vmatpush1.msra.mxu0 0.0
    %1501 = vmatprep.subr.mxu0 0.0
    %1502 = vmatpush1.msra.mxu0 0.0
    %1503 = vmatprep.subr.mxu0 0.0
    %1504 = vmatpush1.msra.mxu0 0.0
    %1505 = vmatprep.mubr.f32.mxu0 0.0
    %1506 = vmatmul.mubr.f32.gmra.mrb[0].mxu0 %v1436
    %v1507 = vpop.f32.mrb[0].mxu0
    %v1508 = vadd.f32 %v1434, %v1507
    %v1509 = vpop.f32.mrb[0].mxu0
    %1510 = vmatprep.mubr.f32.mxu0 0.0
    %1511 = vmatmul.mubr.f32.gmra.mrb[0].mxu0 %v1439
    %v1512 = vpop.f32.mrb[0].mxu0
    %v1513 = vadd.f32 %v1434, %v1512
    %v1514 = vpop.f32.mrb[0].mxu0
    %1515 = vdwg.mxu0
    %v1516 = vlaneseq
    %v1517 = vshrl.u32 %v1516, 7
    %v1518 = vsub.s32 0, %v1517
    %v1519 = vrot.slane %v1422, %v1518
    %1520 = vmatprep.subr.mxu0 0.0
    %1521 = vmatpush1.msra.mxu0 %v1396
    %1522 = vmatprep.subr.mxu0 0.0
    %1523 = vmatpush1.msra.mxu0 %v1397
    %1524 = vmatprep.subr.mxu0 0.0
    %1525 = vmatpush1.msra.mxu0 %v1398
    %1526 = vmatprep.subr.mxu0 0.0
    %1527 = vmatpush1.msra.mxu0 %v1399
    %1528 = vmatprep.subr.mxu0 0.0
    %1529 = vmatpush1.msra.mxu0 0.0
    %1530 = vmatprep.subr.mxu0 0.0
    %1531 = vmatpush1.msra.mxu0 0.0
    %1532 = vmatprep.subr.mxu0 0.0
    %1533 = vmatpush1.msra.mxu0 0.0
    %1534 = vmatprep.subr.mxu0 0.0
    %1535 = vmatpush1.msra.mxu0 0.0
    %1536 = vmatprep.subr.mxu0 0.0
    %1537 = vmatpush1.msra.mxu0 0.0
    %1538 = vmatprep.subr.mxu0 0.0
    %1539 = vmatpush1.msra.mxu0 0.0
    %1540 = vmatprep.subr.mxu0 0.0
    %1541 = vmatpush1.msra.mxu0 0.0
    %1542 = vmatprep.subr.mxu0 0.0
    %1543 = vmatpush1.msra.mxu0 0.0
    %1544 = vmatprep.subr.mxu0 0.0
    %1545 = vmatpush1.msra.mxu0 0.0
    %1546 = vmatprep.subr.mxu0 0.0
    %1547 = vmatpush1.msra.mxu0 0.0
    %1548 = vmatprep.subr.mxu0 0.0
    %1549 = vmatpush1.msra.mxu0 0.0
    %1550 = vmatprep.subr.mxu0 0.0
    %1551 = vmatpush1.msra.mxu0 0.0
    %1552 = vmatprep.subr.mxu0 0.0
    %1553 = vmatpush1.msra.mxu0 0.0
    %1554 = vmatprep.subr.mxu0 0.0
    %1555 = vmatpush1.msra.mxu0 0.0
    %1556 = vmatprep.subr.mxu0 0.0
    %1557 = vmatpush1.msra.mxu0 0.0
    %1558 = vmatprep.subr.mxu0 0.0
    %1559 = vmatpush1.msra.mxu0 0.0
    %1560 = vmatprep.subr.mxu0 0.0
    %1561 = vmatpush1.msra.mxu0 0.0
    %1562 = vmatprep.subr.mxu0 0.0
    %1563 = vmatpush1.msra.mxu0 0.0
    %1564 = vmatprep.subr.mxu0 0.0
    %1565 = vmatpush1.msra.mxu0 0.0
    %1566 = vmatprep.subr.mxu0 0.0
    %1567 = vmatpush1.msra.mxu0 0.0
    %1568 = vmatprep.subr.mxu0 0.0
    %1569 = vmatpush1.msra.mxu0 0.0
    %1570 = vmatprep.subr.mxu0 0.0
    %1571 = vmatpush1.msra.mxu0 0.0
    %1572 = vmatprep.subr.mxu0 0.0
    %1573 = vmatpush1.msra.mxu0 0.0
    %1574 = vmatprep.subr.mxu0 0.0
    %1575 = vmatpush1.msra.mxu0 0.0
    %1576 = vmatprep.subr.mxu0 0.0
    %1577 = vmatpush1.msra.mxu0 0.0
    %1578 = vmatprep.subr.mxu0 0.0
    %1579 = vmatpush1.msra.mxu0 0.0
    %1580 = vmatprep.subr.mxu0 0.0
    %1581 = vmatpush1.msra.mxu0 0.0
    %1582 = vmatprep.subr.mxu0 0.0
    %1583 = vmatpush1.msra.mxu0 0.0
    %1584 = vmatprep.mubr.f32.mxu0 0.0
    %1585 = vmatmul.mubr.f32.gmra.mrb[0].mxu0 %v1436
    %v1586 = vpop.f32.mrb[0].mxu0
    %v1587 = vadd.f32 %v1519, %v1586
    %v1588 = vpop.f32.mrb[0].mxu0
    %1589 = vmatprep.mubr.f32.mxu0 0.0
    %1590 = vmatmul.mubr.f32.gmra.mrb[0].mxu0 %v1439
    %v1591 = vpop.f32.mrb[0].mxu0
    %v1592 = vadd.f32 %v1519, %v1591
    %v1593 = vpop.f32.mrb[0].mxu0
    %1594 = vdwg.mxu0
    %v1595 = vlaneseq
    %v1596 = vshrl.u32 %v1595, 7
    %v1597 = vsub.s32 0, %v1596
    %v1598 = vrot.slane %v1423, %v1597
    %1599 = vmatprep.subr.mxu0 0.0
    %1600 = vmatpush1.msra.mxu0 %v1400
    %1601 = vmatprep.subr.mxu0 0.0
    %1602 = vmatpush1.msra.mxu0 %v1401
    %1603 = vmatprep.subr.mxu0 0.0
    %1604 = vmatpush1.msra.mxu0 %v1402
    %1605 = vmatprep.subr.mxu0 0.0
    %1606 = vmatpush1.msra.mxu0 %v1403
    %1607 = vmatprep.subr.mxu0 0.0
    %1608 = vmatpush1.msra.mxu0 0.0
    %1609 = vmatprep.subr.mxu0 0.0
    %1610 = vmatpush1.msra.mxu0 0.0
    %1611 = vmatprep.subr.mxu0 0.0
    %1612 = vmatpush1.msra.mxu0 0.0
    %1613 = vmatprep.subr.mxu0 0.0
    %1614 = vmatpush1.msra.mxu0 0.0
    %1615 = vmatprep.subr.mxu0 0.0
    %1616 = vmatpush1.msra.mxu0 0.0
    %1617 = vmatprep.subr.mxu0 0.0
    %1618 = vmatpush1.msra.mxu0 0.0
    %1619 = vmatprep.subr.mxu0 0.0
    %1620 = vmatpush1.msra.mxu0 0.0
    %1621 = vmatprep.subr.mxu0 0.0
    %1622 = vmatpush1.msra.mxu0 0.0
    %1623 = vmatprep.subr.mxu0 0.0
    %1624 = vmatpush1.msra.mxu0 0.0
    %1625 = vmatprep.subr.mxu0 0.0
    %1626 = vmatpush1.msra.mxu0 0.0
    %1627 = vmatprep.subr.mxu0 0.0
    %1628 = vmatpush1.msra.mxu0 0.0
    %1629 = vmatprep.subr.mxu0 0.0
    %1630 = vmatpush1.msra.mxu0 0.0
    %1631 = vmatprep.subr.mxu0 0.0
    %1632 = vmatpush1.msra.mxu0 0.0
    %1633 = vmatprep.subr.mxu0 0.0
    %1634 = vmatpush1.msra.mxu0 0.0
    %1635 = vmatprep.subr.mxu0 0.0
    %1636 = vmatpush1.msra.mxu0 0.0
    %1637 = vmatprep.subr.mxu0 0.0
    %1638 = vmatpush1.msra.mxu0 0.0
    %1639 = vmatprep.subr.mxu0 0.0
    %1640 = vmatpush1.msra.mxu0 0.0
    %1641 = vmatprep.subr.mxu0 0.0
    %1642 = vmatpush1.msra.mxu0 0.0
    %1643 = vmatprep.subr.mxu0 0.0
    %1644 = vmatpush1.msra.mxu0 0.0
    %1645 = vmatprep.subr.mxu0 0.0
    %1646 = vmatpush1.msra.mxu0 0.0
    %1647 = vmatprep.subr.mxu0 0.0
    %1648 = vmatpush1.msra.mxu0 0.0
    %1649 = vmatprep.subr.mxu0 0.0
    %1650 = vmatpush1.msra.mxu0 0.0
    %1651 = vmatprep.subr.mxu0 0.0
    %1652 = vmatpush1.msra.mxu0 0.0
    %1653 = vmatprep.subr.mxu0 0.0
    %1654 = vmatpush1.msra.mxu0 0.0
    %1655 = vmatprep.subr.mxu0 0.0
    %1656 = vmatpush1.msra.mxu0 0.0
    %1657 = vmatprep.subr.mxu0 0.0
    %1658 = vmatpush1.msra.mxu0 0.0
    %1659 = vmatprep.subr.mxu0 0.0
    %1660 = vmatpush1.msra.mxu0 0.0
    %1661 = vmatprep.subr.mxu0 0.0
    %1662 = vmatpush1.msra.mxu0 0.0
    %1663 = vmatprep.mubr.f32.mxu0 0.0
    %1664 = vmatmul.mubr.f32.gmra.mrb[0].mxu0 %v1436
    %v1665 = vpop.f32.mrb[0].mxu0
    %v1666 = vadd.f32 %v1598, %v1665
    %v1667 = vpop.f32.mrb[0].mxu0
    %1668 = vmatprep.mubr.f32.mxu0 0.0
    %1669 = vmatmul.mubr.f32.gmra.mrb[0].mxu0 %v1439
    %v1670 = vpop.f32.mrb[0].mxu0
    %v1671 = vadd.f32 %v1598, %v1670
    %v1672 = vpop.f32.mrb[0].mxu0
    %1673 = vdwg.mxu0
    %1674 = vmatprep.subr.mxu0 0.0
    %1675 = vmatpush1.msra.mxu0 %v1508
    %1676 = vmatprep.subr.mxu0 0.0
    %1677 = vmatpush1.msra.mxu0 %v1513
    %1678 = vmatprep.subr.mxu0 0.0
    %1679 = vmatpush1.msra.mxu0 0.0
    %1680 = vmatprep.subr.mxu0 0.0
    %1681 = vmatpush1.msra.mxu0 0.0
    %1682 = vmatprep.subr.mxu0 0.0
    %1683 = vmatpush1.msra.mxu0 0.0
    %1684 = vmatprep.subr.mxu0 0.0
    %1685 = vmatpush1.msra.mxu0 0.0
    %1686 = vmatprep.subr.mxu0 0.0
    %1687 = vmatpush1.msra.mxu0 0.0
    %1688 = vmatprep.subr.mxu0 0.0
    %1689 = vmatpush1.msra.mxu0 0.0
    %1690 = vmatprep.subr.mxu0 0.0
    %1691 = vmatpush1.msra.mxu0 0.0
    %1692 = vmatprep.subr.mxu0 0.0
    %1693 = vmatpush1.msra.mxu0 0.0
    %1694 = vmatprep.subr.mxu0 0.0
    %1695 = vmatpush1.msra.mxu0 0.0
    %1696 = vmatprep.subr.mxu0 0.0
    %1697 = vmatpush1.msra.mxu0 0.0
    %1698 = vmatprep.subr.mxu0 0.0
    %1699 = vmatpush1.msra.mxu0 0.0
    %1700 = vmatprep.subr.mxu0 0.0
    %1701 = vmatpush1.msra.mxu0 0.0
    %1702 = vmatprep.subr.mxu0 0.0
    %1703 = vmatpush1.msra.mxu0 0.0
    %1704 = vmatprep.subr.mxu0 0.0
    %1705 = vmatpush1.msra.mxu0 0.0
    %1706 = vmatprep.subr.mxu0 0.0
    %1707 = vmatpush1.msra.mxu0 0.0
    %1708 = vmatprep.subr.mxu0 0.0
    %1709 = vmatpush1.msra.mxu0 0.0
    %1710 = vmatprep.subr.mxu0 0.0
    %1711 = vmatpush1.msra.mxu0 0.0
    %1712 = vmatprep.subr.mxu0 0.0
    %1713 = vmatpush1.msra.mxu0 0.0
    %1714 = vmatprep.subr.mxu0 0.0
    %1715 = vmatpush1.msra.mxu0 0.0
    %1716 = vmatprep.subr.mxu0 0.0
    %1717 = vmatpush1.msra.mxu0 0.0
    %1718 = vmatprep.subr.mxu0 0.0
    %1719 = vmatpush1.msra.mxu0 0.0
    %1720 = vmatprep.subr.mxu0 0.0
    %1721 = vmatpush1.msra.mxu0 0.0
    %1722 = vmatprep.subr.mxu0 0.0
    %1723 = vmatpush1.msra.mxu0 0.0
    %1724 = vmatprep.subr.mxu0 0.0
    %1725 = vmatpush1.msra.mxu0 0.0
    %1726 = vmatprep.subr.mxu0 0.0
    %1727 = vmatpush1.msra.mxu0 0.0
    %1728 = vmatprep.subr.mxu0 0.0
    %1729 = vmatpush1.msra.mxu0 0.0
    %1730 = vmatprep.subr.mxu0 0.0
    %1731 = vmatpush1.msra.mxu0 0.0
    %1732 = vmatprep.subr.mxu0 0.0
    %1733 = vmatpush1.msra.mxu0 0.0
    %1734 = vmatprep.subr.mxu0 0.0
    %1735 = vmatpush1.msra.mxu0 0.0
    %1736 = vmatprep.subr.mxu0 0.0
    %1737 = vmatpush1.msra.mxu0 0.0
    %1738 = vmatprep.mubr.f32.mxu0 0.0
    %1739 = vmatmul.mubr.f32.gmra.mrb[0].mxu0 %v475
    %v1740 = vpop.f32.mrb[0].mxu0
    %v1741 = vadd.f32 0.0, %v1740
    %v1742 = vpop.f32.mrb[0].mxu0
    %1743 = vmatprep.mubr.f32.mxu0 0.0
    %1744 = vmatmul.mubr.f32.gmra.mrb[0].mxu0 %v478
    %v1745 = vpop.f32.mrb[0].mxu0
    %v1746 = vadd.f32 0.0, %v1745
    %v1747 = vpop.f32.mrb[0].mxu0
    %1748 = vmatprep.mubr.f32.mxu0 0.0
    %1749 = vmatmul.mubr.f32.gmra.mrb[0].mxu0 %v481
    %v1750 = vpop.f32.mrb[0].mxu0
    %v1751 = vadd.f32 0.0, %v1750
    %v1752 = vpop.f32.mrb[0].mxu0
    %1753 = vmatprep.mubr.f32.mxu0 0.0
    %1754 = vmatmul.mubr.f32.gmra.mrb[0].mxu0 %v484
    %v1755 = vpop.f32.mrb[0].mxu0
    %v1756 = vadd.f32 0.0, %v1755
    %v1757 = vpop.f32.mrb[0].mxu0
    %1758 = vmatprep.mubr.f32.mxu0 0.0
    %1759 = vmatmul.mubr.f32.gmra.mrb[0].mxu0 %v487
    %v1760 = vpop.f32.mrb[0].mxu0
    %v1761 = vadd.f32 0.0, %v1760
    %v1762 = vpop.f32.mrb[0].mxu0
    %1763 = vmatprep.mubr.f32.mxu0 0.0
    %1764 = vmatmul.mubr.f32.gmra.mrb[0].mxu0 %v490
    %v1765 = vpop.f32.mrb[0].mxu0
    %v1766 = vadd.f32 0.0, %v1765
    %v1767 = vpop.f32.mrb[0].mxu0
    %1768 = vmatprep.mubr.f32.mxu0 0.0
    %1769 = vmatmul.mubr.f32.gmra.mrb[0].mxu0 %v493
    %v1770 = vpop.f32.mrb[0].mxu0
    %v1771 = vadd.f32 0.0, %v1770
    %v1772 = vpop.f32.mrb[0].mxu0
    %1773 = vmatprep.mubr.f32.mxu0 0.0
    %1774 = vmatmul.mubr.f32.gmra.mrb[0].mxu0 %v496
    %v1775 = vpop.f32.mrb[0].mxu0
    %v1776 = vadd.f32 0.0, %v1775
    %v1777 = vpop.f32.mrb[0].mxu0
    %1778 = vdwg.mxu0
    %v1779 = vmul.f32 %v1741, %v77
    %v1780 = vmul.f32 %v1746, %v78
    %v1781 = vmul.f32 %v1751, %v79
    %v1782 = vmul.f32 %v1756, %v80
    %v1783 = vmul.f32 %v1761, %v81
    %v1784 = vmul.f32 %v1766, %v82
    %v1785 = vmul.f32 %v1771, %v83
    %v1786 = vmul.f32 %v1776, %v84
    %v1788 = vsel %vm233, %v1779, 0
    %v1791 = vsel %vm233, %v1780, 0
    %v1794 = vsel %vm233, %v1781, 0
    %v1797 = vsel %vm233, %v1782, 0
    %v1800 = vsel %vm233, %v1783, 0
    %v1803 = vsel %vm233, %v1784, 0
    %v1806 = vsel %vm233, %v1785, 0
    %v1809 = vsel %vm233, %v1786, 0
    %v1812 = vsel %vm233, %v1587, 0
    %v1815 = vsel %vm233, %v1592, 0
    %1817 = vmatprep.subr.mxu0 0.0
    %1818 = vmatpush1.xpose.msra.mxu0 %v1812
    %1819 = vmatprep.subr.mxu0 0.0
    %1820 = vmatpush1.xpose.msra.mxu0 %v1815
    %1821 = vmatprep.subr.mxu0 0.0
    %1822 = vmatpush1.xpose.msra.mxu0 0.0
    %1823 = vmatprep.subr.mxu0 0.0
    %1824 = vmatpush1.xpose.msra.mxu0 0.0
    %1825 = vmatprep.subr.mxu0 0.0
    %1826 = vmatpush1.xpose.msra.mxu0 0.0
    %1827 = vmatprep.subr.mxu0 0.0
    %1828 = vmatpush1.xpose.msra.mxu0 0.0
    %1829 = vmatprep.subr.mxu0 0.0
    %1830 = vmatpush1.xpose.msra.mxu0 0.0
    %1831 = vmatprep.subr.mxu0 0.0
    %1832 = vmatpush1.xpose.msra.mxu0 0.0
    %1833 = vmatprep.subr.mxu0 0.0
    %1834 = vmatpush1.xpose.msra.mxu0 0.0
    %1835 = vmatprep.subr.mxu0 0.0
    %1836 = vmatpush1.xpose.msra.mxu0 0.0
    %1837 = vmatprep.subr.mxu0 0.0
    %1838 = vmatpush1.xpose.msra.mxu0 0.0
    %1839 = vmatprep.subr.mxu0 0.0
    %1840 = vmatpush1.xpose.msra.mxu0 0.0
    %1841 = vmatprep.subr.mxu0 0.0
    %1842 = vmatpush1.xpose.msra.mxu0 0.0
    %1843 = vmatprep.subr.mxu0 0.0
    %1844 = vmatpush1.xpose.msra.mxu0 0.0
    %1845 = vmatprep.subr.mxu0 0.0
    %1846 = vmatpush1.xpose.msra.mxu0 0.0
    %1847 = vmatprep.subr.mxu0 0.0
    %1848 = vmatpush1.xpose.msra.mxu0 0.0
    %1849 = vmatprep.subr.mxu0 0.0
    %1850 = vmatpush1.xpose.msra.mxu0 0.0
    %1851 = vmatprep.subr.mxu0 0.0
    %1852 = vmatpush1.xpose.msra.mxu0 0.0
    %1853 = vmatprep.subr.mxu0 0.0
    %1854 = vmatpush1.xpose.msra.mxu0 0.0
    %1855 = vmatprep.subr.mxu0 0.0
    %1856 = vmatpush1.xpose.msra.mxu0 0.0
    %1857 = vmatprep.subr.mxu0 0.0
    %1858 = vmatpush1.xpose.msra.mxu0 0.0
    %1859 = vmatprep.subr.mxu0 0.0
    %1860 = vmatpush1.xpose.msra.mxu0 0.0
    %1861 = vmatprep.subr.mxu0 0.0
    %1862 = vmatpush1.xpose.msra.mxu0 0.0
    %1863 = vmatprep.subr.mxu0 0.0
    %1864 = vmatpush1.xpose.msra.mxu0 0.0
    %1865 = vmatprep.subr.mxu0 0.0
    %1866 = vmatpush1.xpose.msra.mxu0 0.0
    %1867 = vmatprep.subr.mxu0 0.0
    %1868 = vmatpush1.xpose.msra.mxu0 0.0
    %1869 = vmatprep.subr.mxu0 0.0
    %1870 = vmatpush1.xpose.msra.mxu0 0.0
    %1871 = vmatprep.subr.mxu0 0.0
    %1872 = vmatpush1.xpose.msra.mxu0 0.0
    %1873 = vmatprep.subr.mxu0 0.0
    %1874 = vmatpush1.xpose.msra.mxu0 0.0
    %1875 = vmatprep.subr.mxu0 0.0
    %1876 = vmatpush1.xpose.msra.mxu0 0.0
    %1877 = vmatprep.subr.mxu0 0.0
    %1878 = vmatpush1.xpose.msra.mxu0 0.0
    %1879 = vmatprep.subr.mxu0 0.0
    %1880 = vmatpush1.xpose.msra.mxu0 0.0
    %1881 = vmatprep.mubr.f32.mxu0 0.0
    %1882 = vmatmul.mubr.f32.gmra.mrb[0].mxu0 %v1788
    %v1883 = vpop.f32.mrb[0].mxu0
    %v1884 = vadd.f32 %v85, %v1883
    %v1885 = vpop.f32.mrb[0].mxu0
    %1886 = vmatprep.mubr.f32.mxu0 0.0
    %1887 = vmatmul.mubr.f32.gmra.mrb[0].mxu0 %v1791
    %v1888 = vpop.f32.mrb[0].mxu0
    %v1889 = vadd.f32 %v86, %v1888
    %v1890 = vpop.f32.mrb[0].mxu0
    %1891 = vmatprep.mubr.f32.mxu0 0.0
    %1892 = vmatmul.mubr.f32.gmra.mrb[0].mxu0 %v1794
    %v1893 = vpop.f32.mrb[0].mxu0
    %v1894 = vadd.f32 %v87, %v1893
    %v1895 = vpop.f32.mrb[0].mxu0
    %1896 = vmatprep.mubr.f32.mxu0 0.0
    %1897 = vmatmul.mubr.f32.gmra.mrb[0].mxu0 %v1797
    %v1898 = vpop.f32.mrb[0].mxu0
    %v1899 = vadd.f32 %v88, %v1898
    %v1900 = vpop.f32.mrb[0].mxu0
    %1901 = vmatprep.mubr.f32.mxu0 0.0
    %1902 = vmatmul.mubr.f32.gmra.mrb[0].mxu0 %v1800
    %v1903 = vpop.f32.mrb[0].mxu0
    %v1904 = vadd.f32 %v89, %v1903
    %v1905 = vpop.f32.mrb[0].mxu0
    %1906 = vmatprep.mubr.f32.mxu0 0.0
    %1907 = vmatmul.mubr.f32.gmra.mrb[0].mxu0 %v1803
    %v1908 = vpop.f32.mrb[0].mxu0
    %v1909 = vadd.f32 %v90, %v1908
    %v1910 = vpop.f32.mrb[0].mxu0
    %1911 = vmatprep.mubr.f32.mxu0 0.0
    %1912 = vmatmul.mubr.f32.gmra.mrb[0].mxu0 %v1806
    %v1913 = vpop.f32.mrb[0].mxu0
    %v1914 = vadd.f32 %v91, %v1913
    %v1915 = vpop.f32.mrb[0].mxu0
    %1916 = vmatprep.mubr.f32.mxu0 0.0
    %1917 = vmatmul.mubr.f32.gmra.mrb[0].mxu0 %v1809
    %v1918 = vpop.f32.mrb[0].mxu0
    %v1919 = vadd.f32 %v92, %v1918
    %v1920 = vpop.f32.mrb[0].mxu0
    %1921 = vdwg.mxu0
    %v1922 = vsel %vm473, %v1884, -inf
    %1923 = vmax.xlane.f32.xlu0 %v1922
    %v1924 = vpop.xlane.xlu0 %1923
    %v1925 = vsel %vm473, %v1889, -inf
    %1926 = vmax.xlane.f32.xlu0 %v1925
    %v1927 = vpop.xlane.xlu0 %1926
    %v1928 = vsel %vm473, %v1894, -inf
    %1929 = vmax.xlane.f32.xlu0 %v1928
    %v1930 = vpop.xlane.xlu0 %1929
    %v1931 = vsel %vm473, %v1899, -inf
    %1932 = vmax.xlane.f32.xlu0 %v1931
    %v1933 = vpop.xlane.xlu0 %1932
    %v1934 = vsel %vm473, %v1904, -inf
    %1935 = vmax.xlane.f32.xlu0 %v1934
    %v1936 = vpop.xlane.xlu0 %1935
    %v1937 = vsel %vm473, %v1909, -inf
    %1938 = vmax.xlane.f32.xlu0 %v1937
    %v1939 = vpop.xlane.xlu0 %1938
    %v1940 = vsel %vm473, %v1914, -inf
    %1941 = vmax.xlane.f32.xlu0 %v1940
    %v1942 = vpop.xlane.xlu0 %1941
    %v1943 = vsel %vm473, %v1919, -inf
    %1944 = vmax.xlane.f32.xlu0 %v1943
    %v1945 = vpop.xlane.xlu0 %1944
    %v1946 = vsub.f32 %v1884, %v1924
    %v1947 = vsub.f32 %v1889, %v1927
    %v1948 = vsub.f32 %v1894, %v1930
    %v1949 = vsub.f32 %v1899, %v1933
    %v1950 = vsub.f32 %v1904, %v1936
    %v1951 = vsub.f32 %v1909, %v1939
    %v1952 = vsub.f32 %v1914, %v1942
    %v1953 = vsub.f32 %v1919, %v1945
    %v1954 = vmul.f32 %v1946, 1.442695
    %v1955 = vpow.pop %v1954
    %v1956 = vmul.f32 %v1947, 1.442695
    %v1957 = vpow.pop %v1956
    %v1958 = vmul.f32 %v1948, 1.442695
    %v1959 = vpow.pop %v1958
    %v1960 = vmul.f32 %v1949, 1.442695
    %v1961 = vpow.pop %v1960
    %v1962 = vmul.f32 %v1950, 1.442695
    %v1963 = vpow.pop %v1962
    %v1964 = vmul.f32 %v1951, 1.442695
    %v1965 = vpow.pop %v1964
    %v1966 = vmul.f32 %v1952, 1.442695
    %v1967 = vpow.pop %v1966
    %v1968 = vmul.f32 %v1953, 1.442695
    %v1969 = vpow.pop %v1968
    %v1970 = vsel %vm473, %v1955, 0.0
    %1971 = vadd.xlane.f32.xlu0 %v1970
    %v1972 = vpop.xlane.xlu0 %1971
    %v1973 = vsel %vm473, %v1957, 0.0
    %1974 = vadd.xlane.f32.xlu0 %v1973
    %v1975 = vpop.xlane.xlu0 %1974
    %v1976 = vsel %vm473, %v1959, 0.0
    %1977 = vadd.xlane.f32.xlu0 %v1976
    %v1978 = vpop.xlane.xlu0 %1977
    %v1979 = vsel %vm473, %v1961, 0.0
    %1980 = vadd.xlane.f32.xlu0 %v1979
    %v1981 = vpop.xlane.xlu0 %1980
    %v1982 = vsel %vm473, %v1963, 0.0
    %1983 = vadd.xlane.f32.xlu0 %v1982
    %v1984 = vpop.xlane.xlu0 %1983
    %v1985 = vsel %vm473, %v1965, 0.0
    %1986 = vadd.xlane.f32.xlu0 %v1985
    %v1987 = vpop.xlane.xlu0 %1986
    %v1988 = vsel %vm473, %v1967, 0.0
    %1989 = vadd.xlane.f32.xlu0 %v1988
    %v1990 = vpop.xlane.xlu0 %1989
    %v1991 = vsel %vm473, %v1969, 0.0
    %1992 = vadd.xlane.f32.xlu0 %v1991
    %v1993 = vpop.xlane.xlu0 %1992
    %v1994 = vrcp.pop %v1972
    %v1995 = vmul.f32 %v1955, %v1994
    %v1996 = vrcp.pop %v1975
    %v1997 = vmul.f32 %v1957, %v1996
    %v1998 = vrcp.pop %v1978
    %v1999 = vmul.f32 %v1959, %v1998
    %v2000 = vrcp.pop %v1981
    %v2001 = vmul.f32 %v1961, %v2000
    %v2002 = vrcp.pop %v1984
    %v2003 = vmul.f32 %v1963, %v2002
    %v2004 = vrcp.pop %v1987
    %v2005 = vmul.f32 %v1965, %v2004
    %v2006 = vrcp.pop %v1990
    %v2007 = vmul.f32 %v1967, %v2006
    %v2008 = vrcp.pop %v1993
    %v2009 = vmul.f32 %v1969, %v2008
    %v2011 = vsel %vm473, %v1995, 0
    %v2014 = vsel %vm473, %v1997, 0
    %v2017 = vsel %vm473, %v1999, 0
    %v2020 = vsel %vm473, %v2001, 0
    %v2023 = vsel %vm473, %v2003, 0
    %v2026 = vsel %vm473, %v2005, 0
    %v2029 = vsel %vm473, %v2007, 0
    %v2032 = vsel %vm473, %v2009, 0
    %2034 = vmatprep.subr.mxu0 0.0
    %2035 = vmatpush1.msra.mxu0 %v1666
    %2036 = vmatprep.subr.mxu0 0.0
    %2037 = vmatpush1.msra.mxu0 %v1671
    %2038 = vmatprep.subr.mxu0 0.0
    %2039 = vmatpush1.msra.mxu0 0.0
    %2040 = vmatprep.subr.mxu0 0.0
    %2041 = vmatpush1.msra.mxu0 0.0
    %2042 = vmatprep.subr.mxu0 0.0
    %2043 = vmatpush1.msra.mxu0 0.0
    %2044 = vmatprep.subr.mxu0 0.0
    %2045 = vmatpush1.msra.mxu0 0.0
    %2046 = vmatprep.subr.mxu0 0.0
    %2047 = vmatpush1.msra.mxu0 0.0
    %2048 = vmatprep.subr.mxu0 0.0
    %2049 = vmatpush1.msra.mxu0 0.0
    %2050 = vmatprep.subr.mxu0 0.0
    %2051 = vmatpush1.msra.mxu0 0.0
    %2052 = vmatprep.subr.mxu0 0.0
    %2053 = vmatpush1.msra.mxu0 0.0
    %2054 = vmatprep.subr.mxu0 0.0
    %2055 = vmatpush1.msra.mxu0 0.0
    %2056 = vmatprep.subr.mxu0 0.0
    %2057 = vmatpush1.msra.mxu0 0.0
    %2058 = vmatprep.subr.mxu0 0.0
    %2059 = vmatpush1.msra.mxu0 0.0
    %2060 = vmatprep.subr.mxu0 0.0
    %2061 = vmatpush1.msra.mxu0 0.0
    %2062 = vmatprep.subr.mxu0 0.0
    %2063 = vmatpush1.msra.mxu0 0.0
    %2064 = vmatprep.subr.mxu0 0.0
    %2065 = vmatpush1.msra.mxu0 0.0
    %2066 = vmatprep.subr.mxu0 0.0
    %2067 = vmatpush1.msra.mxu0 0.0
    %2068 = vmatprep.subr.mxu0 0.0
    %2069 = vmatpush1.msra.mxu0 0.0
    %2070 = vmatprep.subr.mxu0 0.0
    %2071 = vmatpush1.msra.mxu0 0.0
    %2072 = vmatprep.subr.mxu0 0.0
    %2073 = vmatpush1.msra.mxu0 0.0
    %2074 = vmatprep.subr.mxu0 0.0
    %2075 = vmatpush1.msra.mxu0 0.0
    %2076 = vmatprep.subr.mxu0 0.0
    %2077 = vmatpush1.msra.mxu0 0.0
    %2078 = vmatprep.subr.mxu0 0.0
    %2079 = vmatpush1.msra.mxu0 0.0
    %2080 = vmatprep.subr.mxu0 0.0
    %2081 = vmatpush1.msra.mxu0 0.0
    %2082 = vmatprep.subr.mxu0 0.0
    %2083 = vmatpush1.msra.mxu0 0.0
    %2084 = vmatprep.subr.mxu0 0.0
    %2085 = vmatpush1.msra.mxu0 0.0
    %2086 = vmatprep.subr.mxu0 0.0
    %2087 = vmatpush1.msra.mxu0 0.0
    %2088 = vmatprep.subr.mxu0 0.0
    %2089 = vmatpush1.msra.mxu0 0.0
    %2090 = vmatprep.subr.mxu0 0.0
    %2091 = vmatpush1.msra.mxu0 0.0
    %2092 = vmatprep.subr.mxu0 0.0
    %2093 = vmatpush1.msra.mxu0 0.0
    %2094 = vmatprep.subr.mxu0 0.0
    %2095 = vmatpush1.msra.mxu0 0.0
    %2096 = vmatprep.subr.mxu0 0.0
    %2097 = vmatpush1.msra.mxu0 0.0
    %2098 = vmatprep.mubr.f32.mxu0 0.0
    %2099 = vmatmul.mubr.f32.gmra.mrb[0].mxu0 %v2011
    %v2100 = vpop.f32.mrb[0].mxu0
    %v2101 = vadd.f32 0.0, %v2100
    %v2102 = vpop.f32.mrb[0].mxu0
    %2103 = vmatprep.mubr.f32.mxu0 0.0
    %2104 = vmatmul.mubr.f32.gmra.mrb[0].mxu0 %v2014
    %v2105 = vpop.f32.mrb[0].mxu0
    %v2106 = vadd.f32 0.0, %v2105
    %v2107 = vpop.f32.mrb[0].mxu0
    %2108 = vmatprep.mubr.f32.mxu0 0.0
    %2109 = vmatmul.mubr.f32.gmra.mrb[0].mxu0 %v2017
    %v2110 = vpop.f32.mrb[0].mxu0
    %v2111 = vadd.f32 0.0, %v2110
    %v2112 = vpop.f32.mrb[0].mxu0
    %2113 = vmatprep.mubr.f32.mxu0 0.0
    %2114 = vmatmul.mubr.f32.gmra.mrb[0].mxu0 %v2020
    %v2115 = vpop.f32.mrb[0].mxu0
    %v2116 = vadd.f32 0.0, %v2115
    %v2117 = vpop.f32.mrb[0].mxu0
    %2118 = vmatprep.mubr.f32.mxu0 0.0
    %2119 = vmatmul.mubr.f32.gmra.mrb[0].mxu0 %v2023
    %v2120 = vpop.f32.mrb[0].mxu0
    %v2121 = vadd.f32 0.0, %v2120
    %v2122 = vpop.f32.mrb[0].mxu0
    %2123 = vmatprep.mubr.f32.mxu0 0.0
    %2124 = vmatmul.mubr.f32.gmra.mrb[0].mxu0 %v2026
    %v2125 = vpop.f32.mrb[0].mxu0
    %v2126 = vadd.f32 0.0, %v2125
    %v2127 = vpop.f32.mrb[0].mxu0
    %2128 = vmatprep.mubr.f32.mxu0 0.0
    %2129 = vmatmul.mubr.f32.gmra.mrb[0].mxu0 %v2029
    %v2130 = vpop.f32.mrb[0].mxu0
    %v2131 = vadd.f32 0.0, %v2130
    %v2132 = vpop.f32.mrb[0].mxu0
    %2133 = vmatprep.mubr.f32.mxu0 0.0
    %2134 = vmatmul.mubr.f32.gmra.mrb[0].mxu0 %v2032
    %v2135 = vpop.f32.mrb[0].mxu0
    %v2136 = vadd.f32 0.0, %v2135
    %v2137 = vpop.f32.mrb[0].mxu0
    %2138 = vdwg.mxu0
    %v2139 = vmul.f32 %v2101, %v77
    %v2140 = vmul.f32 %v2106, %v78
    %v2141 = vmul.f32 %v2111, %v79
    %v2142 = vmul.f32 %v2116, %v80
    %v2143 = vmul.f32 %v2121, %v81
    %v2144 = vmul.f32 %v2126, %v82
    %v2145 = vmul.f32 %v2131, %v83
    %v2146 = vmul.f32 %v2136, %v84
    %2147 = vmatprep.subr.mxu0 0.0
    %2148 = vmatpush1.msra.mxu0 %v2139
    %2149 = vmatprep.subr.mxu0 0.0
    %2150 = vmatpush1.msra.mxu0 %v2140
    %2151 = vmatprep.subr.mxu0 0.0
    %2152 = vmatpush1.msra.mxu0 %v2141
    %2153 = vmatprep.subr.mxu0 0.0
    %2154 = vmatpush1.msra.mxu0 %v2142
    %2155 = vmatprep.subr.mxu0 0.0
    %2156 = vmatpush1.msra.mxu0 %v2143
    %2157 = vmatprep.subr.mxu0 0.0
    %2158 = vmatpush1.msra.mxu0 %v2144
    %2159 = vmatprep.subr.mxu0 0.0
    %2160 = vmatpush1.msra.mxu0 %v2145
    %2161 = vmatprep.subr.mxu0 0.0
    %2162 = vmatpush1.msra.mxu0 %v2146
    %2163 = vmatprep.subr.mxu0 0.0
    %2164 = vmatpush1.msra.mxu0 0.0
    %2165 = vmatprep.subr.mxu0 0.0
    %2166 = vmatpush1.msra.mxu0 0.0
    %2167 = vmatprep.subr.mxu0 0.0
    %2168 = vmatpush1.msra.mxu0 0.0
    %2169 = vmatprep.subr.mxu0 0.0
    %2170 = vmatpush1.msra.mxu0 0.0
    %2171 = vmatprep.subr.mxu0 0.0
    %2172 = vmatpush1.msra.mxu0 0.0
    %2173 = vmatprep.subr.mxu0 0.0
    %2174 = vmatpush1.msra.mxu0 0.0
    %2175 = vmatprep.subr.mxu0 0.0
    %2176 = vmatpush1.msra.mxu0 0.0
    %2177 = vmatprep.subr.mxu0 0.0
    %2178 = vmatpush1.msra.mxu0 0.0
    %2179 = vmatprep.subr.mxu0 0.0
    %2180 = vmatpush1.msra.mxu0 0.0
    %2181 = vmatprep.subr.mxu0 0.0
    %2182 = vmatpush1.msra.mxu0 0.0
    %2183 = vmatprep.subr.mxu0 0.0
    %2184 = vmatpush1.msra.mxu0 0.0
    %2185 = vmatprep.subr.mxu0 0.0
    %2186 = vmatpush1.msra.mxu0 0.0
    %2187 = vmatprep.subr.mxu0 0.0
    %2188 = vmatpush1.msra.mxu0 0.0
    %2189 = vmatprep.subr.mxu0 0.0
    %2190 = vmatpush1.msra.mxu0 0.0
    %2191 = vmatprep.subr.mxu0 0.0
    %2192 = vmatpush1.msra.mxu0 0.0
    %2193 = vmatprep.subr.mxu0 0.0
    %2194 = vmatpush1.msra.mxu0 0.0
    %2195 = vmatprep.subr.mxu0 0.0
    %2196 = vmatpush1.msra.mxu0 0.0
    %2197 = vmatprep.subr.mxu0 0.0
    %2198 = vmatpush1.msra.mxu0 0.0
    %2199 = vmatprep.subr.mxu0 0.0
    %2200 = vmatpush1.msra.mxu0 0.0
    %2201 = vmatprep.subr.mxu0 0.0
    %2202 = vmatpush1.msra.mxu0 0.0
    %2203 = vmatprep.subr.mxu0 0.0
    %2204 = vmatpush1.msra.mxu0 0.0
    %2205 = vmatprep.subr.mxu0 0.0
    %2206 = vmatpush1.msra.mxu0 0.0
    %2207 = vmatprep.subr.mxu0 0.0
    %2208 = vmatpush1.msra.mxu0 0.0
    %2209 = vmatprep.subr.mxu0 0.0
    %2210 = vmatpush1.msra.mxu0 0.0
    %2211 = vmatprep.mubr.f32.mxu0 0.0
    %2212 = vmatmul.mubr.f32.gmra.mrb[0].mxu0 %v973
    %v2213 = vpop.f32.mrb[0].mxu0
    %v2214 = vadd.f32 0.0, %v2213
    %v2215 = vpop.f32.mrb[0].mxu0
    %2216 = vmatprep.mubr.f32.mxu0 0.0
    %2217 = vmatmul.mubr.f32.gmra.mrb[0].mxu0 %v976
    %v2218 = vpop.f32.mrb[0].mxu0
    %v2219 = vadd.f32 0.0, %v2218
    %v2220 = vpop.f32.mrb[0].mxu0
    %2221 = vdwg.mxu0
    %v2222 = vlaneseq
    %v2223 = vshrl.u32 %v2222, 7
    %v2224 = vsub.s32 0, %v2223
    %v2225 = vrot.slane %v1424, %v2224
    %v2227 = vsel %vm233, %v2214, 0
    %v2230 = vsel %vm233, %v2219, 0
    %2232 = vmatprep.subr.mxu0 0.0
    %2233 = vmatpush1.msra.mxu0 %v1404
    %2234 = vmatprep.subr.mxu0 0.0
    %2235 = vmatpush1.msra.mxu0 %v1405
    %2236 = vmatprep.subr.mxu0 0.0
    %2237 = vmatpush1.msra.mxu0 %v1406
    %2238 = vmatprep.subr.mxu0 0.0
    %2239 = vmatpush1.msra.mxu0 %v1407
    %2240 = vmatprep.subr.mxu0 0.0
    %2241 = vmatpush1.msra.mxu0 0.0
    %2242 = vmatprep.subr.mxu0 0.0
    %2243 = vmatpush1.msra.mxu0 0.0
    %2244 = vmatprep.subr.mxu0 0.0
    %2245 = vmatpush1.msra.mxu0 0.0
    %2246 = vmatprep.subr.mxu0 0.0
    %2247 = vmatpush1.msra.mxu0 0.0
    %2248 = vmatprep.subr.mxu0 0.0
    %2249 = vmatpush1.msra.mxu0 0.0
    %2250 = vmatprep.subr.mxu0 0.0
    %2251 = vmatpush1.msra.mxu0 0.0
    %2252 = vmatprep.subr.mxu0 0.0
    %2253 = vmatpush1.msra.mxu0 0.0
    %2254 = vmatprep.subr.mxu0 0.0
    %2255 = vmatpush1.msra.mxu0 0.0
    %2256 = vmatprep.subr.mxu0 0.0
    %2257 = vmatpush1.msra.mxu0 0.0
    %2258 = vmatprep.subr.mxu0 0.0
    %2259 = vmatpush1.msra.mxu0 0.0
    %2260 = vmatprep.subr.mxu0 0.0
    %2261 = vmatpush1.msra.mxu0 0.0
    %2262 = vmatprep.subr.mxu0 0.0
    %2263 = vmatpush1.msra.mxu0 0.0
    %2264 = vmatprep.subr.mxu0 0.0
    %2265 = vmatpush1.msra.mxu0 0.0
    %2266 = vmatprep.subr.mxu0 0.0
    %2267 = vmatpush1.msra.mxu0 0.0
    %2268 = vmatprep.subr.mxu0 0.0
    %2269 = vmatpush1.msra.mxu0 0.0
    %2270 = vmatprep.subr.mxu0 0.0
    %2271 = vmatpush1.msra.mxu0 0.0
    %2272 = vmatprep.subr.mxu0 0.0
    %2273 = vmatpush1.msra.mxu0 0.0
    %2274 = vmatprep.subr.mxu0 0.0
    %2275 = vmatpush1.msra.mxu0 0.0
    %2276 = vmatprep.subr.mxu0 0.0
    %2277 = vmatpush1.msra.mxu0 0.0
    %2278 = vmatprep.subr.mxu0 0.0
    %2279 = vmatpush1.msra.mxu0 0.0
    %2280 = vmatprep.subr.mxu0 0.0
    %2281 = vmatpush1.msra.mxu0 0.0
    %2282 = vmatprep.subr.mxu0 0.0
    %2283 = vmatpush1.msra.mxu0 0.0
    %2284 = vmatprep.subr.mxu0 0.0
    %2285 = vmatpush1.msra.mxu0 0.0
    %2286 = vmatprep.subr.mxu0 0.0
    %2287 = vmatpush1.msra.mxu0 0.0
    %2288 = vmatprep.subr.mxu0 0.0
    %2289 = vmatpush1.msra.mxu0 0.0
    %2290 = vmatprep.subr.mxu0 0.0
    %2291 = vmatpush1.msra.mxu0 0.0
    %2292 = vmatprep.subr.mxu0 0.0
    %2293 = vmatpush1.msra.mxu0 0.0
    %2294 = vmatprep.subr.mxu0 0.0
    %2295 = vmatpush1.msra.mxu0 0.0
    %2296 = vmatprep.mubr.f32.mxu0 0.0
    %2297 = vmatmul.mubr.f32.gmra.mrb[0].mxu0 %v2227
    %v2298 = vpop.f32.mrb[0].mxu0
    %v2299 = vadd.f32 %v2225, %v2298
    %v2300 = vpop.f32.mrb[0].mxu0
    %2301 = vmatprep.mubr.f32.mxu0 0.0
    %2302 = vmatmul.mubr.f32.gmra.mrb[0].mxu0 %v2230
    %v2303 = vpop.f32.mrb[0].mxu0
    %v2304 = vadd.f32 %v2225, %v2303
    %v2305 = vpop.f32.mrb[0].mxu0
    %2306 = vdwg.mxu0
    %v2307 = vadd.f32 %v1389, %v2299
    %v2308 = vadd.f32 %v1390, %v2304
    %v2309 = vsel %vm233, %v2307, 0.0
    %2310 = vadd.xlane.f32.xlu0 %v2309
    %v2311 = vpop.xlane.xlu0 %2310
    %v2312 = vsel %vm233, %v2308, 0.0
    %2313 = vadd.xlane.f32.xlu0 %v2312
    %v2314 = vpop.xlane.xlu0 %2313
    %v2315 = vmul.f32 %v2311, %v1146
    %v2316 = vmul.f32 %v2314, %v1146
    %v2317 = vsub.f32 %v2307, %v2315
    %v2318 = vsub.f32 %v2308, %v2316
    %v2319 = vmul.f32 %v2317, %v2317
    %v2320 = vmul.f32 %v2318, %v2318
    %v2321 = vsel %vm233, %v2319, 0.0
    %2322 = vadd.xlane.f32.xlu0 %v2321
    %v2323 = vpop.xlane.xlu0 %2322
    %v2324 = vsel %vm233, %v2320, 0.0
    %2325 = vadd.xlane.f32.xlu0 %v2324
    %v2326 = vpop.xlane.xlu0 %2325
    %v2327 = vmul.f32 %v2323, %v1146
    %v2328 = vmul.f32 %v2326, %v1146
    %v2329 = vadd.f32 %v2327, 1e-05
    %v2330 = vadd.f32 %v2328, 1e-05
    %v2331 = vrsqrt.pop %v2329
    %v2332 = vrsqrt.pop %v2330
    %v2333 = vmul.f32 %v2317, %v2331
    %v2334 = vmul.f32 %v2318, %v2332
    %v2335 = vlaneseq
    %v2336 = vshrl.u32 %v2335, 7
    %v2337 = vsub.s32 0, %v2336
    %v2338 = vrot.slane %v1427, %v2337
    %v2339 = vmul.f32 %v2333, %v2338
    %v2340 = vmul.f32 %v2334, %v2338
    %v2341 = vlaneseq
    %v2342 = vshrl.u32 %v2341, 7
    %v2343 = vsub.s32 0, %v2342
    %v2344 = vrot.slane %v1428, %v2343
    %v2345 = vadd.f32 %v2339, %v2344
    %v2346 = vadd.f32 %v2340, %v2344
    %v2347 = vlaneseq
    %v2348 = vshrl.u32 %v2347, 7
    %v2349 = vsub.s32 0, %v2348
    %v2350 = vrot.slane %v1425, %v2349
    %v2352 = vsel %vm233, %v2345, 0
    %v2355 = vsel %vm233, %v2346, 0
    %2357 = vmatprep.subr.mxu0 0.0
    %2358 = vmatpush1.msra.mxu0 %v1408
    %2359 = vmatprep.subr.mxu0 0.0
    %2360 = vmatpush1.msra.mxu0 %v1409
    %2361 = vmatprep.subr.mxu0 0.0
    %2362 = vmatpush1.msra.mxu0 %v1410
    %2363 = vmatprep.subr.mxu0 0.0
    %2364 = vmatpush1.msra.mxu0 %v1411
    %2365 = vmatprep.subr.mxu0 0.0
    %2366 = vmatpush1.msra.mxu0 0.0
    %2367 = vmatprep.subr.mxu0 0.0
    %2368 = vmatpush1.msra.mxu0 0.0
    %2369 = vmatprep.subr.mxu0 0.0
    %2370 = vmatpush1.msra.mxu0 0.0
    %2371 = vmatprep.subr.mxu0 0.0
    %2372 = vmatpush1.msra.mxu0 0.0
    %2373 = vmatprep.subr.mxu0 0.0
    %2374 = vmatpush1.msra.mxu0 0.0
    %2375 = vmatprep.subr.mxu0 0.0
    %2376 = vmatpush1.msra.mxu0 0.0
    %2377 = vmatprep.subr.mxu0 0.0
    %2378 = vmatpush1.msra.mxu0 0.0
    %2379 = vmatprep.subr.mxu0 0.0
    %2380 = vmatpush1.msra.mxu0 0.0
    %2381 = vmatprep.subr.mxu0 0.0
    %2382 = vmatpush1.msra.mxu0 0.0
    %2383 = vmatprep.subr.mxu0 0.0
    %2384 = vmatpush1.msra.mxu0 0.0
    %2385 = vmatprep.subr.mxu0 0.0
    %2386 = vmatpush1.msra.mxu0 0.0
    %2387 = vmatprep.subr.mxu0 0.0
    %2388 = vmatpush1.msra.mxu0 0.0
    %2389 = vmatprep.subr.mxu0 0.0
    %2390 = vmatpush1.msra.mxu0 0.0
    %2391 = vmatprep.subr.mxu0 0.0
    %2392 = vmatpush1.msra.mxu0 0.0
    %2393 = vmatprep.subr.mxu0 0.0
    %2394 = vmatpush1.msra.mxu0 0.0
    %2395 = vmatprep.subr.mxu0 0.0
    %2396 = vmatpush1.msra.mxu0 0.0
    %2397 = vmatprep.subr.mxu0 0.0
    %2398 = vmatpush1.msra.mxu0 0.0
    %2399 = vmatprep.subr.mxu0 0.0
    %2400 = vmatpush1.msra.mxu0 0.0
    %2401 = vmatprep.subr.mxu0 0.0
    %2402 = vmatpush1.msra.mxu0 0.0
    %2403 = vmatprep.subr.mxu0 0.0
    %2404 = vmatpush1.msra.mxu0 0.0
    %2405 = vmatprep.subr.mxu0 0.0
    %2406 = vmatpush1.msra.mxu0 0.0
    %2407 = vmatprep.subr.mxu0 0.0
    %2408 = vmatpush1.msra.mxu0 0.0
    %2409 = vmatprep.subr.mxu0 0.0
    %2410 = vmatpush1.msra.mxu0 0.0
    %2411 = vmatprep.subr.mxu0 0.0
    %2412 = vmatpush1.msra.mxu0 0.0
    %2413 = vmatprep.subr.mxu0 0.0
    %2414 = vmatpush1.msra.mxu0 0.0
    %2415 = vmatprep.subr.mxu0 0.0
    %2416 = vmatpush1.msra.mxu0 0.0
    %2417 = vmatprep.subr.mxu0 0.0
    %2418 = vmatpush1.msra.mxu0 0.0
    %2419 = vmatprep.subr.mxu0 0.0
    %2420 = vmatpush1.msra.mxu0 0.0
    %2421 = vmatprep.mubr.f32.mxu0 0.0
    %2422 = vmatmul.mubr.f32.gmra.mrb[0].mxu0 %v2352
    %v2423 = vpop.f32.mrb[0].mxu0
    %v2424 = vadd.f32 %v2350, %v2423
    %v2425 = vpop.f32.mrb[0].mxu0
    %2426 = vmatprep.mubr.f32.mxu0 0.0
    %2427 = vmatmul.mubr.f32.gmra.mrb[0].mxu0 %v2355
    %v2428 = vpop.f32.mrb[0].mxu0
    %v2429 = vadd.f32 %v2350, %v2428
    %v2430 = vpop.f32.mrb[0].mxu0
    %2431 = vdwg.mxu0
    %v2432 = vmax.f32 %v2424, 0.0
    %v2433 = vmax.f32 %v2429, 0.0
    %v2434 = vlaneseq
    %v2435 = vshrl.u32 %v2434, 7
    %v2436 = vsub.s32 0, %v2435
    %v2437 = vrot.slane %v1426, %v2436
    %v2439 = vsel %vm971, %v2432, 0
    %v2442 = vsel %vm971, %v2433, 0
    %2444 = vmatprep.subr.mxu0 0.0
    %2445 = vmatpush1.msra.mxu0 %v1412
    %2446 = vmatprep.subr.mxu0 0.0
    %2447 = vmatpush1.msra.mxu0 %v1413
    %2448 = vmatprep.subr.mxu0 0.0
    %2449 = vmatpush1.msra.mxu0 %v1414
    %2450 = vmatprep.subr.mxu0 0.0
    %2451 = vmatpush1.msra.mxu0 %v1415
    %2452 = vmatprep.subr.mxu0 0.0
    %2453 = vmatpush1.msra.mxu0 %v1416
    %2454 = vmatprep.subr.mxu0 0.0
    %2455 = vmatpush1.msra.mxu0 %v1417
    %2456 = vmatprep.subr.mxu0 0.0
    %2457 = vmatpush1.msra.mxu0 %v1418
    %2458 = vmatprep.subr.mxu0 0.0
    %2459 = vmatpush1.msra.mxu0 %v1419
    %2460 = vmatprep.subr.mxu0 0.0
    %2461 = vmatpush1.msra.mxu0 0.0
    %2462 = vmatprep.subr.mxu0 0.0
    %2463 = vmatpush1.msra.mxu0 0.0
    %2464 = vmatprep.subr.mxu0 0.0
    %2465 = vmatpush1.msra.mxu0 0.0
    %2466 = vmatprep.subr.mxu0 0.0
    %2467 = vmatpush1.msra.mxu0 0.0
    %2468 = vmatprep.subr.mxu0 0.0
    %2469 = vmatpush1.msra.mxu0 0.0
    %2470 = vmatprep.subr.mxu0 0.0
    %2471 = vmatpush1.msra.mxu0 0.0
    %2472 = vmatprep.subr.mxu0 0.0
    %2473 = vmatpush1.msra.mxu0 0.0
    %2474 = vmatprep.subr.mxu0 0.0
    %2475 = vmatpush1.msra.mxu0 0.0
    %2476 = vmatprep.subr.mxu0 0.0
    %2477 = vmatpush1.msra.mxu0 0.0
    %2478 = vmatprep.subr.mxu0 0.0
    %2479 = vmatpush1.msra.mxu0 0.0
    %2480 = vmatprep.subr.mxu0 0.0
    %2481 = vmatpush1.msra.mxu0 0.0
    %2482 = vmatprep.subr.mxu0 0.0
    %2483 = vmatpush1.msra.mxu0 0.0
    %2484 = vmatprep.subr.mxu0 0.0
    %2485 = vmatpush1.msra.mxu0 0.0
    %2486 = vmatprep.subr.mxu0 0.0
    %2487 = vmatpush1.msra.mxu0 0.0
    %2488 = vmatprep.subr.mxu0 0.0
    %2489 = vmatpush1.msra.mxu0 0.0
    %2490 = vmatprep.subr.mxu0 0.0
    %2491 = vmatpush1.msra.mxu0 0.0
    %2492 = vmatprep.subr.mxu0 0.0
    %2493 = vmatpush1.msra.mxu0 0.0
    %2494 = vmatprep.subr.mxu0 0.0
    %2495 = vmatpush1.msra.mxu0 0.0
    %2496 = vmatprep.subr.mxu0 0.0
    %2497 = vmatpush1.msra.mxu0 0.0
    %2498 = vmatprep.subr.mxu0 0.0
    %2499 = vmatpush1.msra.mxu0 0.0
    %2500 = vmatprep.subr.mxu0 0.0
    %2501 = vmatpush1.msra.mxu0 0.0
    %2502 = vmatprep.subr.mxu0 0.0
    %2503 = vmatpush1.msra.mxu0 0.0
    %2504 = vmatprep.subr.mxu0 0.0
    %2505 = vmatpush1.msra.mxu0 0.0
    %2506 = vmatprep.subr.mxu0 0.0
    %2507 = vmatpush1.msra.mxu0 0.0
    %2508 = vmatprep.mubr.f32.mxu0 0.0
    %2509 = vmatmul.mubr.f32.gmra.mrb[0].mxu0 %v2439
    %v2510 = vpop.f32.mrb[0].mxu0
    %v2511 = vadd.f32 %v2437, %v2510
    %v2512 = vpop.f32.mrb[0].mxu0
    %2513 = vmatprep.mubr.f32.mxu0 0.0
    %2514 = vmatmul.mubr.f32.gmra.mrb[0].mxu0 %v2442
    %v2515 = vpop.f32.mrb[0].mxu0
    %v2516 = vadd.f32 %v2437, %v2515
    %v2517 = vpop.f32.mrb[0].mxu0
    %2518 = vdwg.mxu0
    %v2519 = vadd.f32 %v2345, %v2511
    %v2520 = vadd.f32 %v2346, %v2516
    %v2521 = vsel %vm233, %v2519, 0.0
    %2522 = vadd.xlane.f32.xlu0 %v2521
    %v2523 = vpop.xlane.xlu0 %2522
    %v2524 = vsel %vm233, %v2520, 0.0
    %2525 = vadd.xlane.f32.xlu0 %v2524
    %v2526 = vpop.xlane.xlu0 %2525
    %v2527 = vmul.f32 %v2523, %v1146
    %v2528 = vmul.f32 %v2526, %v1146
    %v2529 = vsub.f32 %v2519, %v2527
    %v2530 = vsub.f32 %v2520, %v2528
    %v2531 = vmul.f32 %v2529, %v2529
    %v2532 = vmul.f32 %v2530, %v2530
    %v2533 = vsel %vm233, %v2531, 0.0
    %2534 = vadd.xlane.f32.xlu0 %v2533
    %v2535 = vpop.xlane.xlu0 %2534
    %v2536 = vsel %vm233, %v2532, 0.0
    %2537 = vadd.xlane.f32.xlu0 %v2536
    %v2538 = vpop.xlane.xlu0 %2537
    %v2539 = vmul.f32 %v2535, %v1146
    %v2540 = vmul.f32 %v2538, %v1146
    %v2541 = vadd.f32 %v2539, 1e-05
    %v2542 = vadd.f32 %v2540, 1e-05
    %v2543 = vrsqrt.pop %v2541
    %v2544 = vrsqrt.pop %v2542
    %v2545 = vmul.f32 %v2529, %v2543
    %v2546 = vmul.f32 %v2530, %v2544
    %v2547 = vlaneseq
    %v2548 = vshrl.u32 %v2547, 7
    %v2549 = vsub.s32 0, %v2548
    %v2550 = vrot.slane %v1429, %v2549
    %v2551 = vmul.f32 %v2545, %v2550
    %v2552 = vmul.f32 %v2546, %v2550
    %v2553 = vlaneseq
    %v2554 = vshrl.u32 %v2553, 7
    %v2555 = vsub.s32 0, %v2554
    %v2556 = vrot.slane %v1430, %v2555
    %v2557 = vadd.f32 %v2551, %v2556
    %v2558 = vadd.f32 %v2552, %v2556
    %v2559 = vld [vmem:[#allocation2 + $0x118] sm:$0xff]
    %v2560 = vld [vmem:[#allocation2 + $0x120] sm:$0xff]
    %v2561 = vld [vmem:[#allocation2 + $0x128] sm:$0xff]
    %v2562 = vld [vmem:[#allocation2 + $0x130] sm:$0xff]
    %v2563 = vld [vmem:[#allocation2 + $0x138] sm:$0xff]
    %v2564 = vld [vmem:[#allocation2 + $0x140] sm:$0x1]
    %v2566 = vsel %vm473, %v2559, 0
    %2568 = vmatprep.subr.mxu0 0.0
    %2569 = vmatpush1.msra.mxu0 %v2557
    %2570 = vmatprep.subr.mxu0 0.0
    %2571 = vmatpush1.msra.mxu0 %v2558
    %2572 = vmatprep.subr.mxu0 0.0
    %2573 = vmatpush1.msra.mxu0 0.0
    %2574 = vmatprep.subr.mxu0 0.0
    %2575 = vmatpush1.msra.mxu0 0.0
    %2576 = vmatprep.subr.mxu0 0.0
    %2577 = vmatpush1.msra.mxu0 0.0
    %2578 = vmatprep.subr.mxu0 0.0
    %2579 = vmatpush1.msra.mxu0 0.0
    %2580 = vmatprep.subr.mxu0 0.0
    %2581 = vmatpush1.msra.mxu0 0.0
    %2582 = vmatprep.subr.mxu0 0.0
    %2583 = vmatpush1.msra.mxu0 0.0
    %2584 = vmatprep.subr.mxu0 0.0
    %2585 = vmatpush1.msra.mxu0 0.0
    %2586 = vmatprep.subr.mxu0 0.0
    %2587 = vmatpush1.msra.mxu0 0.0
    %2588 = vmatprep.subr.mxu0 0.0
    %2589 = vmatpush1.msra.mxu0 0.0
    %2590 = vmatprep.subr.mxu0 0.0
    %2591 = vmatpush1.msra.mxu0 0.0
    %2592 = vmatprep.subr.mxu0 0.0
    %2593 = vmatpush1.msra.mxu0 0.0
    %2594 = vmatprep.subr.mxu0 0.0
    %2595 = vmatpush1.msra.mxu0 0.0
    %2596 = vmatprep.subr.mxu0 0.0
    %2597 = vmatpush1.msra.mxu0 0.0
    %2598 = vmatprep.subr.mxu0 0.0
    %2599 = vmatpush1.msra.mxu0 0.0
    %2600 = vmatprep.subr.mxu0 0.0
    %2601 = vmatpush1.msra.mxu0 0.0
    %2602 = vmatprep.subr.mxu0 0.0
    %2603 = vmatpush1.msra.mxu0 0.0
    %2604 = vmatprep.subr.mxu0 0.0
    %2605 = vmatpush1.msra.mxu0 0.0
    %2606 = vmatprep.subr.mxu0 0.0
    %2607 = vmatpush1.msra.mxu0 0.0
    %2608 = vmatprep.subr.mxu0 0.0
    %2609 = vmatpush1.msra.mxu0 0.0
    %2610 = vmatprep.subr.mxu0 0.0
    %2611 = vmatpush1.msra.mxu0 0.0
    %2612 = vmatprep.subr.mxu0 0.0
    %2613 = vmatpush1.msra.mxu0 0.0
    %2614 = vmatprep.subr.mxu0 0.0
    %2615 = vmatpush1.msra.mxu0 0.0
    %2616 = vmatprep.subr.mxu0 0.0
    %2617 = vmatpush1.msra.mxu0 0.0
    %2618 = vmatprep.subr.mxu0 0.0
    %2619 = vmatpush1.msra.mxu0 0.0
    %2620 = vmatprep.subr.mxu0 0.0
    %2621 = vmatpush1.msra.mxu0 0.0
    %2622 = vmatprep.subr.mxu0 0.0
    %2623 = vmatpush1.msra.mxu0 0.0
    %2624 = vmatprep.subr.mxu0 0.0
    %2625 = vmatpush1.msra.mxu0 0.0
    %2626 = vmatprep.subr.mxu0 0.0
    %2627 = vmatpush1.msra.mxu0 0.0
    %2628 = vmatprep.subr.mxu0 0.0
    %2629 = vmatpush1.msra.mxu0 0.0
    %2630 = vmatprep.subr.mxu0 0.0
    %2631 = vmatpush1.msra.mxu0 0.0
    %2632 = vmatprep.mubr.f32.mxu0 0.0
    %2633 = vmatmul.mubr.f32.gmra.mrb[0].mxu0 %v2566
    %v2634 = vpop.f32.mrb[0].mxu0
    %v2635 = vadd.f32 0.0, %v2634
    %v2636 = vpop.f32.mrb[0].mxu0
    %2637 = vdwg.mxu0
    %v2638 = vlaneseq
    %v2639 = vshrl.u32 %v2638, 7
    %v2640 = vsub.s32 0, %v2639
    %v2641 = vrot.slane %v2564, %v2640
    %v2643 = vsel %vm233, %v2635, 0
    %2645 = vmatprep.subr.mxu0 0.0
    %2646 = vmatpush1.msra.mxu0 %v2560
    %2647 = vmatprep.subr.mxu0 0.0
    %2648 = vmatpush1.msra.mxu0 %v2561
    %2649 = vmatprep.subr.mxu0 0.0
    %2650 = vmatpush1.msra.mxu0 %v2562
    %2651 = vmatprep.subr.mxu0 0.0
    %2652 = vmatpush1.msra.mxu0 %v2563
    %2653 = vmatprep.subr.mxu0 0.0
    %2654 = vmatpush1.msra.mxu0 0.0
    %2655 = vmatprep.subr.mxu0 0.0
    %2656 = vmatpush1.msra.mxu0 0.0
    %2657 = vmatprep.subr.mxu0 0.0
    %2658 = vmatpush1.msra.mxu0 0.0
    %2659 = vmatprep.subr.mxu0 0.0
    %2660 = vmatpush1.msra.mxu0 0.0
    %2661 = vmatprep.subr.mxu0 0.0
    %2662 = vmatpush1.msra.mxu0 0.0
    %2663 = vmatprep.subr.mxu0 0.0
    %2664 = vmatpush1.msra.mxu0 0.0
    %2665 = vmatprep.subr.mxu0 0.0
    %2666 = vmatpush1.msra.mxu0 0.0
    %2667 = vmatprep.subr.mxu0 0.0
    %2668 = vmatpush1.msra.mxu0 0.0
    %2669 = vmatprep.subr.mxu0 0.0
    %2670 = vmatpush1.msra.mxu0 0.0
    %2671 = vmatprep.subr.mxu0 0.0
    %2672 = vmatpush1.msra.mxu0 0.0
    %2673 = vmatprep.subr.mxu0 0.0
    %2674 = vmatpush1.msra.mxu0 0.0
    %2675 = vmatprep.subr.mxu0 0.0
    %2676 = vmatpush1.msra.mxu0 0.0
    %2677 = vmatprep.subr.mxu0 0.0
    %2678 = vmatpush1.msra.mxu0 0.0
    %2679 = vmatprep.subr.mxu0 0.0
    %2680 = vmatpush1.msra.mxu0 0.0
    %2681 = vmatprep.subr.mxu0 0.0
    %2682 = vmatpush1.msra.mxu0 0.0
    %2683 = vmatprep.subr.mxu0 0.0
    %2684 = vmatpush1.msra.mxu0 0.0
    %2685 = vmatprep.subr.mxu0 0.0
    %2686 = vmatpush1.msra.mxu0 0.0
    %2687 = vmatprep.subr.mxu0 0.0
    %2688 = vmatpush1.msra.mxu0 0.0
    %2689 = vmatprep.subr.mxu0 0.0
    %2690 = vmatpush1.msra.mxu0 0.0
    %2691 = vmatprep.subr.mxu0 0.0
    %2692 = vmatpush1.msra.mxu0 0.0
    %2693 = vmatprep.subr.mxu0 0.0
    %2694 = vmatpush1.msra.mxu0 0.0
    %2695 = vmatprep.subr.mxu0 0.0
    %2696 = vmatpush1.msra.mxu0 0.0
    %2697 = vmatprep.subr.mxu0 0.0
    %2698 = vmatpush1.msra.mxu0 0.0
    %2699 = vmatprep.subr.mxu0 0.0
    %2700 = vmatpush1.msra.mxu0 0.0
    %2701 = vmatprep.subr.mxu0 0.0
    %2702 = vmatpush1.msra.mxu0 0.0
    %2703 = vmatprep.subr.mxu0 0.0
    %2704 = vmatpush1.msra.mxu0 0.0
    %2705 = vmatprep.subr.mxu0 0.0
    %2706 = vmatpush1.msra.mxu0 0.0
    %2707 = vmatprep.subr.mxu0 0.0
    %2708 = vmatpush1.msra.mxu0 0.0
    %2709 = vmatprep.mubr.f32.mxu0 0.0
    %2710 = vmatmul.mubr.f32.gmra.mrb[0].mxu0 %v2643
    %v2711 = vpop.f32.mrb[0].mxu0
    %v2712 = vadd.f32 %v2641, %v2711
    %v2713 = vpop.f32.mrb[0].mxu0
    %2714 = vdwg.mxu0
    %2715 = vst [vmem:[%s4] sm:$0xff] %v2712
    // Predicated region
    $region30: #{gpt_classifier_forward.1} parent=1 // pred_check
      _
    $region31: #{gpt_classifier_forward.1} parent=1 // pred_check_branch
      %2717 = sbr.rel (0) target = $region33
    $region32: #{gpt_classifier_forward.1} parent=1 // pred_region
      _
    $region33: #{gpt_classifier_forward.1} parent=1 // pred_fallthru
      _
    // Predicated region
    $region34: #{gpt_classifier_forward.1} parent=1 // pred_check
      _
    $region35: #{gpt_classifier_forward.1} parent=1 // pred_check_branch
      %2719 = sbr.rel (0) target = $region37
    $region36: #{gpt_classifier_forward.1} parent=1 // pred_region
      _
    $region37: #{gpt_classifier_forward.1} parent=1 // pred_fallthru
      _
    %2720 = vsyncpa [#allocation3], 1
    %2721 = vsyncpa [#allocation5], 1

</llo_original>
